<compile_context>
chip_gen: v7x
topology: tpu7x:2x2x1
jax: 0.10.0
libtpu: 0.0.40
codegen_flags: <defaults>
</compile_context>

<pallas_src>
import numpy as np
import jax
import jax.numpy as jnp
from jax.experimental import pallas as pl
from jax.experimental.pallas import tpu as pltpu

# ---- model hyperparameters (small test sizes consistent with the module) ----
MAX_NB_VARIABLES = 17      # au_dim / Conv1d in_channels
MAX_SEQ_LENGTH   = 64      # max_seq_length (reduced from 700 for the test)
NB_CLASSES       = 25
C_MID            = 64      # conv*_1 out channels
C_OUT            = 128     # conv*_2 out channels
KERNEL_SIZES     = (3, 5, 7, 9)
K_MAX            = 9       # all kernels zero-padded to 9 centred taps
PAD              = (K_MAX - 1) // 2
N_BRANCH         = 4
HEAD_PAD         = 128     # lane-dense padded logits width (>= NB_CLASSES)


def _personality_kernel(lens_ref,   # SMEM (B,)                 int32 (scalar prefetch)
                        x_ref,      # VMEM (T, Cin)             f32   (one sample)
                        w1_ref,     # VMEM (9, Cin, 4*64)       bf16  (per-tap, branch-fused)
                        b1_ref,     # VMEM (1, 4*64)            f32
                        w2_ref,     # VMEM (4, 9*64, 128)       bf16  (per-branch im2col)
                        b2_ref,     # VMEM (4, 1, 128)          f32
                        wh_ref,     # VMEM (4*128, HEAD_PAD)    f32   (GAP 1/T + fc1 + fc2 folded)
                        bh_ref,     # VMEM (1, HEAD_PAD)        f32
                        out_ref,    # VMEM (1, HEAD_PAD)        f32
                        xpad_ref,   # scratch VMEM (T+2P, Cin)   bf16
                        hpad_ref):  # scratch VMEM (T+2P, 4*64)  bf16
    T, cin = x_ref.shape
    cm4 = b1_ref.shape[-1]          # 4 * C_MID = 256
    b = pl.program_id(0)
    length = lens_ref[b]            # scalar from SMEM

    # ---- masked_fill(src_mask, 0): (T,1) iota broadcast over channels ----
    t_idx = jax.lax.broadcasted_iota(jnp.int32, (T, 1), 0)
    xb = jnp.where(t_idx < length, x_ref[...], 0.0).astype(jnp.bfloat16)

    # ---- zero-padded time buffer (= "same" conv padding) for the input ----
    xpad_ref[pl.ds(0, PAD), :] = jnp.zeros((PAD, cin), jnp.bfloat16)
    xpad_ref[pl.ds(PAD + T, PAD), :] = jnp.zeros((PAD, cin), jnp.bfloat16)
    xpad_ref[pl.ds(PAD, T), :] = xb

    # ---- conv{1..4}_1 fused over branches: 9-tap sum of (T,Cin)@(Cin,256) ----
    # (no im2col concatenate of 17-lane slabs; conv1 is ~3% of total MACs)
    acc1 = jnp.zeros((T, cm4), jnp.float32)
    for k in range(K_MAX):
        acc1 += jnp.dot(xpad_ref[pl.ds(k, T), :], w1_ref[k],
                        preferred_element_type=jnp.float32)
    h1 = jnp.maximum(acc1 + b1_ref[...], 0.0).astype(jnp.bfloat16)   # (T, 256)

    # ---- padded bf16 scratch for conv2's shifted-window reads ----
    hpad_ref[pl.ds(0, PAD), :] = jnp.zeros((PAD, cm4), jnp.bfloat16)
    hpad_ref[pl.ds(PAD + T, PAD), :] = jnp.zeros((PAD, cm4), jnp.bfloat16)
    hpad_ref[pl.ds(PAD, T), :] = h1

    # ---- conv{1..4}_2: per-branch dense (T, 576) @ (576, 128) dots ----
    # TODO(synk): Dropout(0.5) treated as identity (inference / eval mode).
    pooled = []
    for br in range(N_BRANCH):
        hcol = jnp.concatenate(
            [hpad_ref[pl.ds(k, T), pl.ds(br * C_MID, C_MID)]
             for k in range(K_MAX)], axis=-1)                        # (T, 576) bf16
        h2 = jnp.dot(hcol, w2_ref[br], preferred_element_type=jnp.float32)
        h2 = jnp.maximum(h2 + b2_ref[br], 0.0)                       # (T, 128) f32
        pooled.append(jnp.sum(h2, axis=0, keepdims=True))            # (1, 128)

    # ---- AdaptiveAvgPool1d(1) + fc1 + fc2 (all folded into wh/bh) ----
    feat = jnp.concatenate(pooled, axis=-1)                          # (1, 512)
    out = jnp.dot(feat, wh_ref[...], preferred_element_type=jnp.float32) + bh_ref[...]
    out_ref[...] = out                                               # lane-dense store


def _prepare_params(params, T):
    """Wrapper-side weight layout prep: branch fusion for conv1, per-branch
    dense im2col weights for conv2, GAP(1/T)+fc1+fc2 folding, head padding."""
    w1, b1, w2, b2, wl1, bl1, wl2, bl2 = params
    cin = w1.shape[2]

    # conv1: (4, 9, Cin, 64) -> (9, Cin, 4*64); cols ordered (branch, out)
    w1k = jnp.transpose(w1, (1, 2, 0, 3)).reshape(K_MAX, cin, N_BRANCH * C_MID)
    b1f = jnp.transpose(b1, (1, 0, 2)).reshape(1, N_BRANCH * C_MID)

    # conv2: per-branch dense weight (4, 9*64, 128); rows ordered (tap, mid)
    w2f = w2.reshape(N_BRANCH, K_MAX * C_MID, C_OUT)
    b2f = b2.reshape(N_BRANCH, 1, C_OUT)

    # head: pad logits 25 -> 128 lanes, fold fc2 into fc1 and GAP 1/T (actual T)
    wl2p = jnp.zeros((wl1.shape[1], HEAD_PAD), jnp.float32).at[:, :NB_CLASSES].set(wl2)
    bl2p = jnp.zeros((1, HEAD_PAD), jnp.float32).at[:, :NB_CLASSES].set(bl2)
    hi = jax.lax.Precision.HIGHEST
    wh = jnp.dot(wl1, wl2p, precision=hi) / float(T)
    bh = jnp.dot(bl1, wl2p, precision=hi) + bl2p

    return (w1k.astype(jnp.bfloat16), b1f, w2f.astype(jnp.bfloat16), b2f, wh, bh)


def personality_forward(action_units, lengths, params):
    """action_units: (B, T, Cin) f32, lengths: (B,) int32."""
    B, T, cin = action_units.shape
    w1k, b1f, w2f, b2f, wh, bh = _prepare_params(params, T)
    lens = lengths.astype(jnp.int32)

    grid_spec = pltpu.PrefetchScalarGridSpec(
        num_scalar_prefetch=1,          # lengths -> SMEM
        grid=(B,),                      # one sample per grid step
        in_specs=[
            pl.BlockSpec((None, T, cin), lambda b, lens: (b, 0, 0)),
            # weights: constant index_maps -> fetched once, stay resident
            pl.BlockSpec(w1k.shape, lambda b, lens: (0, 0, 0)),
            pl.BlockSpec(b1f.shape, lambda b, lens: (0, 0)),
            pl.BlockSpec(w2f.shape, lambda b, lens: (0, 0, 0)),
            pl.BlockSpec(b2f.shape, lambda b, lens: (0, 0, 0)),
            pl.BlockSpec(wh.shape, lambda b, lens: (0, 0)),
            pl.BlockSpec(bh.shape, lambda b, lens: (0, 0)),
        ],
        out_specs=pl.BlockSpec((None, 1, HEAD_PAD), lambda b, lens: (b, 0, 0)),
        scratch_shapes=[
            pltpu.VMEM((T + 2 * PAD, cin), jnp.bfloat16),
            pltpu.VMEM((T + 2 * PAD, N_BRANCH * C_MID), jnp.bfloat16),
        ],
    )

    flops = (2 * B * T * K_MAX * cin * N_BRANCH * C_MID            # conv1
             + 2 * B * T * N_BRANCH * K_MAX * C_MID * C_OUT        # conv2
             + 2 * B * N_BRANCH * C_OUT * HEAD_PAD)                # head
    bytes_accessed = (action_units.size * 4 + B * HEAD_PAD * 4
                      + w1k.size * 2 + w2f.size * 2 + wh.size * 4)

    out = pl.pallas_call(
        _personality_kernel,
        out_shape=jax.ShapeDtypeStruct((B, 1, HEAD_PAD), jnp.float32),
        grid_spec=grid_spec,
        compiler_params=pltpu.CompilerParams(
            dimension_semantics=("parallel",),       # shard batch across TCs (v7x)
            vmem_limit_bytes=32 * 1024 * 1024),
        cost_estimate=pl.CostEstimate(flops=flops, transcendentals=0,
                                      bytes_accessed=bytes_accessed),
        # NOTE: at production sizes (T=700, large B) additionally tile the time
        # axis (second grid dim, "arbitrary") with the pooled sum accumulated
        # in a VMEM scratch, to keep the (T, 576) im2col slab bounded.
    )(lens, action_units, w1k, b1f, w2f, b2f, wh, bh)
    return out.reshape(B, HEAD_PAD)[:, :NB_CLASSES]


# ----------------------- deterministic parameter init -----------------------
def init_params(key):
    ks = jax.random.split(key, 12)
    cin = MAX_NB_VARIABLES

    w1 = jnp.zeros((4, K_MAX, cin, C_MID), jnp.float32)
    b1 = jnp.zeros((4, 1, C_MID), jnp.float32)
    w2 = jnp.zeros((4, K_MAX, C_MID, C_OUT), jnp.float32)
    b2 = jnp.zeros((4, 1, C_OUT), jnp.float32)
    for br, kb in enumerate(KERNEL_SIZES):
        off = (K_MAX - kb) // 2
        k1, k2, k3, k4 = jax.random.split(ks[br], 4)
        w1 = w1.at[br, off:off + kb].set(
            jax.random.normal(k1, (kb, cin, C_MID), jnp.float32) / np.sqrt(cin * kb))
        b1 = b1.at[br].set(0.05 * jax.random.normal(k2, (1, C_MID), jnp.float32))
        w2 = w2.at[br, off:off + kb].set(
            jax.random.normal(k3, (kb, C_MID, C_OUT), jnp.float32) / np.sqrt(C_MID * kb))
        b2 = b2.at[br].set(0.05 * jax.random.normal(k4, (1, C_OUT), jnp.float32))

    wl1 = jax.random.normal(ks[8], (4 * C_OUT, 128), jnp.float32) / np.sqrt(4 * C_OUT)
    bl1 = 0.05 * jax.random.normal(ks[9], (1, 128), jnp.float32)
    wl2 = jax.random.normal(ks[10], (128, NB_CLASSES), jnp.float32) / np.sqrt(128)
    bl2 = 0.05 * jax.random.normal(ks[11], (1, NB_CLASSES), jnp.float32)
    return (w1, b1, w2, b2, wl1, bl1, wl2, bl2)


# ------------------------- pure-JAX reference (check) -----------------------
def reference_forward(action_units, lengths, params):
    w1, b1, w2, b2, wl1, bl1, wl2, bl2 = params
    B, T, _ = action_units.shape
    valid = (jnp.arange(T)[None, :] < lengths[:, None]).astype(action_units.dtype)
    y = action_units * valid[:, :, None]
    dn = ('NWC', 'WIO', 'NWC')
    pad = [((K_MAX - 1) // 2, (K_MAX - 1) // 2)]
    pooled = []
    for br in range(4):
        h1 = jax.lax.conv_general_dilated(y, w1[br], (1,), pad, dimension_numbers=dn)
        h1 = jax.nn.relu(h1 + b1[br])
        h2 = jax.lax.conv_general_dilated(h1, w2[br], (1,), pad, dimension_numbers=dn)
        h2 = jax.nn.relu(h2 + b2[br])
        pooled.append(jnp.mean(h2, axis=1))          # (B, 128)
    feat = jnp.concatenate(pooled, axis=1)           # (B, 512)
    z = feat @ wl1 + bl1[0]
    return z @ wl2 + bl2[0]


if __name__ == "__main__":
    key = jax.random.PRNGKey(0)
    k_par, k_x = jax.random.split(key)

    B = 2
    params = init_params(k_par)
    action_units = jax.random.normal(
        k_x, (B, MAX_SEQ_LENGTH, MAX_NB_VARIABLES), jnp.float32)
    lengths = jnp.array([37, 52], dtype=jnp.int32)
    # NOTE: the PyTorch forward() ignores `timesteps`; it is omitted here.

    fwd = jax.jit(personality_forward)
    out = jax.block_until_ready(fwd(action_units, lengths, params))
    assert out.shape == (B, NB_CLASSES)

    ref = jax.block_until_ready(reference_forward(action_units, lengths, params))
    np.testing.assert_allclose(np.asarray(out), np.asarray(ref), rtol=5e-2, atol=5e-2)

    print("KERNEL_OK")
</pallas_src>

<mosaic_0001>
module attributes {stable_mosaic.version = 11 : i64} {
  func.func @_personality_kernel(%arg0: i32, %arg1: memref<2xi32, #tpu.memory_space<smem>>, %arg2: memref<1x64x17xf32, #tpu.memory_space<vmem>>, %arg3: memref<9x17x256xbf16, #tpu.memory_space<vmem>>, %arg4: memref<1x256xf32, #tpu.memory_space<vmem>>, %arg5: memref<4x576x128xbf16, #tpu.memory_space<vmem>>, %arg6: memref<4x1x128xf32, #tpu.memory_space<vmem>>, %arg7: memref<512x128xf32, #tpu.memory_space<vmem>>, %arg8: memref<1x128xf32, #tpu.memory_space<vmem>>, %arg9: memref<1x1x128xf32, #tpu.memory_space<vmem>>, %arg10: memref<72x17xbf16, #tpu.memory_space<vmem>>, %arg11: memref<72x256xbf16, #tpu.memory_space<vmem>>) attributes {dimension_semantics = [#tpu.dimension_semantics<parallel>], iteration_bounds = array<i64: 2>, scalar_prefetch = 1 : i64, scratch_operands = 2 : i64, tpu.core_type = #tpu.core_type<tc>, window_params = [{transform_indices = @transform_0, window_bounds = array<i64: 1, 64, 17>}, {pipeline_mode = #tpu.pipeline_mode<synchronous>, transform_indices = @transform_1, window_bounds = array<i64: 9, 17, 256>}, {pipeline_mode = #tpu.pipeline_mode<synchronous>, transform_indices = @transform_2, window_bounds = array<i64: 1, 256>}, {pipeline_mode = #tpu.pipeline_mode<synchronous>, transform_indices = @transform_3, window_bounds = array<i64: 4, 576, 128>}, {pipeline_mode = #tpu.pipeline_mode<synchronous>, transform_indices = @transform_4, window_bounds = array<i64: 4, 1, 128>}, {pipeline_mode = #tpu.pipeline_mode<synchronous>, transform_indices = @transform_5, window_bounds = array<i64: 512, 128>}, {pipeline_mode = #tpu.pipeline_mode<synchronous>, transform_indices = @transform_6, window_bounds = array<i64: 1, 128>}, {transform_indices = @transform_7, window_bounds = array<i64: 1, 1, 128>}]} {
    %0 = arith.index_cast %arg0 : i32 to index
    %1 = memref.load %arg1[%0] : memref<2xi32, #tpu.memory_space<smem>>
    %2 = tpu.iota {dimensions = array<i32: 0>} : vector<64x1xi32>
    %3 = vector.broadcast %1 : i32 to vector<64x1xi32>
    %4 = arith.cmpi slt, %2, %3 : vector<64x1xi32>
    %c0 = arith.constant 0 : index
    %c0_0 = arith.constant 0 : index
    %c0_1 = arith.constant 0 : index
    %5 = vector.load %arg2[%c0, %c0_0, %c0_1] : memref<1x64x17xf32, #tpu.memory_space<vmem>>, vector<1x64x17xf32>
    %6 = vector.shape_cast %5 : vector<1x64x17xf32> to vector<64x17xf32>
    %cst = arith.constant 0.000000e+00 : f32
    %7 = vector.shape_cast %4 : vector<64x1xi1> to vector<64x1xi1>
    %8 = vector.broadcast %7 : vector<64x1xi1> to vector<64x17xi1>
    %9 = vector.broadcast %cst : f32 to vector<64x17xf32>
    %10 = arith.select %8, %6, %9 : vector<64x17xi1>, vector<64x17xf32>
    %11 = arith.truncf %10 : vector<64x17xf32> to vector<64x17xbf16>
    %cst_2 = arith.constant 0.000000e+00 : bf16
    %12 = vector.broadcast %cst_2 : bf16 to vector<4x17xbf16>
    %c0_3 = arith.constant 0 : index
    %c0_4 = arith.constant 0 : index
    %13 = vector.load %arg10[%c0_3, %c0_4] : memref<72x17xbf16, #tpu.memory_space<vmem>>, vector<4x17xbf16>
    tpu.vector_store %arg10[%c0_3, %c0_4], %12 {strides = array<i32>} : memref<72x17xbf16, #tpu.memory_space<vmem>>, vector<4x17xbf16>,
    %cst_5 = arith.constant 0.000000e+00 : bf16
    %14 = vector.broadcast %cst_5 : bf16 to vector<4x17xbf16>
    %c68 = arith.constant 68 : index
    %c0_6 = arith.constant 0 : index
    %15 = vector.load %arg10[%c68, %c0_6] : memref<72x17xbf16, #tpu.memory_space<vmem>>, vector<4x17xbf16>
    tpu.vector_store %arg10[%c68, %c0_6], %14 {strides = array<i32>} : memref<72x17xbf16, #tpu.memory_space<vmem>>, vector<4x17xbf16>,
    %c4 = arith.constant 4 : index
    %c0_7 = arith.constant 0 : index
    %16 = vector.load %arg10[%c4, %c0_7] : memref<72x17xbf16, #tpu.memory_space<vmem>>, vector<64x17xbf16>
    tpu.vector_store %arg10[%c4, %c0_7], %11 {strides = array<i32>} : memref<72x17xbf16, #tpu.memory_space<vmem>>, vector<64x17xbf16>,
    %cst_8 = arith.constant 0.000000e+00 : f32
    %17 = vector.broadcast %cst_8 : f32 to vector<64x256xf32>
    %c0_9 = arith.constant 0 : index
    %c0_10 = arith.constant 0 : index
    %18 = vector.load %arg10[%c0_9, %c0_10] : memref<72x17xbf16, #tpu.memory_space<vmem>>, vector<64x17xbf16>
    %c0_11 = arith.constant 0 : index
    %c0_12 = arith.constant 0 : index
    %c0_13 = arith.constant 0 : index
    %19 = vector.load %arg3[%c0_11, %c0_12, %c0_13] : memref<9x17x256xbf16, #tpu.memory_space<vmem>>, vector<1x17x256xbf16>
    %20 = vector.shape_cast %19 : vector<1x17x256xbf16> to vector<17x256xbf16>
    %cst_14 = arith.constant dense<0.000000e+00> : vector<64x256xf32>
    %21 = tpu.matmul %18, %20, %cst_14 {dimension_numbers = #tpu.dot_dimension_numbers<[1], [0], [0], [1], [0, 0, 1, 1], [], []>} : vector<64x17xbf16>, vector<17x256xbf16>, vector<64x256xf32> -> vector<64x256xf32>
    %22 = arith.addf %17, %21 : vector<64x256xf32>
    %c1 = arith.constant 1 : index
    %c0_15 = arith.constant 0 : index
    %23 = vector.load %arg10[%c1, %c0_15] : memref<72x17xbf16, #tpu.memory_space<vmem>>, vector<64x17xbf16>
    %c1_16 = arith.constant 1 : index
    %c0_17 = arith.constant 0 : index
    %c0_18 = arith.constant 0 : index
    %24 = vector.load %arg3[%c1_16, %c0_17, %c0_18] : memref<9x17x256xbf16, #tpu.memory_space<vmem>>, vector<1x17x256xbf16>
    %25 = vector.shape_cast %24 : vector<1x17x256xbf16> to vector<17x256xbf16>
    %cst_19 = arith.constant dense<0.000000e+00> : vector<64x256xf32>
    %26 = tpu.matmul %23, %25, %cst_19 {dimension_numbers = #tpu.dot_dimension_numbers<[1], [0], [0], [1], [0, 0, 1, 1], [], []>} : vector<64x17xbf16>, vector<17x256xbf16>, vector<64x256xf32> -> vector<64x256xf32>
    %27 = arith.addf %22, %26 : vector<64x256xf32>
    %c2 = arith.constant 2 : index
    %c0_20 = arith.constant 0 : index
    %28 = vector.load %arg10[%c2, %c0_20] : memref<72x17xbf16, #tpu.memory_space<vmem>>, vector<64x17xbf16>
    %c2_21 = arith.constant 2 : index
    %c0_22 = arith.constant 0 : index
    %c0_23 = arith.constant 0 : index
    %29 = vector.load %arg3[%c2_21, %c0_22, %c0_23] : memref<9x17x256xbf16, #tpu.memory_space<vmem>>, vector<1x17x256xbf16>
    %30 = vector.shape_cast %29 : vector<1x17x256xbf16> to vector<17x256xbf16>
    %cst_24 = arith.constant dense<0.000000e+00> : vector<64x256xf32>
    %31 = tpu.matmul %28, %30, %cst_24 {dimension_numbers = #tpu.dot_dimension_numbers<[1], [0], [0], [1], [0, 0, 1, 1], [], []>} : vector<64x17xbf16>, vector<17x256xbf16>, vector<64x256xf32> -> vector<64x256xf32>
    %32 = arith.addf %27, %31 : vector<64x256xf32>
    %c3 = arith.constant 3 : index
    %c0_25 = arith.constant 0 : index
    %33 = vector.load %arg10[%c3, %c0_25] : memref<72x17xbf16, #tpu.memory_space<vmem>>, vector<64x17xbf16>
    %c3_26 = arith.constant 3 : index
    %c0_27 = arith.constant 0 : index
    %c0_28 = arith.constant 0 : index
    %34 = vector.load %arg3[%c3_26, %c0_27, %c0_28] : memref<9x17x256xbf16, #tpu.memory_space<vmem>>, vector<1x17x256xbf16>
    %35 = vector.shape_cast %34 : vector<1x17x256xbf16> to vector<17x256xbf16>
    %cst_29 = arith.constant dense<0.000000e+00> : vector<64x256xf32>
    %36 = tpu.matmul %33, %35, %cst_29 {dimension_numbers = #tpu.dot_dimension_numbers<[1], [0], [0], [1], [0, 0, 1, 1], [], []>} : vector<64x17xbf16>, vector<17x256xbf16>, vector<64x256xf32> -> vector<64x256xf32>
    %37 = arith.addf %32, %36 : vector<64x256xf32>
    %c4_30 = arith.constant 4 : index
    %c0_31 = arith.constant 0 : index
    %38 = vector.load %arg10[%c4_30, %c0_31] : memref<72x17xbf16, #tpu.memory_space<vmem>>, vector<64x17xbf16>
    %c4_32 = arith.constant 4 : index
    %c0_33 = arith.constant 0 : index
    %c0_34 = arith.constant 0 : index
    %39 = vector.load %arg3[%c4_32, %c0_33, %c0_34] : memref<9x17x256xbf16, #tpu.memory_space<vmem>>, vector<1x17x256xbf16>
    %40 = vector.shape_cast %39 : vector<1x17x256xbf16> to vector<17x256xbf16>
    %cst_35 = arith.constant dense<0.000000e+00> : vector<64x256xf32>
    %41 = tpu.matmul %38, %40, %cst_35 {dimension_numbers = #tpu.dot_dimension_numbers<[1], [0], [0], [1], [0, 0, 1, 1], [], []>} : vector<64x17xbf16>, vector<17x256xbf16>, vector<64x256xf32> -> vector<64x256xf32>
    %42 = arith.addf %37, %41 : vector<64x256xf32>
    %c5 = arith.constant 5 : index
    %c0_36 = arith.constant 0 : index
    %43 = vector.load %arg10[%c5, %c0_36] : memref<72x17xbf16, #tpu.memory_space<vmem>>, vector<64x17xbf16>
    %c5_37 = arith.constant 5 : index
    %c0_38 = arith.constant 0 : index
    %c0_39 = arith.constant 0 : index
    %44 = vector.load %arg3[%c5_37, %c0_38, %c0_39] : memref<9x17x256xbf16, #tpu.memory_space<vmem>>, vector<1x17x256xbf16>
    %45 = vector.shape_cast %44 : vector<1x17x256xbf16> to vector<17x256xbf16>
    %cst_40 = arith.constant dense<0.000000e+00> : vector<64x256xf32>
    %46 = tpu.matmul %43, %45, %cst_40 {dimension_numbers = #tpu.dot_dimension_numbers<[1], [0], [0], [1], [0, 0, 1, 1], [], []>} : vector<64x17xbf16>, vector<17x256xbf16>, vector<64x256xf32> -> vector<64x256xf32>
    %47 = arith.addf %42, %46 : vector<64x256xf32>
    %c6 = arith.constant 6 : index
    %c0_41 = arith.constant 0 : index
    %48 = vector.load %arg10[%c6, %c0_41] : memref<72x17xbf16, #tpu.memory_space<vmem>>, vector<64x17xbf16>
    %c6_42 = arith.constant 6 : index
    %c0_43 = arith.constant 0 : index
    %c0_44 = arith.constant 0 : index
    %49 = vector.load %arg3[%c6_42, %c0_43, %c0_44] : memref<9x17x256xbf16, #tpu.memory_space<vmem>>, vector<1x17x256xbf16>
    %50 = vector.shape_cast %49 : vector<1x17x256xbf16> to vector<17x256xbf16>
    %cst_45 = arith.constant dense<0.000000e+00> : vector<64x256xf32>
    %51 = tpu.matmul %48, %50, %cst_45 {dimension_numbers = #tpu.dot_dimension_numbers<[1], [0], [0], [1], [0, 0, 1, 1], [], []>} : vector<64x17xbf16>, vector<17x256xbf16>, vector<64x256xf32> -> vector<64x256xf32>
    %52 = arith.addf %47, %51 : vector<64x256xf32>
    %c7 = arith.constant 7 : index
    %c0_46 = arith.constant 0 : index
    %53 = vector.load %arg10[%c7, %c0_46] : memref<72x17xbf16, #tpu.memory_space<vmem>>, vector<64x17xbf16>
    %c7_47 = arith.constant 7 : index
    %c0_48 = arith.constant 0 : index
    %c0_49 = arith.constant 0 : index
    %54 = vector.load %arg3[%c7_47, %c0_48, %c0_49] : memref<9x17x256xbf16, #tpu.memory_space<vmem>>, vector<1x17x256xbf16>
    %55 = vector.shape_cast %54 : vector<1x17x256xbf16> to vector<17x256xbf16>
    %cst_50 = arith.constant dense<0.000000e+00> : vector<64x256xf32>
    %56 = tpu.matmul %53, %55, %cst_50 {dimension_numbers = #tpu.dot_dimension_numbers<[1], [0], [0], [1], [0, 0, 1, 1], [], []>} : vector<64x17xbf16>, vector<17x256xbf16>, vector<64x256xf32> -> vector<64x256xf32>
    %57 = arith.addf %52, %56 : vector<64x256xf32>
    %c8 = arith.constant 8 : index
    %c0_51 = arith.constant 0 : index
    %58 = vector.load %arg10[%c8, %c0_51] : memref<72x17xbf16, #tpu.memory_space<vmem>>, vector<64x17xbf16>
    %c8_52 = arith.constant 8 : index
    %c0_53 = arith.constant 0 : index
    %c0_54 = arith.constant 0 : index
    %59 = vector.load %arg3[%c8_52, %c0_53, %c0_54] : memref<9x17x256xbf16, #tpu.memory_space<vmem>>, vector<1x17x256xbf16>
    %60 = vector.shape_cast %59 : vector<1x17x256xbf16> to vector<17x256xbf16>
    %cst_55 = arith.constant dense<0.000000e+00> : vector<64x256xf32>
    %61 = tpu.matmul %58, %60, %cst_55 {dimension_numbers = #tpu.dot_dimension_numbers<[1], [0], [0], [1], [0, 0, 1, 1], [], []>} : vector<64x17xbf16>, vector<17x256xbf16>, vector<64x256xf32> -> vector<64x256xf32>
    %62 = arith.addf %57, %61 : vector<64x256xf32>
    %c0_56 = arith.constant 0 : index
    %c0_57 = arith.constant 0 : index
    %63 = vector.load %arg4[%c0_56, %c0_57] : memref<1x256xf32, #tpu.memory_space<vmem>>, vector<1x256xf32>
    %64 = vector.broadcast %63 : vector<1x256xf32> to vector<64x256xf32>
    %65 = arith.addf %62, %64 : vector<64x256xf32>
    %cst_58 = arith.constant 0.000000e+00 : f32
    %66 = vector.broadcast %cst_58 : f32 to vector<64x256xf32>
    %67 = arith.maximumf %65, %66 : vector<64x256xf32>
    %68 = arith.truncf %67 : vector<64x256xf32> to vector<64x256xbf16>
    %cst_59 = arith.constant 0.000000e+00 : bf16
    %69 = vector.broadcast %cst_59 : bf16 to vector<4x256xbf16>
    %c0_60 = arith.constant 0 : index
    %c0_61 = arith.constant 0 : index
    %70 = vector.load %arg11[%c0_60, %c0_61] : memref<72x256xbf16, #tpu.memory_space<vmem>>, vector<4x256xbf16>
    tpu.vector_store %arg11[%c0_60, %c0_61], %69 {strides = array<i32>} : memref<72x256xbf16, #tpu.memory_space<vmem>>, vector<4x256xbf16>,
    %cst_62 = arith.constant 0.000000e+00 : bf16
    %71 = vector.broadcast %cst_62 : bf16 to vector<4x256xbf16>
    %c68_63 = arith.constant 68 : index
    %c0_64 = arith.constant 0 : index
    %72 = vector.load %arg11[%c68_63, %c0_64] : memref<72x256xbf16, #tpu.memory_space<vmem>>, vector<4x256xbf16>
    tpu.vector_store %arg11[%c68_63, %c0_64], %71 {strides = array<i32>} : memref<72x256xbf16, #tpu.memory_space<vmem>>, vector<4x256xbf16>,
    %c4_65 = arith.constant 4 : index
    %c0_66 = arith.constant 0 : index
    %73 = vector.load %arg11[%c4_65, %c0_66] : memref<72x256xbf16, #tpu.memory_space<vmem>>, vector<64x256xbf16>
    tpu.vector_store %arg11[%c4_65, %c0_66], %68 {strides = array<i32>} : memref<72x256xbf16, #tpu.memory_space<vmem>>, vector<64x256xbf16>,
    %c0_67 = arith.constant 0 : index
    %c0_68 = arith.constant 0 : index
    %74 = vector.load %arg11[%c0_67, %c0_68] : memref<72x256xbf16, #tpu.memory_space<vmem>>, vector<64x64xbf16>
    %c1_69 = arith.constant 1 : index
    %c0_70 = arith.constant 0 : index
    %75 = vector.load %arg11[%c1_69, %c0_70] : memref<72x256xbf16, #tpu.memory_space<vmem>>, vector<64x64xbf16>
    %c2_71 = arith.constant 2 : index
    %c0_72 = arith.constant 0 : index
    %76 = vector.load %arg11[%c2_71, %c0_72] : memref<72x256xbf16, #tpu.memory_space<vmem>>, vector<64x64xbf16>
    %c3_73 = arith.constant 3 : index
    %c0_74 = arith.constant 0 : index
    %77 = vector.load %arg11[%c3_73, %c0_74] : memref<72x256xbf16, #tpu.memory_space<vmem>>, vector<64x64xbf16>
    %c4_75 = arith.constant 4 : index
    %c0_76 = arith.constant 0 : index
    %78 = vector.load %arg11[%c4_75, %c0_76] : memref<72x256xbf16, #tpu.memory_space<vmem>>, vector<64x64xbf16>
    %c5_77 = arith.constant 5 : index
    %c0_78 = arith.constant 0 : index
    %79 = vector.load %arg11[%c5_77, %c0_78] : memref<72x256xbf16, #tpu.memory_space<vmem>>, vector<64x64xbf16>
    %c6_79 = arith.constant 6 : index
    %c0_80 = arith.constant 0 : index
    %80 = vector.load %arg11[%c6_79, %c0_80] : memref<72x256xbf16, #tpu.memory_space<vmem>>, vector<64x64xbf16>
    %c7_81 = arith.constant 7 : index
    %c0_82 = arith.constant 0 : index
    %81 = vector.load %arg11[%c7_81, %c0_82] : memref<72x256xbf16, #tpu.memory_space<vmem>>, vector<64x64xbf16>
    %c8_83 = arith.constant 8 : index
    %c0_84 = arith.constant 0 : index
    %82 = vector.load %arg11[%c8_83, %c0_84] : memref<72x256xbf16, #tpu.memory_space<vmem>>, vector<64x64xbf16>
    %83 = tpu.concatenate %74, %75, %76, %77, %78, %79, %80, %81, %82 in 1 : vector<64x64xbf16>, vector<64x64xbf16>, vector<64x64xbf16>, vector<64x64xbf16>, vector<64x64xbf16>, vector<64x64xbf16>, vector<64x64xbf16>, vector<64x64xbf16>, vector<64x64xbf16> -> vector<64x576xbf16>
    %c0_85 = arith.constant 0 : index
    %c0_86 = arith.constant 0 : index
    %c0_87 = arith.constant 0 : index
    %84 = vector.load %arg5[%c0_85, %c0_86, %c0_87] : memref<4x576x128xbf16, #tpu.memory_space<vmem>>, vector<1x576x128xbf16>
    %85 = vector.shape_cast %84 : vector<1x576x128xbf16> to vector<576x128xbf16>
    %cst_88 = arith.constant dense<0.000000e+00> : vector<64x128xf32>
    %86 = tpu.matmul %83, %85, %cst_88 {dimension_numbers = #tpu.dot_dimension_numbers<[1], [0], [0], [1], [0, 0, 1, 1], [], []>} : vector<64x576xbf16>, vector<576x128xbf16>, vector<64x128xf32> -> vector<64x128xf32>
    %c0_89 = arith.constant 0 : index
    %c0_90 = arith.constant 0 : index
    %c0_91 = arith.constant 0 : index
    %87 = vector.load %arg6[%c0_89, %c0_90, %c0_91] : memref<4x1x128xf32, #tpu.memory_space<vmem>>, vector<1x1x128xf32>
    %88 = vector.shape_cast %87 : vector<1x1x128xf32> to vector<1x128xf32>
    %89 = vector.broadcast %88 : vector<1x128xf32> to vector<64x128xf32>
    %90 = arith.addf %86, %89 : vector<64x128xf32>
    %cst_92 = arith.constant 0.000000e+00 : f32
    %91 = vector.broadcast %cst_92 : f32 to vector<64x128xf32>
    %92 = arith.maximumf %90, %91 : vector<64x128xf32>
    %cst_93 = arith.constant dense<0.000000e+00> : vector<128xf32>
    %93 = vector.multi_reduction <add>, %92, %cst_93 [0] : vector<64x128xf32> to vector<128xf32>
    %94 = vector.shape_cast %93 : vector<128xf32> to vector<1x128xf32>
    %c0_94 = arith.constant 0 : index
    %c64 = arith.constant 64 : index
    %95 = vector.load %arg11[%c0_94, %c64] : memref<72x256xbf16, #tpu.memory_space<vmem>>, vector<64x64xbf16>
    %c1_95 = arith.constant 1 : index
    %c64_96 = arith.constant 64 : index
    %96 = vector.load %arg11[%c1_95, %c64_96] : memref<72x256xbf16, #tpu.memory_space<vmem>>, vector<64x64xbf16>
    %c2_97 = arith.constant 2 : index
    %c64_98 = arith.constant 64 : index
    %97 = vector.load %arg11[%c2_97, %c64_98] : memref<72x256xbf16, #tpu.memory_space<vmem>>, vector<64x64xbf16>
    %c3_99 = arith.constant 3 : index
    %c64_100 = arith.constant 64 : index
    %98 = vector.load %arg11[%c3_99, %c64_100] : memref<72x256xbf16, #tpu.memory_space<vmem>>, vector<64x64xbf16>
    %c4_101 = arith.constant 4 : index
    %c64_102 = arith.constant 64 : index
    %99 = vector.load %arg11[%c4_101, %c64_102] : memref<72x256xbf16, #tpu.memory_space<vmem>>, vector<64x64xbf16>
    %c5_103 = arith.constant 5 : index
    %c64_104 = arith.constant 64 : index
    %100 = vector.load %arg11[%c5_103, %c64_104] : memref<72x256xbf16, #tpu.memory_space<vmem>>, vector<64x64xbf16>
    %c6_105 = arith.constant 6 : index
    %c64_106 = arith.constant 64 : index
    %101 = vector.load %arg11[%c6_105, %c64_106] : memref<72x256xbf16, #tpu.memory_space<vmem>>, vector<64x64xbf16>
    %c7_107 = arith.constant 7 : index
    %c64_108 = arith.constant 64 : index
    %102 = vector.load %arg11[%c7_107, %c64_108] : memref<72x256xbf16, #tpu.memory_space<vmem>>, vector<64x64xbf16>
    %c8_109 = arith.constant 8 : index
    %c64_110 = arith.constant 64 : index
    %103 = vector.load %arg11[%c8_109, %c64_110] : memref<72x256xbf16, #tpu.memory_space<vmem>>, vector<64x64xbf16>
    %104 = tpu.concatenate %95, %96, %97, %98, %99, %100, %101, %102, %103 in 1 : vector<64x64xbf16>, vector<64x64xbf16>, vector<64x64xbf16>, vector<64x64xbf16>, vector<64x64xbf16>, vector<64x64xbf16>, vector<64x64xbf16>, vector<64x64xbf16>, vector<64x64xbf16> -> vector<64x576xbf16>
    %c1_111 = arith.constant 1 : index
    %c0_112 = arith.constant 0 : index
    %c0_113 = arith.constant 0 : index
    %105 = vector.load %arg5[%c1_111, %c0_112, %c0_113] : memref<4x576x128xbf16, #tpu.memory_space<vmem>>, vector<1x576x128xbf16>
    %106 = vector.shape_cast %105 : vector<1x576x128xbf16> to vector<576x128xbf16>
    %cst_114 = arith.constant dense<0.000000e+00> : vector<64x128xf32>
    %107 = tpu.matmul %104, %106, %cst_114 {dimension_numbers = #tpu.dot_dimension_numbers<[1], [0], [0], [1], [0, 0, 1, 1], [], []>} : vector<64x576xbf16>, vector<576x128xbf16>, vector<64x128xf32> -> vector<64x128xf32>
    %c1_115 = arith.constant 1 : index
    %c0_116 = arith.constant 0 : index
    %c0_117 = arith.constant 0 : index
    %108 = vector.load %arg6[%c1_115, %c0_116, %c0_117] : memref<4x1x128xf32, #tpu.memory_space<vmem>>, vector<1x1x128xf32>
    %109 = vector.shape_cast %108 : vector<1x1x128xf32> to vector<1x128xf32>
    %110 = vector.broadcast %109 : vector<1x128xf32> to vector<64x128xf32>
    %111 = arith.addf %107, %110 : vector<64x128xf32>
    %cst_118 = arith.constant 0.000000e+00 : f32
    %112 = vector.broadcast %cst_118 : f32 to vector<64x128xf32>
    %113 = arith.maximumf %111, %112 : vector<64x128xf32>
    %cst_119 = arith.constant dense<0.000000e+00> : vector<128xf32>
    %114 = vector.multi_reduction <add>, %113, %cst_119 [0] : vector<64x128xf32> to vector<128xf32>
    %115 = vector.shape_cast %114 : vector<128xf32> to vector<1x128xf32>
    %c0_120 = arith.constant 0 : index
    %c128 = arith.constant 128 : index
    %116 = vector.load %arg11[%c0_120, %c128] : memref<72x256xbf16, #tpu.memory_space<vmem>>, vector<64x64xbf16>
    %c1_121 = arith.constant 1 : index
    %c128_122 = arith.constant 128 : index
    %117 = vector.load %arg11[%c1_121, %c128_122] : memref<72x256xbf16, #tpu.memory_space<vmem>>, vector<64x64xbf16>
    %c2_123 = arith.constant 2 : index
    %c128_124 = arith.constant 128 : index
    %118 = vector.load %arg11[%c2_123, %c128_124] : memref<72x256xbf16, #tpu.memory_space<vmem>>, vector<64x64xbf16>
    %c3_125 = arith.constant 3 : index
    %c128_126 = arith.constant 128 : index
    %119 = vector.load %arg11[%c3_125, %c128_126] : memref<72x256xbf16, #tpu.memory_space<vmem>>, vector<64x64xbf16>
    %c4_127 = arith.constant 4 : index
    %c128_128 = arith.constant 128 : index
    %120 = vector.load %arg11[%c4_127, %c128_128] : memref<72x256xbf16, #tpu.memory_space<vmem>>, vector<64x64xbf16>
    %c5_129 = arith.constant 5 : index
    %c128_130 = arith.constant 128 : index
    %121 = vector.load %arg11[%c5_129, %c128_130] : memref<72x256xbf16, #tpu.memory_space<vmem>>, vector<64x64xbf16>
    %c6_131 = arith.constant 6 : index
    %c128_132 = arith.constant 128 : index
    %122 = vector.load %arg11[%c6_131, %c128_132] : memref<72x256xbf16, #tpu.memory_space<vmem>>, vector<64x64xbf16>
    %c7_133 = arith.constant 7 : index
    %c128_134 = arith.constant 128 : index
    %123 = vector.load %arg11[%c7_133, %c128_134] : memref<72x256xbf16, #tpu.memory_space<vmem>>, vector<64x64xbf16>
    %c8_135 = arith.constant 8 : index
    %c128_136 = arith.constant 128 : index
    %124 = vector.load %arg11[%c8_135, %c128_136] : memref<72x256xbf16, #tpu.memory_space<vmem>>, vector<64x64xbf16>
    %125 = tpu.concatenate %116, %117, %118, %119, %120, %121, %122, %123, %124 in 1 : vector<64x64xbf16>, vector<64x64xbf16>, vector<64x64xbf16>, vector<64x64xbf16>, vector<64x64xbf16>, vector<64x64xbf16>, vector<64x64xbf16>, vector<64x64xbf16>, vector<64x64xbf16> -> vector<64x576xbf16>
    %c2_137 = arith.constant 2 : index
    %c0_138 = arith.constant 0 : index
    %c0_139 = arith.constant 0 : index
    %126 = vector.load %arg5[%c2_137, %c0_138, %c0_139] : memref<4x576x128xbf16, #tpu.memory_space<vmem>>, vector<1x576x128xbf16>
    %127 = vector.shape_cast %126 : vector<1x576x128xbf16> to vector<576x128xbf16>
    %cst_140 = arith.constant dense<0.000000e+00> : vector<64x128xf32>
    %128 = tpu.matmul %125, %127, %cst_140 {dimension_numbers = #tpu.dot_dimension_numbers<[1], [0], [0], [1], [0, 0, 1, 1], [], []>} : vector<64x576xbf16>, vector<576x128xbf16>, vector<64x128xf32> -> vector<64x128xf32>
    %c2_141 = arith.constant 2 : index
    %c0_142 = arith.constant 0 : index
    %c0_143 = arith.constant 0 : index
    %129 = vector.load %arg6[%c2_141, %c0_142, %c0_143] : memref<4x1x128xf32, #tpu.memory_space<vmem>>, vector<1x1x128xf32>
    %130 = vector.shape_cast %129 : vector<1x1x128xf32> to vector<1x128xf32>
    %131 = vector.broadcast %130 : vector<1x128xf32> to vector<64x128xf32>
    %132 = arith.addf %128, %131 : vector<64x128xf32>
    %cst_144 = arith.constant 0.000000e+00 : f32
    %133 = vector.broadcast %cst_144 : f32 to vector<64x128xf32>
    %134 = arith.maximumf %132, %133 : vector<64x128xf32>
    %cst_145 = arith.constant dense<0.000000e+00> : vector<128xf32>
    %135 = vector.multi_reduction <add>, %134, %cst_145 [0] : vector<64x128xf32> to vector<128xf32>
    %136 = vector.shape_cast %135 : vector<128xf32> to vector<1x128xf32>
    %c0_146 = arith.constant 0 : index
    %c192 = arith.constant 192 : index
    %137 = vector.load %arg11[%c0_146, %c192] : memref<72x256xbf16, #tpu.memory_space<vmem>>, vector<64x64xbf16>
    %c1_147 = arith.constant 1 : index
    %c192_148 = arith.constant 192 : index
    %138 = vector.load %arg11[%c1_147, %c192_148] : memref<72x256xbf16, #tpu.memory_space<vmem>>, vector<64x64xbf16>
    %c2_149 = arith.constant 2 : index
    %c192_150 = arith.constant 192 : index
    %139 = vector.load %arg11[%c2_149, %c192_150] : memref<72x256xbf16, #tpu.memory_space<vmem>>, vector<64x64xbf16>
    %c3_151 = arith.constant 3 : index
    %c192_152 = arith.constant 192 : index
    %140 = vector.load %arg11[%c3_151, %c192_152] : memref<72x256xbf16, #tpu.memory_space<vmem>>, vector<64x64xbf16>
    %c4_153 = arith.constant 4 : index
    %c192_154 = arith.constant 192 : index
    %141 = vector.load %arg11[%c4_153, %c192_154] : memref<72x256xbf16, #tpu.memory_space<vmem>>, vector<64x64xbf16>
    %c5_155 = arith.constant 5 : index
    %c192_156 = arith.constant 192 : index
    %142 = vector.load %arg11[%c5_155, %c192_156] : memref<72x256xbf16, #tpu.memory_space<vmem>>, vector<64x64xbf16>
    %c6_157 = arith.constant 6 : index
    %c192_158 = arith.constant 192 : index
    %143 = vector.load %arg11[%c6_157, %c192_158] : memref<72x256xbf16, #tpu.memory_space<vmem>>, vector<64x64xbf16>
    %c7_159 = arith.constant 7 : index
    %c192_160 = arith.constant 192 : index
    %144 = vector.load %arg11[%c7_159, %c192_160] : memref<72x256xbf16, #tpu.memory_space<vmem>>, vector<64x64xbf16>
    %c8_161 = arith.constant 8 : index
    %c192_162 = arith.constant 192 : index
    %145 = vector.load %arg11[%c8_161, %c192_162] : memref<72x256xbf16, #tpu.memory_space<vmem>>, vector<64x64xbf16>
    %146 = tpu.concatenate %137, %138, %139, %140, %141, %142, %143, %144, %145 in 1 : vector<64x64xbf16>, vector<64x64xbf16>, vector<64x64xbf16>, vector<64x64xbf16>, vector<64x64xbf16>, vector<64x64xbf16>, vector<64x64xbf16>, vector<64x64xbf16>, vector<64x64xbf16> -> vector<64x576xbf16>
    %c3_163 = arith.constant 3 : index
    %c0_164 = arith.constant 0 : index
    %c0_165 = arith.constant 0 : index
    %147 = vector.load %arg5[%c3_163, %c0_164, %c0_165] : memref<4x576x128xbf16, #tpu.memory_space<vmem>>, vector<1x576x128xbf16>
    %148 = vector.shape_cast %147 : vector<1x576x128xbf16> to vector<576x128xbf16>
    %cst_166 = arith.constant dense<0.000000e+00> : vector<64x128xf32>
    %149 = tpu.matmul %146, %148, %cst_166 {dimension_numbers = #tpu.dot_dimension_numbers<[1], [0], [0], [1], [0, 0, 1, 1], [], []>} : vector<64x576xbf16>, vector<576x128xbf16>, vector<64x128xf32> -> vector<64x128xf32>
    %c3_167 = arith.constant 3 : index
    %c0_168 = arith.constant 0 : index
    %c0_169 = arith.constant 0 : index
    %150 = vector.load %arg6[%c3_167, %c0_168, %c0_169] : memref<4x1x128xf32, #tpu.memory_space<vmem>>, vector<1x1x128xf32>
    %151 = vector.shape_cast %150 : vector<1x1x128xf32> to vector<1x128xf32>
    %152 = vector.broadcast %151 : vector<1x128xf32> to vector<64x128xf32>
    %153 = arith.addf %149, %152 : vector<64x128xf32>
    %cst_170 = arith.constant 0.000000e+00 : f32
    %154 = vector.broadcast %cst_170 : f32 to vector<64x128xf32>
    %155 = arith.maximumf %153, %154 : vector<64x128xf32>
    %cst_171 = arith.constant dense<0.000000e+00> : vector<128xf32>
    %156 = vector.multi_reduction <add>, %155, %cst_171 [0] : vector<64x128xf32> to vector<128xf32>
    %157 = vector.shape_cast %156 : vector<128xf32> to vector<1x128xf32>
    %158 = tpu.concatenate %94, %115, %136, %157 in 1 : vector<1x128xf32>, vector<1x128xf32>, vector<1x128xf32>, vector<1x128xf32> -> vector<1x512xf32>
    %c0_172 = arith.constant 0 : index
    %c0_173 = arith.constant 0 : index
    %159 = vector.load %arg7[%c0_172, %c0_173] : memref<512x128xf32, #tpu.memory_space<vmem>>, vector<512x128xf32>
    %cst_174 = arith.constant dense<0.000000e+00> : vector<1x128xf32>
    %160 = tpu.matmul %158, %159, %cst_174 {dimension_numbers = #tpu.dot_dimension_numbers<[1], [0], [0], [1], [0, 0, 1, 1], [], []>} : vector<1x512xf32>, vector<512x128xf32>, vector<1x128xf32> -> vector<1x128xf32>
    %c0_175 = arith.constant 0 : index
    %c0_176 = arith.constant 0 : index
    %161 = vector.load %arg8[%c0_175, %c0_176] : memref<1x128xf32, #tpu.memory_space<vmem>>, vector<1x128xf32>
    %162 = arith.addf %160, %161 : vector<1x128xf32>
    %c0_177 = arith.constant 0 : index
    %c0_178 = arith.constant 0 : index
    %c0_179 = arith.constant 0 : index
    %163 = vector.load %arg9[%c0_177, %c0_178, %c0_179] : memref<1x1x128xf32, #tpu.memory_space<vmem>>, vector<1x1x128xf32>
    %164 = vector.shape_cast %163 : vector<1x1x128xf32> to vector<1x128xf32>
    %165 = vector.shape_cast %162 : vector<1x128xf32> to vector<1x1x128xf32>
    tpu.vector_store %arg9[%c0_177, %c0_178, %c0_179], %165 {strides = array<i32>} : memref<1x1x128xf32, #tpu.memory_space<vmem>>, vector<1x1x128xf32>,
    return
  }
  func.func @transform_0(%arg0: i32, %arg1: memref<2xi32, #tpu.memory_space<smem>>) -> (i32, i32, i32) {
    %c0_i32 = arith.constant 0 : i32
    %c0_i32_0 = arith.constant 0 : i32
    %c0_i32_1 = arith.constant 0 : i32
    return %arg0, %c0_i32, %c0_i32_0 : i32, i32, i32
  }
  func.func @transform_1(%arg0: i32, %arg1: memref<2xi32, #tpu.memory_space<smem>>) -> (i32, i32, i32) {
    %c0_i32 = arith.constant 0 : i32
    %c0_i32_0 = arith.constant 0 : i32
    %c0_i32_1 = arith.constant 0 : i32
    %c0_i32_2 = arith.constant 0 : i32
    return %c0_i32, %c0_i32_0, %c0_i32_1 : i32, i32, i32
  }
  func.func @transform_2(%arg0: i32, %arg1: memref<2xi32, #tpu.memory_space<smem>>) -> (i32, i32) {
    %c0_i32 = arith.constant 0 : i32
    %c0_i32_0 = arith.constant 0 : i32
    %c0_i32_1 = arith.constant 0 : i32
    return %c0_i32, %c0_i32_0 : i32, i32
  }
  func.func @transform_3(%arg0: i32, %arg1: memref<2xi32, #tpu.memory_space<smem>>) -> (i32, i32, i32) {
    %c0_i32 = arith.constant 0 : i32
    %c0_i32_0 = arith.constant 0 : i32
    %c0_i32_1 = arith.constant 0 : i32
    %c0_i32_2 = arith.constant 0 : i32
    return %c0_i32, %c0_i32_0, %c0_i32_1 : i32, i32, i32
  }
  func.func @transform_4(%arg0: i32, %arg1: memref<2xi32, #tpu.memory_space<smem>>) -> (i32, i32, i32) {
    %c0_i32 = arith.constant 0 : i32
    %c0_i32_0 = arith.constant 0 : i32
    %c0_i32_1 = arith.constant 0 : i32
    %c0_i32_2 = arith.constant 0 : i32
    return %c0_i32, %c0_i32_0, %c0_i32_1 : i32, i32, i32
  }
  func.func @transform_5(%arg0: i32, %arg1: memref<2xi32, #tpu.memory_space<smem>>) -> (i32, i32) {
    %c0_i32 = arith.constant 0 : i32
    %c0_i32_0 = arith.constant 0 : i32
    %c0_i32_1 = arith.constant 0 : i32
    return %c0_i32, %c0_i32_0 : i32, i32
  }
  func.func @transform_6(%arg0: i32, %arg1: memref<2xi32, #tpu.memory_space<smem>>) -> (i32, i32) {
    %c0_i32 = arith.constant 0 : i32
    %c0_i32_0 = arith.constant 0 : i32
    %c0_i32_1 = arith.constant 0 : i32
    return %c0_i32, %c0_i32_0 : i32, i32
  }
  func.func @transform_7(%arg0: i32, %arg1: memref<2xi32, #tpu.memory_space<smem>>) -> (i32, i32, i32) {
    %c0_i32 = arith.constant 0 : i32
    %c0_i32_0 = arith.constant 0 : i32
    %c0_i32_1 = arith.constant 0 : i32
    return %arg0, %c0_i32, %c0_i32_0 : i32, i32, i32
  }
}

</mosaic_0001>

<llo_original>
// kernel: personality_forward.1
$region0: #{personality_forward.1}
  #allocation0 [shape = 'u32[]', space=smem, size = 0x4, offset = 0x4, fixed_abs, tag = 'smem constant byte address 0x4 - core index']
  #allocation1 [shape = 'u32[144,128]{1,0:T(1,128)}', space=vmem, size = 0x12000, scoped, tag = 'internal scratch']
  #allocation2 [shape = 'bf16[72,17]{1,0:T(8,128)(2,1)}', space=vmem, size = 0x4800, scoped, tag = 'scratch operand']
  #allocation3 [shape = 'bf16[72,256]{1,0:T(8,128)(2,1)}', space=vmem, size = 0x9000, scoped, tag = 'scratch operand']
  #allocation4 [shape = 's32[1]{0}', space=sflag, size = 0x4, scoped, tag = 'scoped memory for personality_forward.1']
  #allocation5 [shape = 'u8[512]{0}', space=smem, size = 0x200, scoped, tag = 'prefetched SMEM operand 0']
  %s0 = inlined_call_operand.vmem [shape: s32[2], index: 0, kind: input, shape index: {}]
  %s1 = inlined_call_operand.vmem [shape: f32[2,64,17], index: 1, kind: input, shape index: {}]
  %s2 = inlined_call_operand.vmem [shape: bf16[9,17,256], index: 2, kind: input, shape index: {}]
  %s3 = inlined_call_operand.vmem [shape: f32[1,256], index: 3, kind: input, shape index: {}]
  %s4 = inlined_call_operand.vmem [shape: bf16[4,576,128], index: 4, kind: input, shape index: {}]
  %s5 = inlined_call_operand.vmem [shape: f32[4,1,128], index: 5, kind: input, shape index: {}]
  %s6 = inlined_call_operand.vmem [shape: f32[512,128], index: 6, kind: input, shape index: {}]
  %s7 = inlined_call_operand.vmem [shape: f32[1,128], index: 7, kind: input, shape index: {}]
  %s8 = inlined_call_operand.hbm [shape: f32[2,1,128], index: 8, kind: output, shape index: {}]
  %s9 = sld [smem:[#allocation0]]
  $region61: #{personality_forward.1} parent=0
    _
  %s11 = ssub.s32 1, %s9
  %s12 = scalar_select 0, %s11, %s9
  %s13 = sshll.u32 %s0, 4
  %s14 = int_to_ptr.vmem [resolvable:$true] %s13
  %16 = dma.vmem_to_smem %s14, 16, [#allocation5], [#allocation4]
  %17 = dma.done [#allocation4], 16
  %18 = sfence
  $region1: #{personality_forward.1} parent=0
    #allocation6 [shape = 'u8[1024]{0}', space=vmem, size = 0x400, scoped, tag = 'output window, operand 0']
    #allocation7 [shape = 's32[2]{0}', space=sflag, size = 0x8, scoped, tag = 'scoped memory for personality_forward.1']
    %19 = vsyncpa [#allocation7], 0
    %s20 = scalar_lea.sflag [#allocation7], 1
    %21 = vsyncpa %s20, 0
    loop: start=0, step=1, limit=4
    $region2: #{personality_forward.1} parent=1 // loop_pre_header
      _
    $region3: #{personality_forward.1} parent=1 // loop_header
      %s23 = sphi 0, %s27
      %p24 = scmp.ge.s32.totalorder %s23, 4
      %s33 = sphi 0, %s35
      %s36 = sphi 0, %s33
      %s37 = sphi 0, %s36
      %s53 = sphi 0, %s37
      %s57 = sphi 0, %s57
      %s59 = sphi 0, %s57
      %s60 = sphi 0, %s59
      %s74 = sphi 0, %s60
      %s78 = sphi 0, %s78
      %s80 = sphi 0, %s78
      %s81 = sphi 0, %s80
      %s95 = sphi 0, %s81
      %s99 = sphi 0, %s99
      %s101 = sphi 0, %s99
      %s102 = sphi 0, %s101
      %s116 = sphi 0, %s102
      %s120 = sphi 0, %s120
      %s122 = sphi 0, %s120
      %s123 = sphi 0, %s122
      %s137 = sphi 0, %s123
      %s141 = sphi 0, %s141
      %s143 = sphi 0, %s141
      %s144 = sphi 0, %s143
      %s158 = sphi 0, %s144
      %s162 = sphi 0, %s162
      %s164 = sphi 0, %s162
      %s165 = sphi 0, %s164
      %s179 = sphi 0, %s165
      %s185 = sphi 0, %s187
      %s188 = sphi 0, %s185
      %s189 = sphi 0, %s188
      %s205 = sphi 0, %s189
    $region4: #{personality_forward.1} parent=1 // loop_header_branch
      %26 = sbr.rel (%p24) target = $region8
    $region5: #{personality_forward.1} parent=1 // loop_body
      %s28 = ssub.s32 %s23, 1
      %s29 = ssub.s32 %s23, 2
      %s30 = sadd.s32 %s23, 1
      %s31 = ssub.s32 %s23, %s30
      %p32 = scmp.eq.s32.totalorder %s31, 0
      %s34 = sadd.s32 %s33, 1
      %s35 = scalar_select %p32, %s33, %s34
      %p38 = pneg %p32
      %p39 = scmp.eq.s32.totalorder %s23, 1
      %p40 = por %p38, %p39
      %p41 = scmp.ne.s32.totalorder %s33, %s36
      %p42 = scmp.eq.s32.totalorder %s23, 0
      %p43 = por %p41, %p42
      %p44 = scmp.ne.s32.totalorder %s33, %s36
      %p45 = scmp.eq.s32.totalorder %s28, 1
      %p46 = por %p44, %p45
      %p47 = scmp.ne.s32.totalorder %s36, %s37
      %p48 = scmp.eq.s32.totalorder %s28, 0
      %p49 = por %p47, %p48
      %p50 = scmp.ne.s32.totalorder %s36, %s37
      %p51 = scmp.eq.s32.totalorder %s29, 1
      %p52 = por %p50, %p51
      %p54 = scmp.ne.s32.totalorder %s37, %s53
      %p55 = scmp.eq.s32.totalorder %s29, 0
      %p56 = por %p54, %p55
      %s58 = sadd.s32 %s57, 1
      %p61 = scmp.eq.s32.totalorder %s23, 1
      %p62 = scmp.ne.s32.totalorder %s57, %s59
      %p63 = scmp.eq.s32.totalorder %s23, 0
      %p64 = por %p62, %p63
      %p65 = scmp.ne.s32.totalorder %s57, %s59
      %p66 = scmp.eq.s32.totalorder %s28, 1
      %p67 = por %p65, %p66
      %p68 = scmp.ne.s32.totalorder %s59, %s60
      %p69 = scmp.eq.s32.totalorder %s28, 0
      %p70 = por %p68, %p69
      %p71 = scmp.ne.s32.totalorder %s59, %s60
      %p72 = scmp.eq.s32.totalorder %s29, 1
      %p73 = por %p71, %p72
      %p75 = scmp.ne.s32.totalorder %s60, %s74
      %p76 = scmp.eq.s32.totalorder %s29, 0
      %p77 = por %p75, %p76
      %s79 = sadd.s32 %s78, 1
      %p82 = scmp.eq.s32.totalorder %s23, 1
      %p83 = scmp.ne.s32.totalorder %s78, %s80
      %p84 = scmp.eq.s32.totalorder %s23, 0
      %p85 = por %p83, %p84
      %p86 = scmp.ne.s32.totalorder %s78, %s80
      %p87 = scmp.eq.s32.totalorder %s28, 1
      %p88 = por %p86, %p87
      %p89 = scmp.ne.s32.totalorder %s80, %s81
      %p90 = scmp.eq.s32.totalorder %s28, 0
      %p91 = por %p89, %p90
      %p92 = scmp.ne.s32.totalorder %s80, %s81
      %p93 = scmp.eq.s32.totalorder %s29, 1
      %p94 = por %p92, %p93
      %p96 = scmp.ne.s32.totalorder %s81, %s95
      %p97 = scmp.eq.s32.totalorder %s29, 0
      %p98 = por %p96, %p97
      %s100 = sadd.s32 %s99, 1
      %p103 = scmp.eq.s32.totalorder %s23, 1
      %p104 = scmp.ne.s32.totalorder %s99, %s101
      %p105 = scmp.eq.s32.totalorder %s23, 0
      %p106 = por %p104, %p105
      %p107 = scmp.ne.s32.totalorder %s99, %s101
      %p108 = scmp.eq.s32.totalorder %s28, 1
      %p109 = por %p107, %p108
      %p110 = scmp.ne.s32.totalorder %s101, %s102
      %p111 = scmp.eq.s32.totalorder %s28, 0
      %p112 = por %p110, %p111
      %p113 = scmp.ne.s32.totalorder %s101, %s102
      %p114 = scmp.eq.s32.totalorder %s29, 1
      %p115 = por %p113, %p114
      %p117 = scmp.ne.s32.totalorder %s102, %s116
      %p118 = scmp.eq.s32.totalorder %s29, 0
      %p119 = por %p117, %p118
      %s121 = sadd.s32 %s120, 1
      %p124 = scmp.eq.s32.totalorder %s23, 1
      %p125 = scmp.ne.s32.totalorder %s120, %s122
      %p126 = scmp.eq.s32.totalorder %s23, 0
      %p127 = por %p125, %p126
      %p128 = scmp.ne.s32.totalorder %s120, %s122
      %p129 = scmp.eq.s32.totalorder %s28, 1
      %p130 = por %p128, %p129
      %p131 = scmp.ne.s32.totalorder %s122, %s123
      %p132 = scmp.eq.s32.totalorder %s28, 0
      %p133 = por %p131, %p132
      %p134 = scmp.ne.s32.totalorder %s122, %s123
      %p135 = scmp.eq.s32.totalorder %s29, 1
      %p136 = por %p134, %p135
      %p138 = scmp.ne.s32.totalorder %s123, %s137
      %p139 = scmp.eq.s32.totalorder %s29, 0
      %p140 = por %p138, %p139
      %s142 = sadd.s32 %s141, 1
      %p145 = scmp.eq.s32.totalorder %s23, 1
      %p146 = scmp.ne.s32.totalorder %s141, %s143
      %p147 = scmp.eq.s32.totalorder %s23, 0
      %p148 = por %p146, %p147
      %p149 = scmp.ne.s32.totalorder %s141, %s143
      %p150 = scmp.eq.s32.totalorder %s28, 1
      %p151 = por %p149, %p150
      %p152 = scmp.ne.s32.totalorder %s143, %s144
      %p153 = scmp.eq.s32.totalorder %s28, 0
      %p154 = por %p152, %p153
      %p155 = scmp.ne.s32.totalorder %s143, %s144
      %p156 = scmp.eq.s32.totalorder %s29, 1
      %p157 = por %p155, %p156
      %p159 = scmp.ne.s32.totalorder %s144, %s158
      %p160 = scmp.eq.s32.totalorder %s29, 0
      %p161 = por %p159, %p160
      %s163 = sadd.s32 %s162, 1
      %p166 = scmp.eq.s32.totalorder %s23, 1
      %p167 = scmp.ne.s32.totalorder %s162, %s164
      %p168 = scmp.eq.s32.totalorder %s23, 0
      %p169 = por %p167, %p168
      %p170 = scmp.ne.s32.totalorder %s162, %s164
      %p171 = scmp.eq.s32.totalorder %s28, 1
      %p172 = por %p170, %p171
      %p173 = scmp.ne.s32.totalorder %s164, %s165
      %p174 = scmp.eq.s32.totalorder %s28, 0
      %p175 = por %p173, %p174
      %p176 = scmp.ne.s32.totalorder %s164, %s165
      %p177 = scmp.eq.s32.totalorder %s29, 1
      %p178 = por %p176, %p177
      %p180 = scmp.ne.s32.totalorder %s165, %s179
      %p181 = scmp.eq.s32.totalorder %s29, 0
      %p182 = por %p180, %p181
      %s183 = ssub.s32 %s23, %s30
      %p184 = scmp.eq.s32.totalorder %s183, 0
      %s186 = sadd.s32 %s185, 1
      %s187 = scalar_select %p184, %s185, %s186
      %p190 = pneg %p184
      %p191 = scmp.eq.s32.totalorder %s23, 1
      %p192 = por %p190, %p191
      %p193 = scmp.ne.s32.totalorder %s185, %s188
      %p194 = scmp.eq.s32.totalorder %s23, 0
      %p195 = por %p193, %p194
      %p196 = scmp.ne.s32.totalorder %s185, %s188
      %p197 = scmp.eq.s32.totalorder %s28, 1
      %p198 = por %p196, %p197
      %p199 = scmp.ne.s32.totalorder %s188, %s189
      %p200 = scmp.eq.s32.totalorder %s28, 0
      %p201 = por %p199, %p200
      %p202 = scmp.ne.s32.totalorder %s188, %s189
      %p203 = scmp.eq.s32.totalorder %s29, 1
      %p204 = por %p202, %p203
      %p206 = scmp.ne.s32.totalorder %s189, %s205
      %p207 = scmp.eq.s32.totalorder %s29, 0
      %p208 = por %p206, %p207
      %p209 = scmp.le.s32.totalorder 1, %s23
      %p210 = scmp.lt.s32.totalorder %s23, 3
      %p211 = pnand %p209, %p210
      %p212 = pneg %p211
      // Predicated region
      $region9: #{personality_forward.1} parent=5 // pred_check
        _
      $region10: #{personality_forward.1} parent=5 // pred_check_branch
        %214 = sbr.rel (%p211) target = $region12
      $region11: #{personality_forward.1} parent=5 // pred_region
        %s215 = ssub.s32 %s23, 1
        // Predicated region
        $region13: #{personality_forward.1} parent=11 // pred_check
          %p216 = pneg %p70
        $region14: #{personality_forward.1} parent=11 // pred_check_branch
          %218 = sbr.rel (%p216) target = $region16
        $region15: #{personality_forward.1} parent=11 // pred_region
          _
        $region16: #{personality_forward.1} parent=11 // pred_fallthru
          _
        // Predicated region
        $region17: #{personality_forward.1} parent=11 // pred_check
          %p219 = pneg %p91
        $region18: #{personality_forward.1} parent=11 // pred_check_branch
          %221 = sbr.rel (%p219) target = $region20
        $region19: #{personality_forward.1} parent=11 // pred_region
          _
        $region20: #{personality_forward.1} parent=11 // pred_fallthru
          _
        // Predicated region
        $region21: #{personality_forward.1} parent=11 // pred_check
          %p222 = pneg %p112
        $region22: #{personality_forward.1} parent=11 // pred_check_branch
          %224 = sbr.rel (%p222) target = $region24
        $region23: #{personality_forward.1} parent=11 // pred_region
          _
        $region24: #{personality_forward.1} parent=11 // pred_fallthru
          _
        // Predicated region
        $region25: #{personality_forward.1} parent=11 // pred_check
          %p225 = pneg %p133
        $region26: #{personality_forward.1} parent=11 // pred_check_branch
          %227 = sbr.rel (%p225) target = $region28
        $region27: #{personality_forward.1} parent=11 // pred_region
          _
        $region28: #{personality_forward.1} parent=11 // pred_fallthru
          _
        // Predicated region
        $region29: #{personality_forward.1} parent=11 // pred_check
          %p228 = pneg %p154
        $region30: #{personality_forward.1} parent=11 // pred_check_branch
          %230 = sbr.rel (%p228) target = $region32
        $region31: #{personality_forward.1} parent=11 // pred_region
          _
        $region32: #{personality_forward.1} parent=11 // pred_fallthru
          _
        // Predicated region
        $region33: #{personality_forward.1} parent=11 // pred_check
          %p231 = pneg %p175
        $region34: #{personality_forward.1} parent=11 // pred_check_branch
          %233 = sbr.rel (%p231) target = $region36
        $region35: #{personality_forward.1} parent=11 // pred_region
          _
        $region36: #{personality_forward.1} parent=11 // pred_fallthru
          _
      $region12: #{personality_forward.1} parent=5 // pred_fallthru
        _
      %p234 = scmp.lt.s32.totalorder %s23, 2
      // Predicated region
      $region37: #{personality_forward.1} parent=5 // pred_check
        %p235 = pneg %p234
      $region38: #{personality_forward.1} parent=5 // pred_check_branch
        %237 = sbr.rel (%p235) target = $region40
      $region39: #{personality_forward.1} parent=5 // pred_region
        // Predicated region
        $region41: #{personality_forward.1} parent=39 // pred_check
          %p238 = pneg %p43
        $region42: #{personality_forward.1} parent=39 // pred_check_branch
          %240 = sbr.rel (%p238) target = $region44
        $region43: #{personality_forward.1} parent=39 // pred_region
          %p241 = scmp.lt.s32.totalorder %s23, 1
          %s242 = scalar_select %p241, %s23, 1
          %s243 = smul.addr %s242, 8
          %s244 = smul.addr %s243, 8
          %s245 = scalar_lea.vmem %s1, %s244
        $region44: #{personality_forward.1} parent=39 // pred_fallthru
          _
      $region40: #{personality_forward.1} parent=5 // pred_fallthru
        _
      %p246 = scmp.le.s32.totalorder 1, %s23
      %p247 = scmp.lt.s32.totalorder %s23, 3
      %p248 = pnand %p246, %p247
      %p249 = pneg %p248
      // Predicated region
      $region45: #{personality_forward.1} parent=5 // pred_check
        _
      $region46: #{personality_forward.1} parent=5 // pred_check_branch
        %251 = sbr.rel (%p248) target = $region48
      $region47: #{personality_forward.1} parent=5 // pred_region
        %s252 = ssub.s32 %s23, 1
        %p253 = scmp.lt.s32.totalorder %s28, 1
        %s254 = scalar_select %p253, %s28, 1
        %s255 = smul.addr %s254, 8
        %s256 = smul.addr %s255, 8
        %s257 = scalar_lea.vmem %s1, %s256
        %p258 = pneg %p49
        %p259 = pneg %p46
        %p260 = pneg %p70
        %p261 = pneg %p67
        %p262 = pneg %p91
        %p263 = pneg %p88
        %p264 = pneg %p112
        %p265 = pneg %p109
        %p266 = pneg %p133
        %p267 = pneg %p130
        %p268 = pneg %p154
        %p269 = pneg %p151
        %p270 = pneg %p175
        %p271 = pneg %p172
        %p272 = pneg %p201
        %p273 = pneg %p198
        %s274 = sand.u32 %s188, 1
        %s275 = scalar_lea.sflag [#allocation7], %s274
        %s276 = sand.u32 %s188, 1
        %s277 = scalar_lea.vmem [#allocation6], %s276
        %p278 = scmp.lt.s32.totalorder %s28, 1
        %s279 = scalar_select %p278, %s28, 1
        %s280 = smul.addr %s279, 8
        %s281 = smul.addr %s280, 8
        %s282 = scalar_lea.vmem %s1, %s281
        %s284 = sld [smem:[#allocation5 + %s28]]
        %v285 = vlaneseq
        %v286 = vshrl.u32 %v285, 7
        %v287 = vadd.s32 %v286, 8
        %v288 = vadd.s32 %v286, 16
        %v289 = vadd.s32 %v286, 24
        %v290 = vadd.s32 %v286, 32
        %v291 = vadd.s32 %v286, 40
        %v292 = vadd.s32 %v286, 48
        %v293 = vadd.s32 %v286, 56
        %v294 = vstv %s284
        %vm295 = vcmp.lt.s32.totalorder %v286, %v294
        %vm296 = vcmp.lt.s32.totalorder %v287, %v294
        %vm297 = vcmp.lt.s32.totalorder %v288, %v294
        %vm298 = vcmp.lt.s32.totalorder %v289, %v294
        %vm299 = vcmp.lt.s32.totalorder %v290, %v294
        %vm300 = vcmp.lt.s32.totalorder %v291, %v294
        %vm301 = vcmp.lt.s32.totalorder %v292, %v294
        %vm302 = vcmp.lt.s32.totalorder %v293, %v294
        %v303 = vld [vmem:[%s282] sm:$0xff]
        %v304 = vld [vmem:[%s282 + $0x8] sm:$0xff]
        %v305 = vld [vmem:[%s282 + $0x10] sm:$0xff]
        %v306 = vld [vmem:[%s282 + $0x18] sm:$0xff]
        %v307 = vld [vmem:[%s282 + $0x20] sm:$0xff]
        %v308 = vld [vmem:[%s282 + $0x28] sm:$0xff]
        %v309 = vld [vmem:[%s282 + $0x30] sm:$0xff]
        %v310 = vld [vmem:[%s282 + $0x38] sm:$0xff]
        %v311 = vsel %vm295, 1, 0
        %v312 = vsel %vm296, 1, 0
        %v313 = vsel %vm297, 1, 0
        %v314 = vsel %vm298, 1, 0
        %v315 = vsel %vm299, 1, 0
        %v316 = vsel %vm300, 1, 0
        %v317 = vsel %vm301, 1, 0
        %v318 = vsel %vm302, 1, 0
        %vm319 = vcmp.eq.s32.totalorder %v311, 1
        %vm320 = vcmp.eq.s32.totalorder %v312, 1
        %vm321 = vcmp.eq.s32.totalorder %v313, 1
        %vm322 = vcmp.eq.s32.totalorder %v314, 1
        %vm323 = vcmp.eq.s32.totalorder %v315, 1
        %vm324 = vcmp.eq.s32.totalorder %v316, 1
        %vm325 = vcmp.eq.s32.totalorder %v317, 1
        %vm326 = vcmp.eq.s32.totalorder %v318, 1
        %v327 = vsel %vm319, %v303, 0.0
        %v328 = vsel %vm320, %v304, 0.0
        %v329 = vsel %vm321, %v305, 0.0
        %v330 = vsel %vm322, %v306, 0.0
        %v331 = vsel %vm323, %v307, 0.0
        %v332 = vsel %vm324, %v308, 0.0
        %v333 = vsel %vm325, %v309, 0.0
        %v334 = vsel %vm326, %v310, 0.0
        %v335 = vpack.c.bf16 %v328, %v327
        %v336 = vpack.c.bf16 %v330, %v329
        %v337 = vpack.c.bf16 %v332, %v331
        %v338 = vpack.c.bf16 %v334, %v333
        %vm339 = vcmask 132096
        %340 = vst.msk [vmem:[#allocation2] sm:$0x3] %vm339, 0
        %vm341 = vcmask 134146
        %342 = vst.msk [vmem:[#allocation2 + $0x20] sm:$0xc] %vm341, 0
        %v347 = vunpack.c.l.b16 %v335
        %v348 = vunpack.c.h.b16 %v335
        %v349 = vunpack.c.l.b16 %v336
        %v350 = vunpack.c.h.b16 %v336
        %v351 = vunpack.c.l.b16 %v337
        %v352 = vunpack.c.h.b16 %v337
        %v353 = vunpack.c.l.b16 %v338
        %v354 = vunpack.c.h.b16 %v338
        %v355 = vpack.c.b16 %v347, %v347
        %v356 = vpack.c.b16 %v348, %v348
        %v357 = vpack.c.b16 %v349, %v349
        %v358 = vpack.c.b16 %v350, %v350
        %v359 = vpack.c.b16 %v351, %v351
        %v360 = vpack.c.b16 %v352, %v352
        %v361 = vpack.c.b16 %v353, %v353
        %v362 = vpack.c.b16 %v354, %v354
        %vm363 = vcmask 1041408
        %vm364 = vcmask 1045508
        %vm365 = vmor %vm363, %vm364
        %v366 = vrot.slane %v355, 6
        %v367 = vrot.slane %v366, 4
        %v368 = vrot.slane %v356, 6
        %v369 = vsel %vm365, %v367, %v368
        %v370 = vrot.slane %v368, 4
        %v371 = vrot.slane %v357, 6
        %v372 = vsel %vm365, %v370, %v371
        %v373 = vrot.slane %v371, 4
        %v374 = vrot.slane %v358, 6
        %v375 = vsel %vm365, %v373, %v374
        %v376 = vrot.slane %v374, 4
        %v377 = vrot.slane %v359, 6
        %v378 = vsel %vm365, %v376, %v377
        %v379 = vrot.slane %v377, 4
        %v380 = vrot.slane %v360, 6
        %v381 = vsel %vm365, %v379, %v380
        %v382 = vrot.slane %v380, 4
        %v383 = vrot.slane %v361, 6
        %v384 = vsel %vm365, %v382, %v383
        %v385 = vrot.slane %v383, 4
        %v386 = vrot.slane %v362, 6
        %v387 = vsel %vm365, %v385, %v386
        %v388 = vrot.slane %v386, 4
        %398 = vst.msk [vmem:[#allocation2] sm:$0xc] %vm341, %v366
        %vm399 = vcmask 134144
        %400 = vst.msk [vmem:[#allocation2 + $0x4] sm:$0xf] %vm399, %v369
        %401 = vst.msk [vmem:[#allocation2 + $0x8] sm:$0xf] %vm399, %v372
        %402 = vst.msk [vmem:[#allocation2 + $0xc] sm:$0xf] %vm399, %v375
        %403 = vst.msk [vmem:[#allocation2 + $0x10] sm:$0xf] %vm399, %v378
        %404 = vst.msk [vmem:[#allocation2 + $0x14] sm:$0xf] %vm399, %v381
        %405 = vst.msk [vmem:[#allocation2 + $0x18] sm:$0xf] %vm399, %v384
        %406 = vst.msk [vmem:[#allocation2 + $0x1c] sm:$0xf] %vm399, %v387
        %407 = vst.msk [vmem:[#allocation2 + $0x20] sm:$0x3] %vm339, %v388
        %v408 = vld [vmem:[#allocation2] sm:$0xf]
        %v409 = vld [vmem:[#allocation2 + $0x4] sm:$0xf]
        %v410 = vld [vmem:[#allocation2 + $0x8] sm:$0xf]
        %v411 = vld [vmem:[#allocation2 + $0xc] sm:$0xf]
        %v412 = vld [vmem:[#allocation2 + $0x10] sm:$0xf]
        %v413 = vld [vmem:[#allocation2 + $0x14] sm:$0xf]
        %v414 = vld [vmem:[#allocation2 + $0x18] sm:$0xf]
        %v415 = vld [vmem:[#allocation2 + $0x1c] sm:$0xf]
        %v416 = vld [vmem:[%s2] sm:$0xff]
        %v417 = vld [vmem:[%s2 + $0x8] sm:$0xff]
        %v418 = vld [vmem:[%s2 + $0x10] sm:$0x11]
        %v419 = vld [vmem:[#allocation2 + $0x20] sm:$0x1]
        %s420 = scalar_lea.vmem %s2, 24
        %v421 = vld [vmem:[%s420] sm:$0xff]
        %v422 = vld [vmem:[%s420 + $0x8] sm:$0xff]
        %v423 = vld [vmem:[%s420 + $0x10] sm:$0x11]
        %v433 = vunpack.c.l.b16 %v408
        %v434 = vunpack.c.l.b16 %v409
        %v435 = vunpack.c.l.b16 %v410
        %v436 = vunpack.c.l.b16 %v411
        %v437 = vunpack.c.l.b16 %v412
        %v438 = vunpack.c.l.b16 %v413
        %v439 = vunpack.c.l.b16 %v414
        %v440 = vunpack.c.l.b16 %v415
        %v441 = vunpack.c.l.b16 %v419
        %v442 = vpack.c.b16 %v434, %v433
        %v443 = vpack.c.b16 %v436, %v435
        %v444 = vpack.c.b16 %v438, %v437
        %v445 = vpack.c.b16 %v440, %v439
        %v446 = vpack.c.b16 %v441, %v441
        %vm447 = vsmask.f32 7424
        %v449 = vshrl.u32 %v442, 16
        %v451 = vshll.u32 %v442, 16
        %v453 = vrot.slane %v451, 1
        %v454 = vor.u32 %v449, %v453
        %v456 = vshll.u32 %v443, 16
        %v458 = vrot.slane %v456, 1
        %v459 = vsel %vm447, %v454, %v458
        %v460 = vshrl.u32 %v443, 16
        %v462 = vor.u32 %v460, %v458
        %v464 = vshll.u32 %v444, 16
        %v466 = vrot.slane %v464, 1
        %v467 = vsel %vm447, %v462, %v466
        %v468 = vshrl.u32 %v444, 16
        %v470 = vor.u32 %v468, %v466
        %v472 = vshll.u32 %v445, 16
        %v474 = vrot.slane %v472, 1
        %v475 = vsel %vm447, %v470, %v474
        %v476 = vshrl.u32 %v445, 16
        %v478 = vor.u32 %v476, %v474
        %v480 = vshll.u32 %v446, 16
        %v482 = vrot.slane %v480, 1
        %v483 = vsel %vm447, %v478, %v482
        %v487 = vunpack.c.l.b16 %v421
        %v488 = vunpack.c.h.b16 %v421
        %v489 = vunpack.c.l.b16 %v422
        %v490 = vunpack.c.h.b16 %v422
        %v491 = vunpack.c.l.b16 %v423
        %v492 = vunpack.c.h.b16 %v423
        %v493 = vpack.c.b16 %v489, %v487
        %v494 = vpack.c.b16 %v490, %v488
        %v495 = vpack.c.b16 %v491, %v491
        %v496 = vpack.c.b16 %v492, %v492
        %vm499 = vcmask 138240
        %v501 = vsel %vm499, %v459, 0
        %v504 = vsel %vm499, %v467, 0
        %v507 = vsel %vm499, %v475, 0
        %v510 = vsel %vm499, %v483, 0
        %vm512 = vcmask 1040384
        %v513 = vsel 0, 4294967295, 65535
        %v514 = vsel %vm512, %v513, 0
        %v516 = vand.u32 %v495, %v514
        %v519 = vand.u32 %v496, %v514
        %521 = vmatprep.subr.bf16.mxu0 %v494
        %522 = vmatpush1.bf16.msra.mxu0 %v493
        %523 = vmatprep.subr.bf16.mxu0 %v519
        %524 = vmatpush1.bf16.msra.mxu0 %v516
        %525 = vmatprep.subr.bf16.mxu0 0
        %526 = vmatpush1.bf16.msra.mxu0 0
        %527 = vmatprep.subr.bf16.mxu0 0
        %528 = vmatpush1.bf16.msra.mxu0 0
        %529 = vmatprep.subr.bf16.mxu0 0
        %530 = vmatpush1.bf16.msra.mxu0 0
        %531 = vmatprep.subr.bf16.mxu0 0
        %532 = vmatpush1.bf16.msra.mxu0 0
        %533 = vmatprep.subr.bf16.mxu0 0
        %534 = vmatpush1.bf16.msra.mxu0 0
        %535 = vmatprep.subr.bf16.mxu0 0
        %536 = vmatpush1.bf16.msra.mxu0 0
        %537 = vmatprep.subr.bf16.mxu0 0
        %538 = vmatpush1.bf16.msra.mxu0 0
        %539 = vmatprep.subr.bf16.mxu0 0
        %540 = vmatpush1.bf16.msra.mxu0 0
        %541 = vmatprep.subr.bf16.mxu0 0
        %542 = vmatpush1.bf16.msra.mxu0 0
        %543 = vmatprep.subr.bf16.mxu0 0
        %544 = vmatpush1.bf16.msra.mxu0 0
        %545 = vmatprep.subr.bf16.mxu0 0
        %546 = vmatpush1.bf16.msra.mxu0 0
        %547 = vmatprep.subr.bf16.mxu0 0
        %548 = vmatpush1.bf16.msra.mxu0 0
        %549 = vmatprep.subr.bf16.mxu0 0
        %550 = vmatpush1.bf16.msra.mxu0 0
        %551 = vmatprep.subr.bf16.mxu0 0
        %552 = vmatpush1.bf16.msra.mxu0 0
        %553 = vmatprep.mubr.bf16.mxu0 0
        %554 = vmatmul.mubr.bf16.gmra.mrb[0].mxu0 %v501
        %v555 = vpop.f32.mrb[0].mxu0
        %v556 = vadd.f32 0.0, %v555
        %v557 = vpop.f32.mrb[0].mxu0
        %v558 = vadd.f32 0.0, %v557
        %v559 = vpop.f32.mrb[0].mxu0
        %v560 = vadd.f32 0.0, %v559
        %v561 = vpop.f32.mrb[0].mxu0
        %v562 = vadd.f32 0.0, %v561
        %563 = vmatprep.mubr.bf16.mxu0 0
        %564 = vmatmul.mubr.bf16.gmra.mrb[0].mxu0 %v504
        %v565 = vpop.f32.mrb[0].mxu0
        %v566 = vadd.f32 0.0, %v565
        %v567 = vpop.f32.mrb[0].mxu0
        %v568 = vadd.f32 0.0, %v567
        %v569 = vpop.f32.mrb[0].mxu0
        %v570 = vadd.f32 0.0, %v569
        %v571 = vpop.f32.mrb[0].mxu0
        %v572 = vadd.f32 0.0, %v571
        %573 = vmatprep.mubr.bf16.mxu0 0
        %574 = vmatmul.mubr.bf16.gmra.mrb[0].mxu0 %v507
        %v575 = vpop.f32.mrb[0].mxu0
        %v576 = vadd.f32 0.0, %v575
        %v577 = vpop.f32.mrb[0].mxu0
        %v578 = vadd.f32 0.0, %v577
        %v579 = vpop.f32.mrb[0].mxu0
        %v580 = vadd.f32 0.0, %v579
        %v581 = vpop.f32.mrb[0].mxu0
        %v582 = vadd.f32 0.0, %v581
        %583 = vmatprep.mubr.bf16.mxu0 0
        %584 = vmatmul.mubr.bf16.gmra.mrb[0].mxu0 %v510
        %v585 = vpop.f32.mrb[0].mxu0
        %v586 = vadd.f32 0.0, %v585
        %v587 = vpop.f32.mrb[0].mxu0
        %v588 = vadd.f32 0.0, %v587
        %v589 = vpop.f32.mrb[0].mxu0
        %v590 = vadd.f32 0.0, %v589
        %v591 = vpop.f32.mrb[0].mxu0
        %v592 = vadd.f32 0.0, %v591
        %593 = vdwg.mxu0
        %v597 = vunpack.c.l.b16 %v416
        %v598 = vunpack.c.h.b16 %v416
        %v599 = vunpack.c.l.b16 %v417
        %v600 = vunpack.c.h.b16 %v417
        %v601 = vunpack.c.l.b16 %v418
        %v602 = vunpack.c.h.b16 %v418
        %v603 = vpack.c.b16 %v599, %v597
        %v604 = vpack.c.b16 %v600, %v598
        %v605 = vpack.c.b16 %v601, %v601
        %v606 = vpack.c.b16 %v602, %v602
        %v609 = vsel %vm499, %v442, 0
        %v611 = vsel %vm499, %v443, 0
        %v613 = vsel %vm499, %v444, 0
        %v615 = vsel %vm499, %v445, 0
        %v618 = vand.u32 %v605, %v514
        %v621 = vand.u32 %v606, %v514
        %623 = vmatprep.subr.bf16.mxu0 %v604
        %624 = vmatpush1.bf16.msra.mxu0 %v603
        %625 = vmatprep.subr.bf16.mxu0 %v621
        %626 = vmatpush1.bf16.msra.mxu0 %v618
        %627 = vmatprep.subr.bf16.mxu0 0
        %628 = vmatpush1.bf16.msra.mxu0 0
        %629 = vmatprep.subr.bf16.mxu0 0
        %630 = vmatpush1.bf16.msra.mxu0 0
        %631 = vmatprep.subr.bf16.mxu0 0
        %632 = vmatpush1.bf16.msra.mxu0 0
        %633 = vmatprep.subr.bf16.mxu0 0
        %634 = vmatpush1.bf16.msra.mxu0 0
        %635 = vmatprep.subr.bf16.mxu0 0
        %636 = vmatpush1.bf16.msra.mxu0 0
        %637 = vmatprep.subr.bf16.mxu0 0
        %638 = vmatpush1.bf16.msra.mxu0 0
        %639 = vmatprep.subr.bf16.mxu0 0
        %640 = vmatpush1.bf16.msra.mxu0 0
        %641 = vmatprep.subr.bf16.mxu0 0
        %642 = vmatpush1.bf16.msra.mxu0 0
        %643 = vmatprep.subr.bf16.mxu0 0
        %644 = vmatpush1.bf16.msra.mxu0 0
        %645 = vmatprep.subr.bf16.mxu0 0
        %646 = vmatpush1.bf16.msra.mxu0 0
        %647 = vmatprep.subr.bf16.mxu0 0
        %648 = vmatpush1.bf16.msra.mxu0 0
        %649 = vmatprep.subr.bf16.mxu0 0
        %650 = vmatpush1.bf16.msra.mxu0 0
        %651 = vmatprep.subr.bf16.mxu0 0
        %652 = vmatpush1.bf16.msra.mxu0 0
        %653 = vmatprep.subr.bf16.mxu0 0
        %654 = vmatpush1.bf16.msra.mxu0 0
        %655 = vmatprep.mubr.bf16.mxu0 0
        %656 = vmatmul.mubr.bf16.gmra.mrb[0].mxu0 %v609
        %v657 = vpop.f32.mrb[0].mxu0
        %v658 = vadd.f32 %v556, %v657
        %v659 = vpop.f32.mrb[0].mxu0
        %v660 = vadd.f32 %v558, %v659
        %v661 = vpop.f32.mrb[0].mxu0
        %v662 = vadd.f32 %v560, %v661
        %v663 = vpop.f32.mrb[0].mxu0
        %v664 = vadd.f32 %v562, %v663
        %665 = vmatprep.mubr.bf16.mxu0 0
        %666 = vmatmul.mubr.bf16.gmra.mrb[0].mxu0 %v611
        %v667 = vpop.f32.mrb[0].mxu0
        %v668 = vadd.f32 %v566, %v667
        %v669 = vpop.f32.mrb[0].mxu0
        %v670 = vadd.f32 %v568, %v669
        %v671 = vpop.f32.mrb[0].mxu0
        %v672 = vadd.f32 %v570, %v671
        %v673 = vpop.f32.mrb[0].mxu0
        %v674 = vadd.f32 %v572, %v673
        %675 = vmatprep.mubr.bf16.mxu0 0
        %676 = vmatmul.mubr.bf16.gmra.mrb[0].mxu0 %v613
        %v677 = vpop.f32.mrb[0].mxu0
        %v678 = vadd.f32 %v576, %v677
        %v679 = vpop.f32.mrb[0].mxu0
        %v680 = vadd.f32 %v578, %v679
        %v681 = vpop.f32.mrb[0].mxu0
        %v682 = vadd.f32 %v580, %v681
        %v683 = vpop.f32.mrb[0].mxu0
        %v684 = vadd.f32 %v582, %v683
        %685 = vmatprep.mubr.bf16.mxu0 0
        %686 = vmatmul.mubr.bf16.gmra.mrb[0].mxu0 %v615
        %v687 = vpop.f32.mrb[0].mxu0
        %v688 = vadd.f32 %v586, %v687
        %v689 = vpop.f32.mrb[0].mxu0
        %v690 = vadd.f32 %v588, %v689
        %v691 = vpop.f32.mrb[0].mxu0
        %v692 = vadd.f32 %v590, %v691
        %v693 = vpop.f32.mrb[0].mxu0
        %v694 = vadd.f32 %v592, %v693
        %695 = vdwg.mxu0
        %v696 = vld [vmem:[#allocation2] sm:$0xe]
        %s697 = scalar_lea.vmem %s2, 48
        %v698 = vld [vmem:[%s697] sm:$0xff]
        %v699 = vld [vmem:[%s697 + $0x8] sm:$0xff]
        %v700 = vld [vmem:[%s697 + $0x10] sm:$0x11]
        %v702 = vunpack.c.l.b16 %v696
        %v703 = vpack.c.b16 %v434, %v702
        %vm704 = vcmask 1046528
        %v705 = vrot.slane %v703, 1
        %v706 = vrot.slane %v443, 1
        %v707 = vsel %vm704, %v705, %v706
        %v708 = vrot.slane %v444, 1
        %v709 = vsel %vm704, %v706, %v708
        %v710 = vrot.slane %v445, 1
        %v711 = vsel %vm704, %v708, %v710
        %v712 = vrot.slane %v446, 1
        %v713 = vsel %vm704, %v710, %v712
        %v717 = vunpack.c.l.b16 %v698
        %v718 = vunpack.c.h.b16 %v698
        %v719 = vunpack.c.l.b16 %v699
        %v720 = vunpack.c.h.b16 %v699
        %v721 = vunpack.c.l.b16 %v700
        %v722 = vunpack.c.h.b16 %v700
        %v723 = vpack.c.b16 %v719, %v717
        %v724 = vpack.c.b16 %v720, %v718
        %v725 = vpack.c.b16 %v721, %v721
        %v726 = vpack.c.b16 %v722, %v722
        %v730 = vsel %vm499, %v707, 0
        %v733 = vsel %vm499, %v709, 0
        %v736 = vsel %vm499, %v711, 0
        %v739 = vsel %vm499, %v713, 0
        %v742 = vand.u32 %v725, %v514
        %v745 = vand.u32 %v726, %v514
        %747 = vmatprep.subr.bf16.mxu0 %v724
        %748 = vmatpush1.bf16.msra.mxu0 %v723
        %749 = vmatprep.subr.bf16.mxu0 %v745
        %750 = vmatpush1.bf16.msra.mxu0 %v742
        %751 = vmatprep.subr.bf16.mxu0 0
        %752 = vmatpush1.bf16.msra.mxu0 0
        %753 = vmatprep.subr.bf16.mxu0 0
        %754 = vmatpush1.bf16.msra.mxu0 0
        %755 = vmatprep.subr.bf16.mxu0 0
        %756 = vmatpush1.bf16.msra.mxu0 0
        %757 = vmatprep.subr.bf16.mxu0 0
        %758 = vmatpush1.bf16.msra.mxu0 0
        %759 = vmatprep.subr.bf16.mxu0 0
        %760 = vmatpush1.bf16.msra.mxu0 0
        %761 = vmatprep.subr.bf16.mxu0 0
        %762 = vmatpush1.bf16.msra.mxu0 0
        %763 = vmatprep.subr.bf16.mxu0 0
        %764 = vmatpush1.bf16.msra.mxu0 0
        %765 = vmatprep.subr.bf16.mxu0 0
        %766 = vmatpush1.bf16.msra.mxu0 0
        %767 = vmatprep.subr.bf16.mxu0 0
        %768 = vmatpush1.bf16.msra.mxu0 0
        %769 = vmatprep.subr.bf16.mxu0 0
        %770 = vmatpush1.bf16.msra.mxu0 0
        %771 = vmatprep.subr.bf16.mxu0 0
        %772 = vmatpush1.bf16.msra.mxu0 0
        %773 = vmatprep.subr.bf16.mxu0 0
        %774 = vmatpush1.bf16.msra.mxu0 0
        %775 = vmatprep.subr.bf16.mxu0 0
        %776 = vmatpush1.bf16.msra.mxu0 0
        %777 = vmatprep.subr.bf16.mxu0 0
        %778 = vmatpush1.bf16.msra.mxu0 0
        %779 = vmatprep.mubr.bf16.mxu0 0
        %780 = vmatmul.mubr.bf16.gmra.mrb[0].mxu0 %v730
        %v781 = vpop.f32.mrb[0].mxu0
        %v782 = vadd.f32 0.0, %v781
        %v783 = vpop.f32.mrb[0].mxu0
        %v784 = vadd.f32 0.0, %v783
        %v785 = vpop.f32.mrb[0].mxu0
        %v786 = vadd.f32 0.0, %v785
        %v787 = vpop.f32.mrb[0].mxu0
        %v788 = vadd.f32 0.0, %v787
        %789 = vmatprep.mubr.bf16.mxu0 0
        %790 = vmatmul.mubr.bf16.gmra.mrb[0].mxu0 %v733
        %v791 = vpop.f32.mrb[0].mxu0
        %v792 = vadd.f32 0.0, %v791
        %v793 = vpop.f32.mrb[0].mxu0
        %v794 = vadd.f32 0.0, %v793
        %v795 = vpop.f32.mrb[0].mxu0
        %v796 = vadd.f32 0.0, %v795
        %v797 = vpop.f32.mrb[0].mxu0
        %v798 = vadd.f32 0.0, %v797
        %799 = vmatprep.mubr.bf16.mxu0 0
        %800 = vmatmul.mubr.bf16.gmra.mrb[0].mxu0 %v736
        %v801 = vpop.f32.mrb[0].mxu0
        %v802 = vadd.f32 0.0, %v801
        %v803 = vpop.f32.mrb[0].mxu0
        %v804 = vadd.f32 0.0, %v803
        %v805 = vpop.f32.mrb[0].mxu0
        %v806 = vadd.f32 0.0, %v805
        %v807 = vpop.f32.mrb[0].mxu0
        %v808 = vadd.f32 0.0, %v807
        %809 = vmatprep.mubr.bf16.mxu0 0
        %810 = vmatmul.mubr.bf16.gmra.mrb[0].mxu0 %v739
        %v811 = vpop.f32.mrb[0].mxu0
        %v812 = vadd.f32 0.0, %v811
        %v813 = vpop.f32.mrb[0].mxu0
        %v814 = vadd.f32 0.0, %v813
        %v815 = vpop.f32.mrb[0].mxu0
        %v816 = vadd.f32 0.0, %v815
        %v817 = vpop.f32.mrb[0].mxu0
        %v818 = vadd.f32 0.0, %v817
        %819 = vdwg.mxu0
        %v820 = vadd.f32 %v658, %v782
        %v821 = vadd.f32 %v660, %v784
        %v822 = vadd.f32 %v662, %v786
        %v823 = vadd.f32 %v664, %v788
        %v824 = vadd.f32 %v668, %v792
        %v825 = vadd.f32 %v670, %v794
        %v826 = vadd.f32 %v672, %v796
        %v827 = vadd.f32 %v674, %v798
        %v828 = vadd.f32 %v678, %v802
        %v829 = vadd.f32 %v680, %v804
        %v830 = vadd.f32 %v682, %v806
        %v831 = vadd.f32 %v684, %v808
        %v832 = vadd.f32 %v688, %v812
        %v833 = vadd.f32 %v690, %v814
        %v834 = vadd.f32 %v692, %v816
        %v835 = vadd.f32 %v694, %v818
        %v836 = vld [vmem:[#allocation2 + $0x20] sm:$0x3]
        %s837 = scalar_lea.vmem %s2, 72
        %v838 = vld [vmem:[%s837] sm:$0xff]
        %v839 = vld [vmem:[%s837 + $0x8] sm:$0xff]
        %v840 = vld [vmem:[%s837 + $0x10] sm:$0x11]
        %v842 = vunpack.c.l.b16 %v836
        %v843 = vpack.c.b16 %v842, %v842
        %vm844 = vsmask.f32 6400
        %v846 = vshrl.u32 %v703, 16
        %v848 = vrot.slane %v846, 1
        %v849 = vshll.u32 %v703, 16
        %v851 = vrot.slane %v849, 2
        %v852 = vor.u32 %v848, %v851
        %v853 = vrot.slane %v460, 1
        %v854 = vrot.slane %v456, 2
        %v855 = vor.u32 %v853, %v854
        %v856 = vsel %vm844, %v852, %v855
        %v857 = vrot.slane %v468, 1
        %v858 = vrot.slane %v464, 2
        %v859 = vor.u32 %v857, %v858
        %v860 = vsel %vm844, %v855, %v859
        %v861 = vrot.slane %v476, 1
        %v862 = vrot.slane %v472, 2
        %v863 = vor.u32 %v861, %v862
        %v864 = vsel %vm844, %v859, %v863
        %v866 = vshrl.u32 %v843, 16
        %v868 = vrot.slane %v866, 1
        %v869 = vshll.u32 %v843, 16
        %v871 = vrot.slane %v869, 2
        %v872 = vor.u32 %v868, %v871
        %v873 = vsel %vm844, %v863, %v872
        %v877 = vunpack.c.l.b16 %v838
        %v878 = vunpack.c.h.b16 %v838
        %v879 = vunpack.c.l.b16 %v839
        %v880 = vunpack.c.h.b16 %v839
        %v881 = vunpack.c.l.b16 %v840
        %v882 = vunpack.c.h.b16 %v840
        %v883 = vpack.c.b16 %v879, %v877
        %v884 = vpack.c.b16 %v880, %v878
        %v885 = vpack.c.b16 %v881, %v881
        %v886 = vpack.c.b16 %v882, %v882
        %v890 = vsel %vm499, %v856, 0
        %v893 = vsel %vm499, %v860, 0
        %v896 = vsel %vm499, %v864, 0
        %v899 = vsel %vm499, %v873, 0
        %v902 = vand.u32 %v885, %v514
        %v905 = vand.u32 %v886, %v514
        %907 = vmatprep.subr.bf16.mxu0 %v884
        %908 = vmatpush1.bf16.msra.mxu0 %v883
        %909 = vmatprep.subr.bf16.mxu0 %v905
        %910 = vmatpush1.bf16.msra.mxu0 %v902
        %911 = vmatprep.subr.bf16.mxu0 0
        %912 = vmatpush1.bf16.msra.mxu0 0
        %913 = vmatprep.subr.bf16.mxu0 0
        %914 = vmatpush1.bf16.msra.mxu0 0
        %915 = vmatprep.subr.bf16.mxu0 0
        %916 = vmatpush1.bf16.msra.mxu0 0
        %917 = vmatprep.subr.bf16.mxu0 0
        %918 = vmatpush1.bf16.msra.mxu0 0
        %919 = vmatprep.subr.bf16.mxu0 0
        %920 = vmatpush1.bf16.msra.mxu0 0
        %921 = vmatprep.subr.bf16.mxu0 0
        %922 = vmatpush1.bf16.msra.mxu0 0
        %923 = vmatprep.subr.bf16.mxu0 0
        %924 = vmatpush1.bf16.msra.mxu0 0
        %925 = vmatprep.subr.bf16.mxu0 0
        %926 = vmatpush1.bf16.msra.mxu0 0
        %927 = vmatprep.subr.bf16.mxu0 0
        %928 = vmatpush1.bf16.msra.mxu0 0
        %929 = vmatprep.subr.bf16.mxu0 0
        %930 = vmatpush1.bf16.msra.mxu0 0
        %931 = vmatprep.subr.bf16.mxu0 0
        %932 = vmatpush1.bf16.msra.mxu0 0
        %933 = vmatprep.subr.bf16.mxu0 0
        %934 = vmatpush1.bf16.msra.mxu0 0
        %935 = vmatprep.subr.bf16.mxu0 0
        %936 = vmatpush1.bf16.msra.mxu0 0
        %937 = vmatprep.subr.bf16.mxu0 0
        %938 = vmatpush1.bf16.msra.mxu0 0
        %939 = vmatprep.mubr.bf16.mxu0 0
        %940 = vmatmul.mubr.bf16.gmra.mrb[0].mxu0 %v890
        %v941 = vpop.f32.mrb[0].mxu0
        %v942 = vadd.f32 0.0, %v941
        %v943 = vpop.f32.mrb[0].mxu0
        %v944 = vadd.f32 0.0, %v943
        %v945 = vpop.f32.mrb[0].mxu0
        %v946 = vadd.f32 0.0, %v945
        %v947 = vpop.f32.mrb[0].mxu0
        %v948 = vadd.f32 0.0, %v947
        %949 = vmatprep.mubr.bf16.mxu0 0
        %950 = vmatmul.mubr.bf16.gmra.mrb[0].mxu0 %v893
        %v951 = vpop.f32.mrb[0].mxu0
        %v952 = vadd.f32 0.0, %v951
        %v953 = vpop.f32.mrb[0].mxu0
        %v954 = vadd.f32 0.0, %v953
        %v955 = vpop.f32.mrb[0].mxu0
        %v956 = vadd.f32 0.0, %v955
        %v957 = vpop.f32.mrb[0].mxu0
        %v958 = vadd.f32 0.0, %v957
        %959 = vmatprep.mubr.bf16.mxu0 0
        %960 = vmatmul.mubr.bf16.gmra.mrb[0].mxu0 %v896
        %v961 = vpop.f32.mrb[0].mxu0
        %v962 = vadd.f32 0.0, %v961
        %v963 = vpop.f32.mrb[0].mxu0
        %v964 = vadd.f32 0.0, %v963
        %v965 = vpop.f32.mrb[0].mxu0
        %v966 = vadd.f32 0.0, %v965
        %v967 = vpop.f32.mrb[0].mxu0
        %v968 = vadd.f32 0.0, %v967
        %969 = vmatprep.mubr.bf16.mxu0 0
        %970 = vmatmul.mubr.bf16.gmra.mrb[0].mxu0 %v899
        %v971 = vpop.f32.mrb[0].mxu0
        %v972 = vadd.f32 0.0, %v971
        %v973 = vpop.f32.mrb[0].mxu0
        %v974 = vadd.f32 0.0, %v973
        %v975 = vpop.f32.mrb[0].mxu0
        %v976 = vadd.f32 0.0, %v975
        %v977 = vpop.f32.mrb[0].mxu0
        %v978 = vadd.f32 0.0, %v977
        %979 = vdwg.mxu0
        %v980 = vadd.f32 %v820, %v942
        %v981 = vadd.f32 %v821, %v944
        %v982 = vadd.f32 %v822, %v946
        %v983 = vadd.f32 %v823, %v948
        %v984 = vadd.f32 %v824, %v952
        %v985 = vadd.f32 %v825, %v954
        %v986 = vadd.f32 %v826, %v956
        %v987 = vadd.f32 %v827, %v958
        %v988 = vadd.f32 %v828, %v962
        %v989 = vadd.f32 %v829, %v964
        %v990 = vadd.f32 %v830, %v966
        %v991 = vadd.f32 %v831, %v968
        %v992 = vadd.f32 %v832, %v972
        %v993 = vadd.f32 %v833, %v974
        %v994 = vadd.f32 %v834, %v976
        %v995 = vadd.f32 %v835, %v978
        %v996 = vld [vmem:[#allocation2] sm:$0xc]
        %s997 = scalar_lea.vmem %s2, 96
        %v998 = vld [vmem:[%s997] sm:$0xff]
        %v999 = vld [vmem:[%s997 + $0x8] sm:$0xff]
        %v1000 = vld [vmem:[%s997 + $0x10] sm:$0x11]
        %v1002 = vunpack.c.l.b16 %v996
        %v1003 = vpack.c.b16 %v434, %v1002
        %vm1004 = vcmask 1045504
        %v1005 = vrot.slane %v1003, 2
        %v1006 = vrot.slane %v443, 2
        %v1007 = vsel %vm1004, %v1005, %v1006
        %v1008 = vrot.slane %v444, 2
        %v1009 = vsel %vm1004, %v1006, %v1008
        %v1010 = vrot.slane %v445, 2
        %v1011 = vsel %vm1004, %v1008, %v1010
        %v1012 = vrot.slane %v843, 2
        %v1013 = vsel %vm1004, %v1010, %v1012
        %v1017 = vunpack.c.l.b16 %v998
        %v1018 = vunpack.c.h.b16 %v998
        %v1019 = vunpack.c.l.b16 %v999
        %v1020 = vunpack.c.h.b16 %v999
        %v1021 = vunpack.c.l.b16 %v1000
        %v1022 = vunpack.c.h.b16 %v1000
        %v1023 = vpack.c.b16 %v1019, %v1017
        %v1024 = vpack.c.b16 %v1020, %v1018
        %v1025 = vpack.c.b16 %v1021, %v1021
        %v1026 = vpack.c.b16 %v1022, %v1022
        %v1030 = vsel %vm499, %v1007, 0
        %v1033 = vsel %vm499, %v1009, 0
        %v1036 = vsel %vm499, %v1011, 0
        %v1039 = vsel %vm499, %v1013, 0
        %v1042 = vand.u32 %v1025, %v514
        %v1045 = vand.u32 %v1026, %v514
        %1047 = vmatprep.subr.bf16.mxu0 %v1024
        %1048 = vmatpush1.bf16.msra.mxu0 %v1023
        %1049 = vmatprep.subr.bf16.mxu0 %v1045
        %1050 = vmatpush1.bf16.msra.mxu0 %v1042
        %1051 = vmatprep.subr.bf16.mxu0 0
        %1052 = vmatpush1.bf16.msra.mxu0 0
        %1053 = vmatprep.subr.bf16.mxu0 0
        %1054 = vmatpush1.bf16.msra.mxu0 0
        %1055 = vmatprep.subr.bf16.mxu0 0
        %1056 = vmatpush1.bf16.msra.mxu0 0
        %1057 = vmatprep.subr.bf16.mxu0 0
        %1058 = vmatpush1.bf16.msra.mxu0 0
        %1059 = vmatprep.subr.bf16.mxu0 0
        %1060 = vmatpush1.bf16.msra.mxu0 0
        %1061 = vmatprep.subr.bf16.mxu0 0
        %1062 = vmatpush1.bf16.msra.mxu0 0
        %1063 = vmatprep.subr.bf16.mxu0 0
        %1064 = vmatpush1.bf16.msra.mxu0 0
        %1065 = vmatprep.subr.bf16.mxu0 0
        %1066 = vmatpush1.bf16.msra.mxu0 0
        %1067 = vmatprep.subr.bf16.mxu0 0
        %1068 = vmatpush1.bf16.msra.mxu0 0
        %1069 = vmatprep.subr.bf16.mxu0 0
        %1070 = vmatpush1.bf16.msra.mxu0 0
        %1071 = vmatprep.subr.bf16.mxu0 0
        %1072 = vmatpush1.bf16.msra.mxu0 0
        %1073 = vmatprep.subr.bf16.mxu0 0
        %1074 = vmatpush1.bf16.msra.mxu0 0
        %1075 = vmatprep.subr.bf16.mxu0 0
        %1076 = vmatpush1.bf16.msra.mxu0 0
        %1077 = vmatprep.subr.bf16.mxu0 0
        %1078 = vmatpush1.bf16.msra.mxu0 0
        %1079 = vmatprep.mubr.bf16.mxu0 0
        %1080 = vmatmul.mubr.bf16.gmra.mrb[0].mxu0 %v1030
        %v1081 = vpop.f32.mrb[0].mxu0
        %v1082 = vadd.f32 0.0, %v1081
        %v1083 = vpop.f32.mrb[0].mxu0
        %v1084 = vadd.f32 0.0, %v1083
        %v1085 = vpop.f32.mrb[0].mxu0
        %v1086 = vadd.f32 0.0, %v1085
        %v1087 = vpop.f32.mrb[0].mxu0
        %v1088 = vadd.f32 0.0, %v1087
        %1089 = vmatprep.mubr.bf16.mxu0 0
        %1090 = vmatmul.mubr.bf16.gmra.mrb[0].mxu0 %v1033
        %v1091 = vpop.f32.mrb[0].mxu0
        %v1092 = vadd.f32 0.0, %v1091
        %v1093 = vpop.f32.mrb[0].mxu0
        %v1094 = vadd.f32 0.0, %v1093
        %v1095 = vpop.f32.mrb[0].mxu0
        %v1096 = vadd.f32 0.0, %v1095
        %v1097 = vpop.f32.mrb[0].mxu0
        %v1098 = vadd.f32 0.0, %v1097
        %1099 = vmatprep.mubr.bf16.mxu0 0
        %1100 = vmatmul.mubr.bf16.gmra.mrb[0].mxu0 %v1036
        %v1101 = vpop.f32.mrb[0].mxu0
        %v1102 = vadd.f32 0.0, %v1101
        %v1103 = vpop.f32.mrb[0].mxu0
        %v1104 = vadd.f32 0.0, %v1103
        %v1105 = vpop.f32.mrb[0].mxu0
        %v1106 = vadd.f32 0.0, %v1105
        %v1107 = vpop.f32.mrb[0].mxu0
        %v1108 = vadd.f32 0.0, %v1107
        %1109 = vmatprep.mubr.bf16.mxu0 0
        %1110 = vmatmul.mubr.bf16.gmra.mrb[0].mxu0 %v1039
        %v1111 = vpop.f32.mrb[0].mxu0
        %v1112 = vadd.f32 0.0, %v1111
        %v1113 = vpop.f32.mrb[0].mxu0
        %v1114 = vadd.f32 0.0, %v1113
        %v1115 = vpop.f32.mrb[0].mxu0
        %v1116 = vadd.f32 0.0, %v1115
        %v1117 = vpop.f32.mrb[0].mxu0
        %v1118 = vadd.f32 0.0, %v1117
        %1119 = vdwg.mxu0
        %v1120 = vadd.f32 %v980, %v1082
        %v1121 = vadd.f32 %v981, %v1084
        %v1122 = vadd.f32 %v982, %v1086
        %v1123 = vadd.f32 %v983, %v1088
        %v1124 = vadd.f32 %v984, %v1092
        %v1125 = vadd.f32 %v985, %v1094
        %v1126 = vadd.f32 %v986, %v1096
        %v1127 = vadd.f32 %v987, %v1098
        %v1128 = vadd.f32 %v988, %v1102
        %v1129 = vadd.f32 %v989, %v1104
        %v1130 = vadd.f32 %v990, %v1106
        %v1131 = vadd.f32 %v991, %v1108
        %v1132 = vadd.f32 %v992, %v1112
        %v1133 = vadd.f32 %v993, %v1114
        %v1134 = vadd.f32 %v994, %v1116
        %v1135 = vadd.f32 %v995, %v1118
        %v1136 = vld [vmem:[#allocation2 + $0x20] sm:$0x7]
        %s1137 = scalar_lea.vmem %s2, 120
        %v1138 = vld [vmem:[%s1137] sm:$0xff]
        %v1139 = vld [vmem:[%s1137 + $0x8] sm:$0xff]
        %v1140 = vld [vmem:[%s1137 + $0x10] sm:$0x11]
        %v1142 = vunpack.c.l.b16 %v1136
        %v1143 = vpack.c.b16 %v1142, %v1142
        %vm1144 = vsmask.f32 5376
        %v1146 = vshrl.u32 %v1003, 16
        %v1148 = vrot.slane %v1146, 2
        %v1149 = vshll.u32 %v1003, 16
        %v1151 = vrot.slane %v1149, 3
        %v1152 = vor.u32 %v1148, %v1151
        %v1153 = vrot.slane %v460, 2
        %v1154 = vrot.slane %v456, 3
        %v1155 = vor.u32 %v1153, %v1154
        %v1156 = vsel %vm1144, %v1152, %v1155
        %v1157 = vrot.slane %v468, 2
        %v1158 = vrot.slane %v464, 3
        %v1159 = vor.u32 %v1157, %v1158
        %v1160 = vsel %vm1144, %v1155, %v1159
        %v1161 = vrot.slane %v476, 2
        %v1162 = vrot.slane %v472, 3
        %v1163 = vor.u32 %v1161, %v1162
        %v1164 = vsel %vm1144, %v1159, %v1163
        %v1166 = vshrl.u32 %v1143, 16
        %v1168 = vrot.slane %v1166, 2
        %v1169 = vshll.u32 %v1143, 16
        %v1171 = vrot.slane %v1169, 3
        %v1172 = vor.u32 %v1168, %v1171
        %v1173 = vsel %vm1144, %v1163, %v1172
        %v1177 = vunpack.c.l.b16 %v1138
        %v1178 = vunpack.c.h.b16 %v1138
        %v1179 = vunpack.c.l.b16 %v1139
        %v1180 = vunpack.c.h.b16 %v1139
        %v1181 = vunpack.c.l.b16 %v1140
        %v1182 = vunpack.c.h.b16 %v1140
        %v1183 = vpack.c.b16 %v1179, %v1177
        %v1184 = vpack.c.b16 %v1180, %v1178
        %v1185 = vpack.c.b16 %v1181, %v1181
        %v1186 = vpack.c.b16 %v1182, %v1182
        %v1190 = vsel %vm499, %v1156, 0
        %v1193 = vsel %vm499, %v1160, 0
        %v1196 = vsel %vm499, %v1164, 0
        %v1199 = vsel %vm499, %v1173, 0
        %v1202 = vand.u32 %v1185, %v514
        %v1205 = vand.u32 %v1186, %v514
        %1207 = vmatprep.subr.bf16.mxu0 %v1184
        %1208 = vmatpush1.bf16.msra.mxu0 %v1183
        %1209 = vmatprep.subr.bf16.mxu0 %v1205
        %1210 = vmatpush1.bf16.msra.mxu0 %v1202
        %1211 = vmatprep.subr.bf16.mxu0 0
        %1212 = vmatpush1.bf16.msra.mxu0 0
        %1213 = vmatprep.subr.bf16.mxu0 0
        %1214 = vmatpush1.bf16.msra.mxu0 0
        %1215 = vmatprep.subr.bf16.mxu0 0
        %1216 = vmatpush1.bf16.msra.mxu0 0
        %1217 = vmatprep.subr.bf16.mxu0 0
        %1218 = vmatpush1.bf16.msra.mxu0 0
        %1219 = vmatprep.subr.bf16.mxu0 0
        %1220 = vmatpush1.bf16.msra.mxu0 0
        %1221 = vmatprep.subr.bf16.mxu0 0
        %1222 = vmatpush1.bf16.msra.mxu0 0
        %1223 = vmatprep.subr.bf16.mxu0 0
        %1224 = vmatpush1.bf16.msra.mxu0 0
        %1225 = vmatprep.subr.bf16.mxu0 0
        %1226 = vmatpush1.bf16.msra.mxu0 0
        %1227 = vmatprep.subr.bf16.mxu0 0
        %1228 = vmatpush1.bf16.msra.mxu0 0
        %1229 = vmatprep.subr.bf16.mxu0 0
        %1230 = vmatpush1.bf16.msra.mxu0 0
        %1231 = vmatprep.subr.bf16.mxu0 0
        %1232 = vmatpush1.bf16.msra.mxu0 0
        %1233 = vmatprep.subr.bf16.mxu0 0
        %1234 = vmatpush1.bf16.msra.mxu0 0
        %1235 = vmatprep.subr.bf16.mxu0 0
        %1236 = vmatpush1.bf16.msra.mxu0 0
        %1237 = vmatprep.subr.bf16.mxu0 0
        %1238 = vmatpush1.bf16.msra.mxu0 0
        %1239 = vmatprep.mubr.bf16.mxu0 0
        %1240 = vmatmul.mubr.bf16.gmra.mrb[0].mxu0 %v1190
        %v1241 = vpop.f32.mrb[0].mxu0
        %v1242 = vadd.f32 0.0, %v1241
        %v1243 = vpop.f32.mrb[0].mxu0
        %v1244 = vadd.f32 0.0, %v1243
        %v1245 = vpop.f32.mrb[0].mxu0
        %v1246 = vadd.f32 0.0, %v1245
        %v1247 = vpop.f32.mrb[0].mxu0
        %v1248 = vadd.f32 0.0, %v1247
        %1249 = vmatprep.mubr.bf16.mxu0 0
        %1250 = vmatmul.mubr.bf16.gmra.mrb[0].mxu0 %v1193
        %v1251 = vpop.f32.mrb[0].mxu0
        %v1252 = vadd.f32 0.0, %v1251
        %v1253 = vpop.f32.mrb[0].mxu0
        %v1254 = vadd.f32 0.0, %v1253
        %v1255 = vpop.f32.mrb[0].mxu0
        %v1256 = vadd.f32 0.0, %v1255
        %v1257 = vpop.f32.mrb[0].mxu0
        %v1258 = vadd.f32 0.0, %v1257
        %1259 = vmatprep.mubr.bf16.mxu0 0
        %1260 = vmatmul.mubr.bf16.gmra.mrb[0].mxu0 %v1196
        %v1261 = vpop.f32.mrb[0].mxu0
        %v1262 = vadd.f32 0.0, %v1261
        %v1263 = vpop.f32.mrb[0].mxu0
        %v1264 = vadd.f32 0.0, %v1263
        %v1265 = vpop.f32.mrb[0].mxu0
        %v1266 = vadd.f32 0.0, %v1265
        %v1267 = vpop.f32.mrb[0].mxu0
        %v1268 = vadd.f32 0.0, %v1267
        %1269 = vmatprep.mubr.bf16.mxu0 0
        %1270 = vmatmul.mubr.bf16.gmra.mrb[0].mxu0 %v1199
        %v1271 = vpop.f32.mrb[0].mxu0
        %v1272 = vadd.f32 0.0, %v1271
        %v1273 = vpop.f32.mrb[0].mxu0
        %v1274 = vadd.f32 0.0, %v1273
        %v1275 = vpop.f32.mrb[0].mxu0
        %v1276 = vadd.f32 0.0, %v1275
        %v1277 = vpop.f32.mrb[0].mxu0
        %v1278 = vadd.f32 0.0, %v1277
        %1279 = vdwg.mxu0
        %v1280 = vadd.f32 %v1120, %v1242
        %v1281 = vadd.f32 %v1121, %v1244
        %v1282 = vadd.f32 %v1122, %v1246
        %v1283 = vadd.f32 %v1123, %v1248
        %v1284 = vadd.f32 %v1124, %v1252
        %v1285 = vadd.f32 %v1125, %v1254
        %v1286 = vadd.f32 %v1126, %v1256
        %v1287 = vadd.f32 %v1127, %v1258
        %v1288 = vadd.f32 %v1128, %v1262
        %v1289 = vadd.f32 %v1129, %v1264
        %v1290 = vadd.f32 %v1130, %v1266
        %v1291 = vadd.f32 %v1131, %v1268
        %v1292 = vadd.f32 %v1132, %v1272
        %v1293 = vadd.f32 %v1133, %v1274
        %v1294 = vadd.f32 %v1134, %v1276
        %v1295 = vadd.f32 %v1135, %v1278
        %v1296 = vld [vmem:[#allocation2] sm:$0x8]
        %s1297 = scalar_lea.vmem %s2, 144
        %v1298 = vld [vmem:[%s1297] sm:$0xff]
        %v1299 = vld [vmem:[%s1297 + $0x8] sm:$0xff]
        %v1300 = vld [vmem:[%s1297 + $0x10] sm:$0x11]
        %v1302 = vunpack.c.l.b16 %v1296
        %v1303 = vpack.c.b16 %v434, %v1302
        %vm1304 = vcmask 1044480
        %v1305 = vrot.slane %v1303, 3
        %v1306 = vrot.slane %v443, 3
        %v1307 = vsel %vm1304, %v1305, %v1306
        %v1308 = vrot.slane %v444, 3
        %v1309 = vsel %vm1304, %v1306, %v1308
        %v1310 = vrot.slane %v445, 3
        %v1311 = vsel %vm1304, %v1308, %v1310
        %v1312 = vrot.slane %v1143, 3
        %v1313 = vsel %vm1304, %v1310, %v1312
        %v1317 = vunpack.c.l.b16 %v1298
        %v1318 = vunpack.c.h.b16 %v1298
        %v1319 = vunpack.c.l.b16 %v1299
        %v1320 = vunpack.c.h.b16 %v1299
        %v1321 = vunpack.c.l.b16 %v1300
        %v1322 = vunpack.c.h.b16 %v1300
        %v1323 = vpack.c.b16 %v1319, %v1317
        %v1324 = vpack.c.b16 %v1320, %v1318
        %v1325 = vpack.c.b16 %v1321, %v1321
        %v1326 = vpack.c.b16 %v1322, %v1322
        %v1330 = vsel %vm499, %v1307, 0
        %v1333 = vsel %vm499, %v1309, 0
        %v1336 = vsel %vm499, %v1311, 0
        %v1339 = vsel %vm499, %v1313, 0
        %v1342 = vand.u32 %v1325, %v514
        %v1345 = vand.u32 %v1326, %v514
        %1347 = vmatprep.subr.bf16.mxu0 %v1324
        %1348 = vmatpush1.bf16.msra.mxu0 %v1323
        %1349 = vmatprep.subr.bf16.mxu0 %v1345
        %1350 = vmatpush1.bf16.msra.mxu0 %v1342
        %1351 = vmatprep.subr.bf16.mxu0 0
        %1352 = vmatpush1.bf16.msra.mxu0 0
        %1353 = vmatprep.subr.bf16.mxu0 0
        %1354 = vmatpush1.bf16.msra.mxu0 0
        %1355 = vmatprep.subr.bf16.mxu0 0
        %1356 = vmatpush1.bf16.msra.mxu0 0
        %1357 = vmatprep.subr.bf16.mxu0 0
        %1358 = vmatpush1.bf16.msra.mxu0 0
        %1359 = vmatprep.subr.bf16.mxu0 0
        %1360 = vmatpush1.bf16.msra.mxu0 0
        %1361 = vmatprep.subr.bf16.mxu0 0
        %1362 = vmatpush1.bf16.msra.mxu0 0
        %1363 = vmatprep.subr.bf16.mxu0 0
        %1364 = vmatpush1.bf16.msra.mxu0 0
        %1365 = vmatprep.subr.bf16.mxu0 0
        %1366 = vmatpush1.bf16.msra.mxu0 0
        %1367 = vmatprep.subr.bf16.mxu0 0
        %1368 = vmatpush1.bf16.msra.mxu0 0
        %1369 = vmatprep.subr.bf16.mxu0 0
        %1370 = vmatpush1.bf16.msra.mxu0 0
        %1371 = vmatprep.subr.bf16.mxu0 0
        %1372 = vmatpush1.bf16.msra.mxu0 0
        %1373 = vmatprep.subr.bf16.mxu0 0
        %1374 = vmatpush1.bf16.msra.mxu0 0
        %1375 = vmatprep.subr.bf16.mxu0 0
        %1376 = vmatpush1.bf16.msra.mxu0 0
        %1377 = vmatprep.subr.bf16.mxu0 0
        %1378 = vmatpush1.bf16.msra.mxu0 0
        %1379 = vmatprep.mubr.bf16.mxu0 0
        %1380 = vmatmul.mubr.bf16.gmra.mrb[0].mxu0 %v1330
        %v1381 = vpop.f32.mrb[0].mxu0
        %v1382 = vadd.f32 0.0, %v1381
        %v1383 = vpop.f32.mrb[0].mxu0
        %v1384 = vadd.f32 0.0, %v1383
        %v1385 = vpop.f32.mrb[0].mxu0
        %v1386 = vadd.f32 0.0, %v1385
        %v1387 = vpop.f32.mrb[0].mxu0
        %v1388 = vadd.f32 0.0, %v1387
        %1389 = vmatprep.mubr.bf16.mxu0 0
        %1390 = vmatmul.mubr.bf16.gmra.mrb[0].mxu0 %v1333
        %v1391 = vpop.f32.mrb[0].mxu0
        %v1392 = vadd.f32 0.0, %v1391
        %v1393 = vpop.f32.mrb[0].mxu0
        %v1394 = vadd.f32 0.0, %v1393
        %v1395 = vpop.f32.mrb[0].mxu0
        %v1396 = vadd.f32 0.0, %v1395
        %v1397 = vpop.f32.mrb[0].mxu0
        %v1398 = vadd.f32 0.0, %v1397
        %1399 = vmatprep.mubr.bf16.mxu0 0
        %1400 = vmatmul.mubr.bf16.gmra.mrb[0].mxu0 %v1336
        %v1401 = vpop.f32.mrb[0].mxu0
        %v1402 = vadd.f32 0.0, %v1401
        %v1403 = vpop.f32.mrb[0].mxu0
        %v1404 = vadd.f32 0.0, %v1403
        %v1405 = vpop.f32.mrb[0].mxu0
        %v1406 = vadd.f32 0.0, %v1405
        %v1407 = vpop.f32.mrb[0].mxu0
        %v1408 = vadd.f32 0.0, %v1407
        %1409 = vmatprep.mubr.bf16.mxu0 0
        %1410 = vmatmul.mubr.bf16.gmra.mrb[0].mxu0 %v1339
        %v1411 = vpop.f32.mrb[0].mxu0
        %v1412 = vadd.f32 0.0, %v1411
        %v1413 = vpop.f32.mrb[0].mxu0
        %v1414 = vadd.f32 0.0, %v1413
        %v1415 = vpop.f32.mrb[0].mxu0
        %v1416 = vadd.f32 0.0, %v1415
        %v1417 = vpop.f32.mrb[0].mxu0
        %v1418 = vadd.f32 0.0, %v1417
        %1419 = vdwg.mxu0
        %v1420 = vadd.f32 %v1280, %v1382
        %v1421 = vadd.f32 %v1281, %v1384
        %v1422 = vadd.f32 %v1282, %v1386
        %v1423 = vadd.f32 %v1283, %v1388
        %v1424 = vadd.f32 %v1284, %v1392
        %v1425 = vadd.f32 %v1285, %v1394
        %v1426 = vadd.f32 %v1286, %v1396
        %v1427 = vadd.f32 %v1287, %v1398
        %v1428 = vadd.f32 %v1288, %v1402
        %v1429 = vadd.f32 %v1289, %v1404
        %v1430 = vadd.f32 %v1290, %v1406
        %v1431 = vadd.f32 %v1291, %v1408
        %v1432 = vadd.f32 %v1292, %v1412
        %v1433 = vadd.f32 %v1293, %v1414
        %v1434 = vadd.f32 %v1294, %v1416
        %v1435 = vadd.f32 %v1295, %v1418
        %v1436 = vld [vmem:[#allocation2 + $0x20] sm:$0xf]
        %s1437 = scalar_lea.vmem %s2, 168
        %v1438 = vld [vmem:[%s1437] sm:$0xff]
        %v1439 = vld [vmem:[%s1437 + $0x8] sm:$0xff]
        %v1440 = vld [vmem:[%s1437 + $0x10] sm:$0x11]
        %v1442 = vunpack.c.l.b16 %v1436
        %v1443 = vpack.c.b16 %v1442, %v1442
        %vm1444 = vsmask.f32 4352
        %v1446 = vshrl.u32 %v1303, 16
        %v1448 = vrot.slane %v1446, 3
        %v1449 = vshll.u32 %v1303, 16
        %v1451 = vrot.slane %v1449, 4
        %v1452 = vor.u32 %v1448, %v1451
        %v1453 = vrot.slane %v460, 3
        %v1454 = vrot.slane %v456, 4
        %v1455 = vor.u32 %v1453, %v1454
        %v1456 = vsel %vm1444, %v1452, %v1455
        %v1457 = vrot.slane %v468, 3
        %v1458 = vrot.slane %v464, 4
        %v1459 = vor.u32 %v1457, %v1458
        %v1460 = vsel %vm1444, %v1455, %v1459
        %v1461 = vrot.slane %v476, 3
        %v1462 = vrot.slane %v472, 4
        %v1463 = vor.u32 %v1461, %v1462
        %v1464 = vsel %vm1444, %v1459, %v1463
        %v1466 = vshrl.u32 %v1443, 16
        %v1468 = vrot.slane %v1466, 3
        %v1469 = vshll.u32 %v1443, 16
        %v1471 = vrot.slane %v1469, 4
        %v1472 = vor.u32 %v1468, %v1471
        %v1473 = vsel %vm1444, %v1463, %v1472
        %v1477 = vunpack.c.l.b16 %v1438
        %v1478 = vunpack.c.h.b16 %v1438
        %v1479 = vunpack.c.l.b16 %v1439
        %v1480 = vunpack.c.h.b16 %v1439
        %v1481 = vunpack.c.l.b16 %v1440
        %v1482 = vunpack.c.h.b16 %v1440
        %v1483 = vpack.c.b16 %v1479, %v1477
        %v1484 = vpack.c.b16 %v1480, %v1478
        %v1485 = vpack.c.b16 %v1481, %v1481
        %v1486 = vpack.c.b16 %v1482, %v1482
        %v1490 = vsel %vm499, %v1456, 0
        %v1493 = vsel %vm499, %v1460, 0
        %v1496 = vsel %vm499, %v1464, 0
        %v1499 = vsel %vm499, %v1473, 0
        %v1502 = vand.u32 %v1485, %v514
        %v1505 = vand.u32 %v1486, %v514
        %1507 = vmatprep.subr.bf16.mxu0 %v1484
        %1508 = vmatpush1.bf16.msra.mxu0 %v1483
        %1509 = vmatprep.subr.bf16.mxu0 %v1505
        %1510 = vmatpush1.bf16.msra.mxu0 %v1502
        %1511 = vmatprep.subr.bf16.mxu0 0
        %1512 = vmatpush1.bf16.msra.mxu0 0
        %1513 = vmatprep.subr.bf16.mxu0 0
        %1514 = vmatpush1.bf16.msra.mxu0 0
        %1515 = vmatprep.subr.bf16.mxu0 0
        %1516 = vmatpush1.bf16.msra.mxu0 0
        %1517 = vmatprep.subr.bf16.mxu0 0
        %1518 = vmatpush1.bf16.msra.mxu0 0
        %1519 = vmatprep.subr.bf16.mxu0 0
        %1520 = vmatpush1.bf16.msra.mxu0 0
        %1521 = vmatprep.subr.bf16.mxu0 0
        %1522 = vmatpush1.bf16.msra.mxu0 0
        %1523 = vmatprep.subr.bf16.mxu0 0
        %1524 = vmatpush1.bf16.msra.mxu0 0
        %1525 = vmatprep.subr.bf16.mxu0 0
        %1526 = vmatpush1.bf16.msra.mxu0 0
        %1527 = vmatprep.subr.bf16.mxu0 0
        %1528 = vmatpush1.bf16.msra.mxu0 0
        %1529 = vmatprep.subr.bf16.mxu0 0
        %1530 = vmatpush1.bf16.msra.mxu0 0
        %1531 = vmatprep.subr.bf16.mxu0 0
        %1532 = vmatpush1.bf16.msra.mxu0 0
        %1533 = vmatprep.subr.bf16.mxu0 0
        %1534 = vmatpush1.bf16.msra.mxu0 0
        %1535 = vmatprep.subr.bf16.mxu0 0
        %1536 = vmatpush1.bf16.msra.mxu0 0
        %1537 = vmatprep.subr.bf16.mxu0 0
        %1538 = vmatpush1.bf16.msra.mxu0 0
        %1539 = vmatprep.mubr.bf16.mxu0 0
        %1540 = vmatmul.mubr.bf16.gmra.mrb[0].mxu0 %v1490
        %v1541 = vpop.f32.mrb[0].mxu0
        %v1542 = vadd.f32 0.0, %v1541
        %v1543 = vpop.f32.mrb[0].mxu0
        %v1544 = vadd.f32 0.0, %v1543
        %v1545 = vpop.f32.mrb[0].mxu0
        %v1546 = vadd.f32 0.0, %v1545
        %v1547 = vpop.f32.mrb[0].mxu0
        %v1548 = vadd.f32 0.0, %v1547
        %1549 = vmatprep.mubr.bf16.mxu0 0
        %1550 = vmatmul.mubr.bf16.gmra.mrb[0].mxu0 %v1493
        %v1551 = vpop.f32.mrb[0].mxu0
        %v1552 = vadd.f32 0.0, %v1551
        %v1553 = vpop.f32.mrb[0].mxu0
        %v1554 = vadd.f32 0.0, %v1553
        %v1555 = vpop.f32.mrb[0].mxu0
        %v1556 = vadd.f32 0.0, %v1555
        %v1557 = vpop.f32.mrb[0].mxu0
        %v1558 = vadd.f32 0.0, %v1557
        %1559 = vmatprep.mubr.bf16.mxu0 0
        %1560 = vmatmul.mubr.bf16.gmra.mrb[0].mxu0 %v1496
        %v1561 = vpop.f32.mrb[0].mxu0
        %v1562 = vadd.f32 0.0, %v1561
        %v1563 = vpop.f32.mrb[0].mxu0
        %v1564 = vadd.f32 0.0, %v1563
        %v1565 = vpop.f32.mrb[0].mxu0
        %v1566 = vadd.f32 0.0, %v1565
        %v1567 = vpop.f32.mrb[0].mxu0
        %v1568 = vadd.f32 0.0, %v1567
        %1569 = vmatprep.mubr.bf16.mxu0 0
        %1570 = vmatmul.mubr.bf16.gmra.mrb[0].mxu0 %v1499
        %v1571 = vpop.f32.mrb[0].mxu0
        %v1572 = vadd.f32 0.0, %v1571
        %v1573 = vpop.f32.mrb[0].mxu0
        %v1574 = vadd.f32 0.0, %v1573
        %v1575 = vpop.f32.mrb[0].mxu0
        %v1576 = vadd.f32 0.0, %v1575
        %v1577 = vpop.f32.mrb[0].mxu0
        %v1578 = vadd.f32 0.0, %v1577
        %1579 = vdwg.mxu0
        %v1580 = vadd.f32 %v1420, %v1542
        %v1581 = vadd.f32 %v1421, %v1544
        %v1582 = vadd.f32 %v1422, %v1546
        %v1583 = vadd.f32 %v1423, %v1548
        %v1584 = vadd.f32 %v1424, %v1552
        %v1585 = vadd.f32 %v1425, %v1554
        %v1586 = vadd.f32 %v1426, %v1556
        %v1587 = vadd.f32 %v1427, %v1558
        %v1588 = vadd.f32 %v1428, %v1562
        %v1589 = vadd.f32 %v1429, %v1564
        %v1590 = vadd.f32 %v1430, %v1566
        %v1591 = vadd.f32 %v1431, %v1568
        %v1592 = vadd.f32 %v1432, %v1572
        %v1593 = vadd.f32 %v1433, %v1574
        %v1594 = vadd.f32 %v1434, %v1576
        %v1595 = vadd.f32 %v1435, %v1578
        %s1596 = scalar_lea.vmem %s2, 192
        %v1597 = vld [vmem:[%s1596] sm:$0xff]
        %v1598 = vld [vmem:[%s1596 + $0x8] sm:$0xff]
        %v1599 = vld [vmem:[%s1596 + $0x10] sm:$0x11]
        %v1600 = vpack.c.b16 %v435, %v434
        %v1601 = vpack.c.b16 %v437, %v436
        %v1602 = vpack.c.b16 %v439, %v438
        %v1603 = vpack.c.b16 %v1442, %v440
        %v1607 = vunpack.c.l.b16 %v1597
        %v1608 = vunpack.c.h.b16 %v1597
        %v1609 = vunpack.c.l.b16 %v1598
        %v1610 = vunpack.c.h.b16 %v1598
        %v1611 = vunpack.c.l.b16 %v1599
        %v1612 = vunpack.c.h.b16 %v1599
        %v1613 = vpack.c.b16 %v1609, %v1607
        %v1614 = vpack.c.b16 %v1610, %v1608
        %v1615 = vpack.c.b16 %v1611, %v1611
        %v1616 = vpack.c.b16 %v1612, %v1612
        %v1620 = vsel %vm499, %v1600, 0
        %v1623 = vsel %vm499, %v1601, 0
        %v1626 = vsel %vm499, %v1602, 0
        %v1629 = vsel %vm499, %v1603, 0
        %v1632 = vand.u32 %v1615, %v514
        %v1635 = vand.u32 %v1616, %v514
        %1637 = vmatprep.subr.bf16.mxu0 %v1614
        %1638 = vmatpush1.bf16.msra.mxu0 %v1613
        %1639 = vmatprep.subr.bf16.mxu0 %v1635
        %1640 = vmatpush1.bf16.msra.mxu0 %v1632
        %1641 = vmatprep.subr.bf16.mxu0 0
        %1642 = vmatpush1.bf16.msra.mxu0 0
        %1643 = vmatprep.subr.bf16.mxu0 0
        %1644 = vmatpush1.bf16.msra.mxu0 0
        %1645 = vmatprep.subr.bf16.mxu0 0
        %1646 = vmatpush1.bf16.msra.mxu0 0
        %1647 = vmatprep.subr.bf16.mxu0 0
        %1648 = vmatpush1.bf16.msra.mxu0 0
        %1649 = vmatprep.subr.bf16.mxu0 0
        %1650 = vmatpush1.bf16.msra.mxu0 0
        %1651 = vmatprep.subr.bf16.mxu0 0
        %1652 = vmatpush1.bf16.msra.mxu0 0
        %1653 = vmatprep.subr.bf16.mxu0 0
        %1654 = vmatpush1.bf16.msra.mxu0 0
        %1655 = vmatprep.subr.bf16.mxu0 0
        %1656 = vmatpush1.bf16.msra.mxu0 0
        %1657 = vmatprep.subr.bf16.mxu0 0
        %1658 = vmatpush1.bf16.msra.mxu0 0
        %1659 = vmatprep.subr.bf16.mxu0 0
        %1660 = vmatpush1.bf16.msra.mxu0 0
        %1661 = vmatprep.subr.bf16.mxu0 0
        %1662 = vmatpush1.bf16.msra.mxu0 0
        %1663 = vmatprep.subr.bf16.mxu0 0
        %1664 = vmatpush1.bf16.msra.mxu0 0
        %1665 = vmatprep.subr.bf16.mxu0 0
        %1666 = vmatpush1.bf16.msra.mxu0 0
        %1667 = vmatprep.subr.bf16.mxu0 0
        %1668 = vmatpush1.bf16.msra.mxu0 0
        %1669 = vmatprep.mubr.bf16.mxu0 0
        %1670 = vmatmul.mubr.bf16.gmra.mrb[0].mxu0 %v1620
        %v1671 = vpop.f32.mrb[0].mxu0
        %v1672 = vadd.f32 0.0, %v1671
        %v1673 = vpop.f32.mrb[0].mxu0
        %v1674 = vadd.f32 0.0, %v1673
        %v1675 = vpop.f32.mrb[0].mxu0
        %v1676 = vadd.f32 0.0, %v1675
        %v1677 = vpop.f32.mrb[0].mxu0
        %v1678 = vadd.f32 0.0, %v1677
        %1679 = vmatprep.mubr.bf16.mxu0 0
        %1680 = vmatmul.mubr.bf16.gmra.mrb[0].mxu0 %v1623
        %v1681 = vpop.f32.mrb[0].mxu0
        %v1682 = vadd.f32 0.0, %v1681
        %v1683 = vpop.f32.mrb[0].mxu0
        %v1684 = vadd.f32 0.0, %v1683
        %v1685 = vpop.f32.mrb[0].mxu0
        %v1686 = vadd.f32 0.0, %v1685
        %v1687 = vpop.f32.mrb[0].mxu0
        %v1688 = vadd.f32 0.0, %v1687
        %1689 = vmatprep.mubr.bf16.mxu0 0
        %1690 = vmatmul.mubr.bf16.gmra.mrb[0].mxu0 %v1626
        %v1691 = vpop.f32.mrb[0].mxu0
        %v1692 = vadd.f32 0.0, %v1691
        %v1693 = vpop.f32.mrb[0].mxu0
        %v1694 = vadd.f32 0.0, %v1693
        %v1695 = vpop.f32.mrb[0].mxu0
        %v1696 = vadd.f32 0.0, %v1695
        %v1697 = vpop.f32.mrb[0].mxu0
        %v1698 = vadd.f32 0.0, %v1697
        %1699 = vmatprep.mubr.bf16.mxu0 0
        %1700 = vmatmul.mubr.bf16.gmra.mrb[0].mxu0 %v1629
        %v1701 = vpop.f32.mrb[0].mxu0
        %v1702 = vadd.f32 0.0, %v1701
        %v1703 = vpop.f32.mrb[0].mxu0
        %v1704 = vadd.f32 0.0, %v1703
        %v1705 = vpop.f32.mrb[0].mxu0
        %v1706 = vadd.f32 0.0, %v1705
        %v1707 = vpop.f32.mrb[0].mxu0
        %v1708 = vadd.f32 0.0, %v1707
        %1709 = vdwg.mxu0
        %v1710 = vadd.f32 %v1580, %v1672
        %v1711 = vadd.f32 %v1581, %v1674
        %v1712 = vadd.f32 %v1582, %v1676
        %v1713 = vadd.f32 %v1583, %v1678
        %v1714 = vadd.f32 %v1584, %v1682
        %v1715 = vadd.f32 %v1585, %v1684
        %v1716 = vadd.f32 %v1586, %v1686
        %v1717 = vadd.f32 %v1587, %v1688
        %v1718 = vadd.f32 %v1588, %v1692
        %v1719 = vadd.f32 %v1589, %v1694
        %v1720 = vadd.f32 %v1590, %v1696
        %v1721 = vadd.f32 %v1591, %v1698
        %v1722 = vadd.f32 %v1592, %v1702
        %v1723 = vadd.f32 %v1593, %v1704
        %v1724 = vadd.f32 %v1594, %v1706
        %v1725 = vadd.f32 %v1595, %v1708
        %v1726 = vld [vmem:[%s3] sm:$0x3]
        %v1728 = vlaneseq
        %v1729 = vshrl.u32 %v1728, 7
        %v1730 = vsub.s32 0, %v1729
        %v1731 = vrot.slane %v1726, %v1730
        %v1732 = vlaneseq
        %v1733 = vshrl.u32 %v1732, 7
        %v1734 = vsub.s32 1, %v1733
        %v1735 = vrot.slane %v1726, %v1734
        %v1738 = vadd.f32 %v1710, %v1731
        %v1739 = vadd.f32 %v1711, %v1735
        %v1740 = vadd.f32 %v1712, %v1731
        %v1741 = vadd.f32 %v1713, %v1735
        %v1742 = vadd.f32 %v1714, %v1731
        %v1743 = vadd.f32 %v1715, %v1735
        %v1744 = vadd.f32 %v1716, %v1731
        %v1745 = vadd.f32 %v1717, %v1735
        %v1746 = vadd.f32 %v1718, %v1731
        %v1747 = vadd.f32 %v1719, %v1735
        %v1748 = vadd.f32 %v1720, %v1731
        %v1749 = vadd.f32 %v1721, %v1735
        %v1750 = vadd.f32 %v1722, %v1731
        %v1751 = vadd.f32 %v1723, %v1735
        %v1752 = vadd.f32 %v1724, %v1731
        %v1753 = vadd.f32 %v1725, %v1735
        %v1754 = vmax.f32 %v1738, 0.0
        %v1755 = vmax.f32 %v1739, 0.0
        %v1756 = vmax.f32 %v1740, 0.0
        %v1757 = vmax.f32 %v1741, 0.0
        %v1758 = vmax.f32 %v1742, 0.0
        %v1759 = vmax.f32 %v1743, 0.0
        %v1760 = vmax.f32 %v1744, 0.0
        %v1761 = vmax.f32 %v1745, 0.0
        %v1762 = vmax.f32 %v1746, 0.0
        %v1763 = vmax.f32 %v1747, 0.0
        %v1764 = vmax.f32 %v1748, 0.0
        %v1765 = vmax.f32 %v1749, 0.0
        %v1766 = vmax.f32 %v1750, 0.0
        %v1767 = vmax.f32 %v1751, 0.0
        %v1768 = vmax.f32 %v1752, 0.0
        %v1769 = vmax.f32 %v1753, 0.0
        %v1770 = vpack.c.bf16 %v1756, %v1754
        %v1771 = vpack.c.bf16 %v1757, %v1755
        %v1772 = vpack.c.bf16 %v1760, %v1758
        %v1773 = vpack.c.bf16 %v1761, %v1759
        %v1774 = vpack.c.bf16 %v1764, %v1762
        %v1775 = vpack.c.bf16 %v1765, %v1763
        %v1776 = vpack.c.bf16 %v1768, %v1766
        %v1777 = vpack.c.bf16 %v1769, %v1767
        %1778 = vst [vmem:[#allocation3] sm:$0x33] 0
        %1779 = vst [vmem:[#allocation3 + $0x40] sm:$0xcc] 0
        %v1788 = vunpack.c.l.b16 %v1770
        %v1789 = vunpack.c.l.b16 %v1771
        %v1790 = vunpack.c.h.b16 %v1770
        %v1791 = vunpack.c.h.b16 %v1771
        %v1792 = vunpack.c.l.b16 %v1772
        %v1793 = vunpack.c.l.b16 %v1773
        %v1794 = vunpack.c.h.b16 %v1772
        %v1795 = vunpack.c.h.b16 %v1773
        %v1796 = vunpack.c.l.b16 %v1774
        %v1797 = vunpack.c.l.b16 %v1775
        %v1798 = vunpack.c.h.b16 %v1774
        %v1799 = vunpack.c.h.b16 %v1775
        %v1800 = vunpack.c.l.b16 %v1776
        %v1801 = vunpack.c.l.b16 %v1777
        %v1802 = vunpack.c.h.b16 %v1776
        %v1803 = vunpack.c.h.b16 %v1777
        %v1804 = vpack.c.b16 %v1789, %v1788
        %v1805 = vpack.c.b16 %v1791, %v1790
        %v1806 = vpack.c.b16 %v1793, %v1792
        %v1807 = vpack.c.b16 %v1795, %v1794
        %v1808 = vpack.c.b16 %v1797, %v1796
        %v1809 = vpack.c.b16 %v1799, %v1798
        %v1810 = vpack.c.b16 %v1801, %v1800
        %v1811 = vpack.c.b16 %v1803, %v1802
        %v1812 = vrot.slane %v1804, 6
        %v1813 = vrot.slane %v1812, 4
        %v1814 = vrot.slane %v1805, 6
        %v1815 = vsel %vm365, %v1813, %v1814
        %v1816 = vrot.slane %v1814, 4
        %v1817 = vrot.slane %v1806, 6
        %v1818 = vsel %vm365, %v1816, %v1817
        %v1819 = vrot.slane %v1817, 4
        %v1820 = vrot.slane %v1807, 6
        %v1821 = vsel %vm365, %v1819, %v1820
        %v1822 = vrot.slane %v1820, 4
        %v1823 = vrot.slane %v1808, 6
        %v1824 = vsel %vm365, %v1822, %v1823
        %v1825 = vrot.slane %v1823, 4
        %v1826 = vrot.slane %v1809, 6
        %v1827 = vsel %vm365, %v1825, %v1826
        %v1828 = vrot.slane %v1826, 4
        %v1829 = vrot.slane %v1810, 6
        %v1830 = vsel %vm365, %v1828, %v1829
        %v1831 = vrot.slane %v1829, 4
        %v1832 = vrot.slane %v1811, 6
        %v1833 = vsel %vm365, %v1831, %v1832
        %v1834 = vrot.slane %v1832, 4
        %1844 = vst [vmem:[#allocation3] sm:$0xcc] %v1812
        %1845 = vst [vmem:[#allocation3 + $0x8] sm:$0xff] %v1815
        %1846 = vst [vmem:[#allocation3 + $0x10] sm:$0xff] %v1818
        %1847 = vst [vmem:[#allocation3 + $0x18] sm:$0xff] %v1821
        %1848 = vst [vmem:[#allocation3 + $0x20] sm:$0xff] %v1824
        %1849 = vst [vmem:[#allocation3 + $0x28] sm:$0xff] %v1827
        %1850 = vst [vmem:[#allocation3 + $0x30] sm:$0xff] %v1830
        %1851 = vst [vmem:[#allocation3 + $0x38] sm:$0xff] %v1833
        %1852 = vst [vmem:[#allocation3 + $0x40] sm:$0x33] %v1834
        %v1853 = vld [vmem:[#allocation3] sm:$0xf]
        %v1854 = vld [vmem:[#allocation3 + $0x8] sm:$0xf]
        %v1855 = vld [vmem:[#allocation3 + $0x10] sm:$0xf]
        %v1856 = vld [vmem:[#allocation3 + $0x18] sm:$0xf]
        %v1857 = vld [vmem:[#allocation3 + $0x20] sm:$0xf]
        %v1858 = vld [vmem:[#allocation3 + $0x28] sm:$0xf]
        %v1859 = vld [vmem:[#allocation3 + $0x30] sm:$0xf]
        %v1860 = vld [vmem:[#allocation3 + $0x38] sm:$0xf]
        %v1861 = vld [vmem:[#allocation3 + $0x40] sm:$0x1]
        %v1862 = vld [vmem:[#allocation3] sm:$0xe]
        %v1863 = vld [vmem:[#allocation3 + $0x40] sm:$0x3]
        %v1864 = vld [vmem:[#allocation3] sm:$0xc]
        %v1865 = vld [vmem:[#allocation3 + $0x40] sm:$0x7]
        %v1866 = vld [vmem:[#allocation3] sm:$0x8]
        %v1867 = vld [vmem:[#allocation3 + $0x40] sm:$0xf]
        %v1876 = vunpack.c.l.b16 %v1853
        %v1877 = vunpack.c.l.b16 %v1854
        %v1878 = vunpack.c.l.b16 %v1855
        %v1879 = vunpack.c.l.b16 %v1856
        %v1880 = vunpack.c.l.b16 %v1857
        %v1881 = vunpack.c.l.b16 %v1858
        %v1882 = vunpack.c.l.b16 %v1859
        %v1883 = vunpack.c.l.b16 %v1860
        %v1884 = vpack.c.b16 %v1877, %v1876
        %v1885 = vpack.c.b16 %v1879, %v1878
        %v1886 = vpack.c.b16 %v1881, %v1880
        %v1887 = vpack.c.b16 %v1883, %v1882
        %v1889 = vunpack.c.l.b16 %v1861
        %v1890 = vpack.c.b16 %v1889, %v1889
        %v1892 = vshrl.u32 %v1884, 16
        %v1894 = vshll.u32 %v1884, 16
        %v1896 = vrot.slane %v1894, 1
        %v1897 = vor.u32 %v1892, %v1896
        %v1899 = vshll.u32 %v1885, 16
        %v1901 = vrot.slane %v1899, 1
        %v1902 = vsel %vm447, %v1897, %v1901
        %v1903 = vshrl.u32 %v1885, 16
        %v1905 = vor.u32 %v1903, %v1901
        %v1907 = vshll.u32 %v1886, 16
        %v1909 = vrot.slane %v1907, 1
        %v1910 = vsel %vm447, %v1905, %v1909
        %v1911 = vshrl.u32 %v1886, 16
        %v1913 = vor.u32 %v1911, %v1909
        %v1915 = vshll.u32 %v1887, 16
        %v1917 = vrot.slane %v1915, 1
        %v1918 = vsel %vm447, %v1913, %v1917
        %v1919 = vshrl.u32 %v1887, 16
        %v1921 = vor.u32 %v1919, %v1917
        %v1923 = vshll.u32 %v1890, 16
        %v1925 = vrot.slane %v1923, 1
        %v1926 = vsel %vm447, %v1921, %v1925
        %1927 = vrot.lane.b32.xlu0 %v1902, 64
        %v1928 = vpop.permute.xlu0 %1927
        %1929 = vrot.lane.b32.xlu0 %v1910, 64
        %v1930 = vpop.permute.xlu0 %1929
        %1931 = vrot.lane.b32.xlu0 %v1918, 64
        %v1932 = vpop.permute.xlu0 %1931
        %1933 = vrot.lane.b32.xlu0 %v1926, 64
        %v1934 = vpop.permute.xlu0 %1933
        %v1936 = vunpack.c.l.b16 %v1862
        %v1937 = vpack.c.b16 %v1877, %v1936
        %v1938 = vrot.slane %v1937, 1
        %v1939 = vrot.slane %v1885, 1
        %v1940 = vsel %vm704, %v1938, %v1939
        %v1941 = vrot.slane %v1886, 1
        %v1942 = vsel %vm704, %v1939, %v1941
        %v1943 = vrot.slane %v1887, 1
        %v1944 = vsel %vm704, %v1941, %v1943
        %v1945 = vrot.slane %v1890, 1
        %v1946 = vsel %vm704, %v1943, %v1945
        %v1948 = vunpack.c.l.b16 %v1863
        %v1949 = vpack.c.b16 %v1948, %v1948
        %v1951 = vshrl.u32 %v1937, 16
        %v1953 = vrot.slane %v1951, 1
        %v1954 = vshll.u32 %v1937, 16
        %v1956 = vrot.slane %v1954, 2
        %v1957 = vor.u32 %v1953, %v1956
        %v1958 = vrot.slane %v1903, 1
        %v1959 = vrot.slane %v1899, 2
        %v1960 = vor.u32 %v1958, %v1959
        %v1961 = vsel %vm844, %v1957, %v1960
        %v1962 = vrot.slane %v1911, 1
        %v1963 = vrot.slane %v1907, 2
        %v1964 = vor.u32 %v1962, %v1963
        %v1965 = vsel %vm844, %v1960, %v1964
        %v1966 = vrot.slane %v1919, 1
        %v1967 = vrot.slane %v1915, 2
        %v1968 = vor.u32 %v1966, %v1967
        %v1969 = vsel %vm844, %v1964, %v1968
        %v1971 = vshrl.u32 %v1949, 16
        %v1973 = vrot.slane %v1971, 1
        %v1974 = vshll.u32 %v1949, 16
        %v1976 = vrot.slane %v1974, 2
        %v1977 = vor.u32 %v1973, %v1976
        %v1978 = vsel %vm844, %v1968, %v1977
        %1979 = vrot.lane.b32.xlu0 %v1961, 64
        %v1980 = vpop.permute.xlu0 %1979
        %1981 = vrot.lane.b32.xlu0 %v1965, 64
        %v1982 = vpop.permute.xlu0 %1981
        %1983 = vrot.lane.b32.xlu0 %v1969, 64
        %v1984 = vpop.permute.xlu0 %1983
        %1985 = vrot.lane.b32.xlu0 %v1978, 64
        %v1986 = vpop.permute.xlu0 %1985
        %v1988 = vunpack.c.l.b16 %v1864
        %v1989 = vpack.c.b16 %v1877, %v1988
        %v1990 = vrot.slane %v1989, 2
        %v1991 = vrot.slane %v1885, 2
        %v1992 = vsel %vm1004, %v1990, %v1991
        %v1993 = vrot.slane %v1886, 2
        %v1994 = vsel %vm1004, %v1991, %v1993
        %v1995 = vrot.slane %v1887, 2
        %v1996 = vsel %vm1004, %v1993, %v1995
        %v1997 = vrot.slane %v1949, 2
        %v1998 = vsel %vm1004, %v1995, %v1997
        %v2000 = vunpack.c.l.b16 %v1865
        %v2001 = vpack.c.b16 %v2000, %v2000
        %v2003 = vshrl.u32 %v1989, 16
        %v2005 = vrot.slane %v2003, 2
        %v2006 = vshll.u32 %v1989, 16
        %v2008 = vrot.slane %v2006, 3
        %v2009 = vor.u32 %v2005, %v2008
        %v2010 = vrot.slane %v1903, 2
        %v2011 = vrot.slane %v1899, 3
        %v2012 = vor.u32 %v2010, %v2011
        %v2013 = vsel %vm1144, %v2009, %v2012
        %v2014 = vrot.slane %v1911, 2
        %v2015 = vrot.slane %v1907, 3
        %v2016 = vor.u32 %v2014, %v2015
        %v2017 = vsel %vm1144, %v2012, %v2016
        %v2018 = vrot.slane %v1919, 2
        %v2019 = vrot.slane %v1915, 3
        %v2020 = vor.u32 %v2018, %v2019
        %v2021 = vsel %vm1144, %v2016, %v2020
        %v2023 = vshrl.u32 %v2001, 16
        %v2025 = vrot.slane %v2023, 2
        %v2026 = vshll.u32 %v2001, 16
        %v2028 = vrot.slane %v2026, 3
        %v2029 = vor.u32 %v2025, %v2028
        %v2030 = vsel %vm1144, %v2020, %v2029
        %2031 = vrot.lane.b32.xlu0 %v2013, 64
        %v2032 = vpop.permute.xlu0 %2031
        %2033 = vrot.lane.b32.xlu0 %v2017, 64
        %v2034 = vpop.permute.xlu0 %2033
        %2035 = vrot.lane.b32.xlu0 %v2021, 64
        %v2036 = vpop.permute.xlu0 %2035
        %2037 = vrot.lane.b32.xlu0 %v2030, 64
        %v2038 = vpop.permute.xlu0 %2037
        %v2040 = vunpack.c.l.b16 %v1866
        %v2041 = vpack.c.b16 %v1877, %v2040
        %v2042 = vrot.slane %v2041, 3
        %v2043 = vrot.slane %v1885, 3
        %v2044 = vsel %vm1304, %v2042, %v2043
        %v2045 = vrot.slane %v1886, 3
        %v2046 = vsel %vm1304, %v2043, %v2045
        %v2047 = vrot.slane %v1887, 3
        %v2048 = vsel %vm1304, %v2045, %v2047
        %v2049 = vrot.slane %v2001, 3
        %v2050 = vsel %vm1304, %v2047, %v2049
        %v2052 = vunpack.c.l.b16 %v1867
        %v2053 = vpack.c.b16 %v2052, %v2052
        %v2055 = vshrl.u32 %v2041, 16
        %v2057 = vrot.slane %v2055, 3
        %v2058 = vshll.u32 %v2041, 16
        %v2060 = vrot.slane %v2058, 4
        %v2061 = vor.u32 %v2057, %v2060
        %v2062 = vrot.slane %v1903, 3
        %v2063 = vrot.slane %v1899, 4
        %v2064 = vor.u32 %v2062, %v2063
        %v2065 = vsel %vm1444, %v2061, %v2064
        %v2066 = vrot.slane %v1911, 3
        %v2067 = vrot.slane %v1907, 4
        %v2068 = vor.u32 %v2066, %v2067
        %v2069 = vsel %vm1444, %v2064, %v2068
        %v2070 = vrot.slane %v1919, 3
        %v2071 = vrot.slane %v1915, 4
        %v2072 = vor.u32 %v2070, %v2071
        %v2073 = vsel %vm1444, %v2068, %v2072
        %v2075 = vshrl.u32 %v2053, 16
        %v2077 = vrot.slane %v2075, 3
        %v2078 = vshll.u32 %v2053, 16
        %v2080 = vrot.slane %v2078, 4
        %v2081 = vor.u32 %v2077, %v2080
        %v2082 = vsel %vm1444, %v2072, %v2081
        %2083 = vrot.lane.b32.xlu0 %v2065, 64
        %v2084 = vpop.permute.xlu0 %2083
        %2085 = vrot.lane.b32.xlu0 %v2069, 64
        %v2086 = vpop.permute.xlu0 %2085
        %2087 = vrot.lane.b32.xlu0 %v2073, 64
        %v2088 = vpop.permute.xlu0 %2087
        %2089 = vrot.lane.b32.xlu0 %v2082, 64
        %v2090 = vpop.permute.xlu0 %2089
        %v2091 = vpack.c.b16 %v1878, %v1877
        %v2092 = vpack.c.b16 %v1880, %v1879
        %v2093 = vpack.c.b16 %v1882, %v1881
        %v2094 = vpack.c.b16 %v2052, %v1883
        %vm2095 = vcmask 523264
        %v2097 = vsel %vm2095, %v1884, %v1928
        %v2100 = vsel %vm2095, %v1885, %v1930
        %v2103 = vsel %vm2095, %v1886, %v1932
        %v2106 = vsel %vm2095, %v1887, %v1934
        %v2110 = vsel %vm2095, %v1940, %v1980
        %v2114 = vsel %vm2095, %v1942, %v1982
        %v2118 = vsel %vm2095, %v1944, %v1984
        %v2122 = vsel %vm2095, %v1946, %v1986
        %v2126 = vsel %vm2095, %v1992, %v2032
        %v2130 = vsel %vm2095, %v1994, %v2034
        %v2134 = vsel %vm2095, %v1996, %v2036
        %v2138 = vsel %vm2095, %v1998, %v2038
        %v2142 = vsel %vm2095, %v2044, %v2084
        %v2146 = vsel %vm2095, %v2046, %v2086
        %v2150 = vsel %vm2095, %v2048, %v2088
        %v2154 = vsel %vm2095, %v2050, %v2090
        %v2156 = vld [vmem:[%s4] sm:$0xf]
        %v2157 = vld [vmem:[%s4 + $0x4] sm:$0xf]
        %v2158 = vld [vmem:[%s4 + $0x8] sm:$0xf]
        %v2159 = vld [vmem:[%s4 + $0xc] sm:$0xf]
        %v2160 = vld [vmem:[%s4 + $0x10] sm:$0xf]
        %v2161 = vld [vmem:[%s4 + $0x14] sm:$0xf]
        %v2162 = vld [vmem:[%s4 + $0x18] sm:$0xf]
        %v2163 = vld [vmem:[%s4 + $0x1c] sm:$0xf]
        %v2164 = vld [vmem:[%s4 + $0x20] sm:$0xf]
        %v2165 = vld [vmem:[%s4 + $0x24] sm:$0xf]
        %v2166 = vld [vmem:[%s4 + $0x28] sm:$0xf]
        %v2167 = vld [vmem:[%s4 + $0x2c] sm:$0xf]
        %v2168 = vld [vmem:[%s4 + $0x30] sm:$0xf]
        %v2169 = vld [vmem:[%s4 + $0x34] sm:$0xf]
        %v2170 = vld [vmem:[%s4 + $0x38] sm:$0xf]
        %v2171 = vld [vmem:[%s4 + $0x3c] sm:$0xf]
        %v2172 = vld [vmem:[%s4 + $0x40] sm:$0xf]
        %v2173 = vld [vmem:[%s4 + $0x44] sm:$0xf]
        %v2174 = vld [vmem:[%s4 + $0x48] sm:$0xf]
        %v2175 = vld [vmem:[%s4 + $0x4c] sm:$0xf]
        %v2176 = vld [vmem:[%s4 + $0x50] sm:$0xf]
        %v2177 = vld [vmem:[%s4 + $0x54] sm:$0xf]
        %v2178 = vld [vmem:[%s4 + $0x58] sm:$0xf]
        %v2179 = vld [vmem:[%s4 + $0x5c] sm:$0xf]
        %v2180 = vld [vmem:[%s4 + $0x60] sm:$0xf]
        %v2181 = vld [vmem:[%s4 + $0x64] sm:$0xf]
        %v2182 = vld [vmem:[%s4 + $0x68] sm:$0xf]
        %v2183 = vld [vmem:[%s4 + $0x6c] sm:$0xf]
        %v2184 = vld [vmem:[%s4 + $0x70] sm:$0xf]
        %v2185 = vld [vmem:[%s4 + $0x74] sm:$0xf]
        %v2186 = vld [vmem:[%s4 + $0x78] sm:$0xf]
        %v2187 = vld [vmem:[%s4 + $0x7c] sm:$0xf]
        %v2188 = vld [vmem:[%s4 + $0x80] sm:$0xf]
        %v2189 = vld [vmem:[%s4 + $0x84] sm:$0xf]
        %v2190 = vld [vmem:[%s4 + $0x88] sm:$0xf]
        %v2191 = vld [vmem:[%s4 + $0x8c] sm:$0xf]
        %v2192 = vld [vmem:[%s4 + $0x90] sm:$0xf]
        %v2193 = vld [vmem:[%s4 + $0x94] sm:$0xf]
        %v2194 = vld [vmem:[%s4 + $0x98] sm:$0xf]
        %v2195 = vld [vmem:[%s4 + $0x9c] sm:$0xf]
        %v2196 = vld [vmem:[%s4 + $0xa0] sm:$0xf]
        %v2197 = vld [vmem:[%s4 + $0xa4] sm:$0xf]
        %v2198 = vld [vmem:[%s4 + $0xa8] sm:$0xf]
        %v2199 = vld [vmem:[%s4 + $0xac] sm:$0xf]
        %v2200 = vld [vmem:[%s4 + $0xb0] sm:$0xf]
        %v2201 = vld [vmem:[%s4 + $0xb4] sm:$0xf]
        %v2202 = vld [vmem:[%s4 + $0xb8] sm:$0xf]
        %v2203 = vld [vmem:[%s4 + $0xbc] sm:$0xf]
        %v2204 = vld [vmem:[%s4 + $0xc0] sm:$0xf]
        %v2205 = vld [vmem:[%s4 + $0xc4] sm:$0xf]
        %v2206 = vld [vmem:[%s4 + $0xc8] sm:$0xf]
        %v2207 = vld [vmem:[%s4 + $0xcc] sm:$0xf]
        %v2208 = vld [vmem:[%s4 + $0xd0] sm:$0xf]
        %v2209 = vld [vmem:[%s4 + $0xd4] sm:$0xf]
        %v2210 = vld [vmem:[%s4 + $0xd8] sm:$0xf]
        %v2211 = vld [vmem:[%s4 + $0xdc] sm:$0xf]
        %v2212 = vld [vmem:[%s4 + $0xe0] sm:$0xf]
        %v2213 = vld [vmem:[%s4 + $0xe4] sm:$0xf]
        %v2214 = vld [vmem:[%s4 + $0xe8] sm:$0xf]
        %v2215 = vld [vmem:[%s4 + $0xec] sm:$0xf]
        %v2216 = vld [vmem:[%s4 + $0xf0] sm:$0xf]
        %v2217 = vld [vmem:[%s4 + $0xf4] sm:$0xf]
        %v2218 = vld [vmem:[%s4 + $0xf8] sm:$0xf]
        %v2219 = vld [vmem:[%s4 + $0xfc] sm:$0xf]
        %v2220 = vld [vmem:[%s4 + $0x100] sm:$0xf]
        %v2221 = vld [vmem:[%s4 + $0x104] sm:$0xf]
        %v2222 = vld [vmem:[%s4 + $0x108] sm:$0xf]
        %v2223 = vld [vmem:[%s4 + $0x10c] sm:$0xf]
        %v2224 = vld [vmem:[%s4 + $0x110] sm:$0xf]
        %v2225 = vld [vmem:[%s4 + $0x114] sm:$0xf]
        %v2226 = vld [vmem:[%s4 + $0x118] sm:$0xf]
        %v2227 = vld [vmem:[%s4 + $0x11c] sm:$0xf]
        %v2228 = vld [vmem:[%s5] sm:$0x1]
        %v2230 = vlaneseq
        %v2231 = vshrl.u32 %v2230, 7
        %v2232 = vsub.s32 0, %v2231
        %v2233 = vrot.slane %v2228, %v2232
        %v2307 = vunpack.c.l.b16 %v2156
        %v2308 = vunpack.c.l.b16 %v2157
        %v2309 = vunpack.c.l.b16 %v2158
        %v2310 = vunpack.c.l.b16 %v2159
        %v2311 = vunpack.c.l.b16 %v2160
        %v2312 = vunpack.c.l.b16 %v2161
        %v2313 = vunpack.c.l.b16 %v2162
        %v2314 = vunpack.c.l.b16 %v2163
        %v2315 = vunpack.c.l.b16 %v2164
        %v2316 = vunpack.c.l.b16 %v2165
        %v2317 = vunpack.c.l.b16 %v2166
        %v2318 = vunpack.c.l.b16 %v2167
        %v2319 = vunpack.c.l.b16 %v2168
        %v2320 = vunpack.c.l.b16 %v2169
        %v2321 = vunpack.c.l.b16 %v2170
        %v2322 = vunpack.c.l.b16 %v2171
        %v2323 = vunpack.c.l.b16 %v2172
        %v2324 = vunpack.c.l.b16 %v2173
        %v2325 = vunpack.c.l.b16 %v2174
        %v2326 = vunpack.c.l.b16 %v2175
        %v2327 = vunpack.c.l.b16 %v2176
        %v2328 = vunpack.c.l.b16 %v2177
        %v2329 = vunpack.c.l.b16 %v2178
        %v2330 = vunpack.c.l.b16 %v2179
        %v2331 = vunpack.c.l.b16 %v2180
        %v2332 = vunpack.c.l.b16 %v2181
        %v2333 = vunpack.c.l.b16 %v2182
        %v2334 = vunpack.c.l.b16 %v2183
        %v2335 = vunpack.c.l.b16 %v2184
        %v2336 = vunpack.c.l.b16 %v2185
        %v2337 = vunpack.c.l.b16 %v2186
        %v2338 = vunpack.c.l.b16 %v2187
        %v2339 = vunpack.c.l.b16 %v2188
        %v2340 = vunpack.c.l.b16 %v2189
        %v2341 = vunpack.c.l.b16 %v2190
        %v2342 = vunpack.c.l.b16 %v2191
        %v2343 = vunpack.c.l.b16 %v2192
        %v2344 = vunpack.c.l.b16 %v2193
        %v2345 = vunpack.c.l.b16 %v2194
        %v2346 = vunpack.c.l.b16 %v2195
        %v2347 = vunpack.c.l.b16 %v2196
        %v2348 = vunpack.c.l.b16 %v2197
        %v2349 = vunpack.c.l.b16 %v2198
        %v2350 = vunpack.c.l.b16 %v2199
        %v2351 = vunpack.c.l.b16 %v2200
        %v2352 = vunpack.c.l.b16 %v2201
        %v2353 = vunpack.c.l.b16 %v2202
        %v2354 = vunpack.c.l.b16 %v2203
        %v2355 = vunpack.c.l.b16 %v2204
        %v2356 = vunpack.c.l.b16 %v2205
        %v2357 = vunpack.c.l.b16 %v2206
        %v2358 = vunpack.c.l.b16 %v2207
        %v2359 = vunpack.c.l.b16 %v2208
        %v2360 = vunpack.c.l.b16 %v2209
        %v2361 = vunpack.c.l.b16 %v2210
        %v2362 = vunpack.c.l.b16 %v2211
        %v2363 = vunpack.c.l.b16 %v2212
        %v2364 = vunpack.c.l.b16 %v2213
        %v2365 = vunpack.c.l.b16 %v2214
        %v2366 = vunpack.c.l.b16 %v2215
        %v2367 = vunpack.c.l.b16 %v2216
        %v2368 = vunpack.c.l.b16 %v2217
        %v2369 = vunpack.c.l.b16 %v2218
        %v2370 = vunpack.c.l.b16 %v2219
        %v2371 = vunpack.c.l.b16 %v2220
        %v2372 = vunpack.c.l.b16 %v2221
        %v2373 = vunpack.c.l.b16 %v2222
        %v2374 = vunpack.c.l.b16 %v2223
        %v2375 = vunpack.c.l.b16 %v2224
        %v2376 = vunpack.c.l.b16 %v2225
        %v2377 = vunpack.c.l.b16 %v2226
        %v2378 = vunpack.c.l.b16 %v2227
        %v2379 = vpack.c.b16 %v2308, %v2307
        %v2380 = vpack.c.b16 %v2310, %v2309
        %v2381 = vpack.c.b16 %v2312, %v2311
        %v2382 = vpack.c.b16 %v2314, %v2313
        %v2383 = vpack.c.b16 %v2316, %v2315
        %v2384 = vpack.c.b16 %v2318, %v2317
        %v2385 = vpack.c.b16 %v2320, %v2319
        %v2386 = vpack.c.b16 %v2322, %v2321
        %v2387 = vpack.c.b16 %v2324, %v2323
        %v2388 = vpack.c.b16 %v2326, %v2325
        %v2389 = vpack.c.b16 %v2328, %v2327
        %v2390 = vpack.c.b16 %v2330, %v2329
        %v2391 = vpack.c.b16 %v2332, %v2331
        %v2392 = vpack.c.b16 %v2334, %v2333
        %v2393 = vpack.c.b16 %v2336, %v2335
        %v2394 = vpack.c.b16 %v2338, %v2337
        %v2395 = vpack.c.b16 %v2340, %v2339
        %v2396 = vpack.c.b16 %v2342, %v2341
        %v2397 = vpack.c.b16 %v2344, %v2343
        %v2398 = vpack.c.b16 %v2346, %v2345
        %v2399 = vpack.c.b16 %v2348, %v2347
        %v2400 = vpack.c.b16 %v2350, %v2349
        %v2401 = vpack.c.b16 %v2352, %v2351
        %v2402 = vpack.c.b16 %v2354, %v2353
        %v2403 = vpack.c.b16 %v2356, %v2355
        %v2404 = vpack.c.b16 %v2358, %v2357
        %v2405 = vpack.c.b16 %v2360, %v2359
        %v2406 = vpack.c.b16 %v2362, %v2361
        %v2407 = vpack.c.b16 %v2364, %v2363
        %v2408 = vpack.c.b16 %v2366, %v2365
        %v2409 = vpack.c.b16 %v2368, %v2367
        %v2410 = vpack.c.b16 %v2370, %v2369
        %v2411 = vpack.c.b16 %v2372, %v2371
        %v2412 = vpack.c.b16 %v2374, %v2373
        %v2413 = vpack.c.b16 %v2376, %v2375
        %v2414 = vpack.c.b16 %v2378, %v2377
        %v2452 = vsel %vm2095, %v2091, 0
        %v2455 = vsel %vm2095, %v2092, 0
        %v2458 = vsel %vm2095, %v2093, 0
        %v2461 = vsel %vm2095, %v2094, 0
        %2463 = vmatprep.subr.bf16.mxu0 0
        %2464 = vmatpush1.bf16.msra.mxu0 %v2379
        %2465 = vmatprep.subr.bf16.mxu0 0
        %2466 = vmatpush1.bf16.msra.mxu0 %v2380
        %2467 = vmatprep.subr.bf16.mxu0 0
        %2468 = vmatpush1.bf16.msra.mxu0 %v2381
        %2469 = vmatprep.subr.bf16.mxu0 0
        %2470 = vmatpush1.bf16.msra.mxu0 %v2382
        %2471 = vmatprep.subr.bf16.mxu0 0
        %2472 = vmatpush1.bf16.msra.mxu0 %v2383
        %2473 = vmatprep.subr.bf16.mxu0 0
        %2474 = vmatpush1.bf16.msra.mxu0 %v2384
        %2475 = vmatprep.subr.bf16.mxu0 0
        %2476 = vmatpush1.bf16.msra.mxu0 %v2385
        %2477 = vmatprep.subr.bf16.mxu0 0
        %2478 = vmatpush1.bf16.msra.mxu0 %v2386
        %2479 = vmatprep.subr.bf16.mxu0 0
        %2480 = vmatpush1.bf16.msra.mxu0 %v2387
        %2481 = vmatprep.subr.bf16.mxu0 0
        %2482 = vmatpush1.bf16.msra.mxu0 %v2388
        %2483 = vmatprep.subr.bf16.mxu0 0
        %2484 = vmatpush1.bf16.msra.mxu0 %v2389
        %2485 = vmatprep.subr.bf16.mxu0 0
        %2486 = vmatpush1.bf16.msra.mxu0 %v2390
        %2487 = vmatprep.subr.bf16.mxu0 0
        %2488 = vmatpush1.bf16.msra.mxu0 %v2391
        %2489 = vmatprep.subr.bf16.mxu0 0
        %2490 = vmatpush1.bf16.msra.mxu0 %v2392
        %2491 = vmatprep.subr.bf16.mxu0 0
        %2492 = vmatpush1.bf16.msra.mxu0 %v2393
        %2493 = vmatprep.subr.bf16.mxu0 0
        %2494 = vmatpush1.bf16.msra.mxu0 %v2394
        %2495 = vmatprep.mubr.bf16.mxu0 %v2110
        %2496 = vmatmul.mubr.bf16.gmra.mrb[0].mxu0 %v2097
        %v2497 = vpop.f32.mrb[0].mxu0
        %v2498 = vadd.f32 %v2233, %v2497
        %v2499 = vpop.f32.mrb[0].mxu0
        %v2500 = vpop.f32.mrb[0].mxu0
        %v2501 = vadd.f32 %v2233, %v2500
        %v2502 = vpop.f32.mrb[0].mxu0
        %2503 = vmatprep.mubr.bf16.mxu0 %v2114
        %2504 = vmatmul.mubr.bf16.gmra.mrb[0].mxu0 %v2100
        %v2505 = vpop.f32.mrb[0].mxu0
        %v2506 = vadd.f32 %v2233, %v2505
        %v2507 = vpop.f32.mrb[0].mxu0
        %v2508 = vpop.f32.mrb[0].mxu0
        %v2509 = vadd.f32 %v2233, %v2508
        %v2510 = vpop.f32.mrb[0].mxu0
        %2511 = vmatprep.mubr.bf16.mxu0 %v2118
        %2512 = vmatmul.mubr.bf16.gmra.mrb[0].mxu0 %v2103
        %v2513 = vpop.f32.mrb[0].mxu0
        %v2514 = vadd.f32 %v2233, %v2513
        %v2515 = vpop.f32.mrb[0].mxu0
        %v2516 = vpop.f32.mrb[0].mxu0
        %v2517 = vadd.f32 %v2233, %v2516
        %v2518 = vpop.f32.mrb[0].mxu0
        %2519 = vmatprep.mubr.bf16.mxu0 %v2122
        %2520 = vmatmul.mubr.bf16.gmra.mrb[0].mxu0 %v2106
        %v2521 = vpop.f32.mrb[0].mxu0
        %v2522 = vadd.f32 %v2233, %v2521
        %v2523 = vpop.f32.mrb[0].mxu0
        %v2524 = vpop.f32.mrb[0].mxu0
        %v2525 = vadd.f32 %v2233, %v2524
        %v2526 = vpop.f32.mrb[0].mxu0
        %2527 = vdwg.mxu0
        %2528 = vmatprep.subr.bf16.mxu0 0
        %2529 = vmatpush1.bf16.msra.mxu0 %v2395
        %2530 = vmatprep.subr.bf16.mxu0 0
        %2531 = vmatpush1.bf16.msra.mxu0 %v2396
        %2532 = vmatprep.subr.bf16.mxu0 0
        %2533 = vmatpush1.bf16.msra.mxu0 %v2397
        %2534 = vmatprep.subr.bf16.mxu0 0
        %2535 = vmatpush1.bf16.msra.mxu0 %v2398
        %2536 = vmatprep.subr.bf16.mxu0 0
        %2537 = vmatpush1.bf16.msra.mxu0 %v2399
        %2538 = vmatprep.subr.bf16.mxu0 0
        %2539 = vmatpush1.bf16.msra.mxu0 %v2400
        %2540 = vmatprep.subr.bf16.mxu0 0
        %2541 = vmatpush1.bf16.msra.mxu0 %v2401
        %2542 = vmatprep.subr.bf16.mxu0 0
        %2543 = vmatpush1.bf16.msra.mxu0 %v2402
        %2544 = vmatprep.subr.bf16.mxu0 0
        %2545 = vmatpush1.bf16.msra.mxu0 %v2403
        %2546 = vmatprep.subr.bf16.mxu0 0
        %2547 = vmatpush1.bf16.msra.mxu0 %v2404
        %2548 = vmatprep.subr.bf16.mxu0 0
        %2549 = vmatpush1.bf16.msra.mxu0 %v2405
        %2550 = vmatprep.subr.bf16.mxu0 0
        %2551 = vmatpush1.bf16.msra.mxu0 %v2406
        %2552 = vmatprep.subr.bf16.mxu0 0
        %2553 = vmatpush1.bf16.msra.mxu0 %v2407
        %2554 = vmatprep.subr.bf16.mxu0 0
        %2555 = vmatpush1.bf16.msra.mxu0 %v2408
        %2556 = vmatprep.subr.bf16.mxu0 0
        %2557 = vmatpush1.bf16.msra.mxu0 %v2409
        %2558 = vmatprep.subr.bf16.mxu0 0
        %2559 = vmatpush1.bf16.msra.mxu0 %v2410
        %2560 = vmatprep.mubr.bf16.mxu0 %v2142
        %2561 = vmatmul.mubr.bf16.gmra.mrb[0].mxu0 %v2126
        %v2562 = vpop.f32.mrb[0].mxu0
        %v2563 = vadd.f32 %v2498, %v2562
        %v2564 = vpop.f32.mrb[0].mxu0
        %v2565 = vpop.f32.mrb[0].mxu0
        %v2566 = vadd.f32 %v2501, %v2565
        %v2567 = vpop.f32.mrb[0].mxu0
        %2568 = vmatprep.mubr.bf16.mxu0 %v2146
        %2569 = vmatmul.mubr.bf16.gmra.mrb[0].mxu0 %v2130
        %v2570 = vpop.f32.mrb[0].mxu0
        %v2571 = vadd.f32 %v2506, %v2570
        %v2572 = vpop.f32.mrb[0].mxu0
        %v2573 = vpop.f32.mrb[0].mxu0
        %v2574 = vadd.f32 %v2509, %v2573
        %v2575 = vpop.f32.mrb[0].mxu0
        %2576 = vmatprep.mubr.bf16.mxu0 %v2150
        %2577 = vmatmul.mubr.bf16.gmra.mrb[0].mxu0 %v2134
        %v2578 = vpop.f32.mrb[0].mxu0
        %v2579 = vadd.f32 %v2514, %v2578
        %v2580 = vpop.f32.mrb[0].mxu0
        %v2581 = vpop.f32.mrb[0].mxu0
        %v2582 = vadd.f32 %v2517, %v2581
        %v2583 = vpop.f32.mrb[0].mxu0
        %2584 = vmatprep.mubr.bf16.mxu0 %v2154
        %2585 = vmatmul.mubr.bf16.gmra.mrb[0].mxu0 %v2138
        %v2586 = vpop.f32.mrb[0].mxu0
        %v2587 = vadd.f32 %v2522, %v2586
        %v2588 = vpop.f32.mrb[0].mxu0
        %v2589 = vpop.f32.mrb[0].mxu0
        %v2590 = vadd.f32 %v2525, %v2589
        %v2591 = vpop.f32.mrb[0].mxu0
        %2592 = vdwg.mxu0
        %2593 = vmatprep.subr.bf16.mxu0 0
        %2594 = vmatpush1.bf16.msra.mxu0 %v2411
        %2595 = vmatprep.subr.bf16.mxu0 0
        %2596 = vmatpush1.bf16.msra.mxu0 %v2412
        %2597 = vmatprep.subr.bf16.mxu0 0
        %2598 = vmatpush1.bf16.msra.mxu0 %v2413
        %2599 = vmatprep.subr.bf16.mxu0 0
        %2600 = vmatpush1.bf16.msra.mxu0 %v2414
        %2601 = vmatprep.subr.bf16.mxu0 0
        %2602 = vmatpush1.bf16.msra.mxu0 0
        %2603 = vmatprep.subr.bf16.mxu0 0
        %2604 = vmatpush1.bf16.msra.mxu0 0
        %2605 = vmatprep.subr.bf16.mxu0 0
        %2606 = vmatpush1.bf16.msra.mxu0 0
        %2607 = vmatprep.subr.bf16.mxu0 0
        %2608 = vmatpush1.bf16.msra.mxu0 0
        %2609 = vmatprep.subr.bf16.mxu0 0
        %2610 = vmatpush1.bf16.msra.mxu0 0
        %2611 = vmatprep.subr.bf16.mxu0 0
        %2612 = vmatpush1.bf16.msra.mxu0 0
        %2613 = vmatprep.subr.bf16.mxu0 0
        %2614 = vmatpush1.bf16.msra.mxu0 0
        %2615 = vmatprep.subr.bf16.mxu0 0
        %2616 = vmatpush1.bf16.msra.mxu0 0
        %2617 = vmatprep.subr.bf16.mxu0 0
        %2618 = vmatpush1.bf16.msra.mxu0 0
        %2619 = vmatprep.subr.bf16.mxu0 0
        %2620 = vmatpush1.bf16.msra.mxu0 0
        %2621 = vmatprep.subr.bf16.mxu0 0
        %2622 = vmatpush1.bf16.msra.mxu0 0
        %2623 = vmatprep.subr.bf16.mxu0 0
        %2624 = vmatpush1.bf16.msra.mxu0 0
        %2625 = vmatprep.mubr.bf16.mxu0 0
        %2626 = vmatmul.mubr.bf16.gmra.mrb[0].mxu0 %v2452
        %v2627 = vpop.f32.mrb[0].mxu0
        %v2628 = vadd.f32 %v2563, %v2627
        %v2629 = vpop.f32.mrb[0].mxu0
        %v2630 = vpop.f32.mrb[0].mxu0
        %v2631 = vadd.f32 %v2566, %v2630
        %v2632 = vpop.f32.mrb[0].mxu0
        %2633 = vmatprep.mubr.bf16.mxu0 0
        %2634 = vmatmul.mubr.bf16.gmra.mrb[0].mxu0 %v2455
        %v2635 = vpop.f32.mrb[0].mxu0
        %v2636 = vadd.f32 %v2571, %v2635
        %v2637 = vpop.f32.mrb[0].mxu0
        %v2638 = vpop.f32.mrb[0].mxu0
        %v2639 = vadd.f32 %v2574, %v2638
        %v2640 = vpop.f32.mrb[0].mxu0
        %2641 = vmatprep.mubr.bf16.mxu0 0
        %2642 = vmatmul.mubr.bf16.gmra.mrb[0].mxu0 %v2458
        %v2643 = vpop.f32.mrb[0].mxu0
        %v2644 = vadd.f32 %v2579, %v2643
        %v2645 = vpop.f32.mrb[0].mxu0
        %v2646 = vpop.f32.mrb[0].mxu0
        %v2647 = vadd.f32 %v2582, %v2646
        %v2648 = vpop.f32.mrb[0].mxu0
        %2649 = vmatprep.mubr.bf16.mxu0 0
        %2650 = vmatmul.mubr.bf16.gmra.mrb[0].mxu0 %v2461
        %v2651 = vpop.f32.mrb[0].mxu0
        %v2652 = vadd.f32 %v2587, %v2651
        %v2653 = vpop.f32.mrb[0].mxu0
        %v2654 = vpop.f32.mrb[0].mxu0
        %v2655 = vadd.f32 %v2590, %v2654
        %v2656 = vpop.f32.mrb[0].mxu0
        %2657 = vdwg.mxu0
        %v2658 = vmax.f32 %v2628, 0.0
        %v2659 = vmax.f32 %v2631, 0.0
        %v2660 = vmax.f32 %v2636, 0.0
        %v2661 = vmax.f32 %v2639, 0.0
        %v2662 = vmax.f32 %v2644, 0.0
        %v2663 = vmax.f32 %v2647, 0.0
        %v2664 = vmax.f32 %v2652, 0.0
        %v2665 = vmax.f32 %v2655, 0.0
        %v2666 = vadd.f32 %v2658, %v2659
        %v2667 = vadd.f32 %v2666, %v2660
        %v2668 = vadd.f32 %v2667, %v2661
        %v2669 = vadd.f32 %v2668, %v2662
        %v2670 = vadd.f32 %v2669, %v2663
        %v2671 = vadd.f32 %v2670, %v2664
        %v2672 = vadd.f32 %v2671, %v2665
        %v2673 = vrot.slane %v2672, 4
        %v2674 = vadd.f32 %v2672, %v2673
        %v2675 = vrot.slane %v2674, 2
        %v2676 = vadd.f32 %v2674, %v2675
        %v2677 = vrot.slane %v2676, 1
        %v2678 = vadd.f32 %v2676, %v2677
        %2679 = vrot.lane.b32.xlu0 %v1884, 64
        %v2680 = vpop.permute.xlu0 %2679
        %2681 = vrot.lane.b32.xlu0 %v1885, 64
        %v2682 = vpop.permute.xlu0 %2681
        %2683 = vrot.lane.b32.xlu0 %v1886, 64
        %v2684 = vpop.permute.xlu0 %2683
        %2685 = vrot.lane.b32.xlu0 %v1887, 64
        %v2686 = vpop.permute.xlu0 %2685
        %2687 = vrot.lane.b32.xlu0 %v1940, 64
        %v2688 = vpop.permute.xlu0 %2687
        %2689 = vrot.lane.b32.xlu0 %v1942, 64
        %v2690 = vpop.permute.xlu0 %2689
        %2691 = vrot.lane.b32.xlu0 %v1944, 64
        %v2692 = vpop.permute.xlu0 %2691
        %2693 = vrot.lane.b32.xlu0 %v1946, 64
        %v2694 = vpop.permute.xlu0 %2693
        %2695 = vrot.lane.b32.xlu0 %v1992, 64
        %v2696 = vpop.permute.xlu0 %2695
        %2697 = vrot.lane.b32.xlu0 %v1994, 64
        %v2698 = vpop.permute.xlu0 %2697
        %2699 = vrot.lane.b32.xlu0 %v1996, 64
        %v2700 = vpop.permute.xlu0 %2699
        %2701 = vrot.lane.b32.xlu0 %v1998, 64
        %v2702 = vpop.permute.xlu0 %2701
        %2703 = vrot.lane.b32.xlu0 %v2044, 64
        %v2704 = vpop.permute.xlu0 %2703
        %2705 = vrot.lane.b32.xlu0 %v2046, 64
        %v2706 = vpop.permute.xlu0 %2705
        %2707 = vrot.lane.b32.xlu0 %v2048, 64
        %v2708 = vpop.permute.xlu0 %2707
        %2709 = vrot.lane.b32.xlu0 %v2050, 64
        %v2710 = vpop.permute.xlu0 %2709
        %2711 = vrot.lane.b32.xlu0 %v2091, 64
        %v2712 = vpop.permute.xlu0 %2711
        %2713 = vrot.lane.b32.xlu0 %v2092, 64
        %v2714 = vpop.permute.xlu0 %2713
        %2715 = vrot.lane.b32.xlu0 %v2093, 64
        %v2716 = vpop.permute.xlu0 %2715
        %2717 = vrot.lane.b32.xlu0 %v2094, 64
        %v2718 = vpop.permute.xlu0 %2717
        %v2721 = vsel %vm2095, %v2680, %v1902
        %v2725 = vsel %vm2095, %v2682, %v1910
        %v2729 = vsel %vm2095, %v2684, %v1918
        %v2733 = vsel %vm2095, %v2686, %v1926
        %v2737 = vsel %vm2095, %v2688, %v1961
        %v2741 = vsel %vm2095, %v2690, %v1965
        %v2745 = vsel %vm2095, %v2692, %v1969
        %v2749 = vsel %vm2095, %v2694, %v1978
        %v2753 = vsel %vm2095, %v2696, %v2013
        %v2757 = vsel %vm2095, %v2698, %v2017
        %v2761 = vsel %vm2095, %v2700, %v2021
        %v2765 = vsel %vm2095, %v2702, %v2030
        %v2769 = vsel %vm2095, %v2704, %v2065
        %v2773 = vsel %vm2095, %v2706, %v2069
        %v2777 = vsel %vm2095, %v2708, %v2073
        %v2781 = vsel %vm2095, %v2710, %v2082
        %s2783 = scalar_lea.vmem %s4, 288
        %v2784 = vld [vmem:[%s2783] sm:$0xf]
        %v2785 = vld [vmem:[%s2783 + $0x4] sm:$0xf]
        %v2786 = vld [vmem:[%s2783 + $0x8] sm:$0xf]
        %v2787 = vld [vmem:[%s2783 + $0xc] sm:$0xf]
        %v2788 = vld [vmem:[%s2783 + $0x10] sm:$0xf]
        %v2789 = vld [vmem:[%s2783 + $0x14] sm:$0xf]
        %v2790 = vld [vmem:[%s2783 + $0x18] sm:$0xf]
        %v2791 = vld [vmem:[%s2783 + $0x1c] sm:$0xf]
        %v2792 = vld [vmem:[%s2783 + $0x20] sm:$0xf]
        %v2793 = vld [vmem:[%s2783 + $0x24] sm:$0xf]
        %v2794 = vld [vmem:[%s2783 + $0x28] sm:$0xf]
        %v2795 = vld [vmem:[%s2783 + $0x2c] sm:$0xf]
        %v2796 = vld [vmem:[%s2783 + $0x30] sm:$0xf]
        %v2797 = vld [vmem:[%s2783 + $0x34] sm:$0xf]
        %v2798 = vld [vmem:[%s2783 + $0x38] sm:$0xf]
        %v2799 = vld [vmem:[%s2783 + $0x3c] sm:$0xf]
        %v2800 = vld [vmem:[%s2783 + $0x40] sm:$0xf]
        %v2801 = vld [vmem:[%s2783 + $0x44] sm:$0xf]
        %v2802 = vld [vmem:[%s2783 + $0x48] sm:$0xf]
        %v2803 = vld [vmem:[%s2783 + $0x4c] sm:$0xf]
        %v2804 = vld [vmem:[%s2783 + $0x50] sm:$0xf]
        %v2805 = vld [vmem:[%s2783 + $0x54] sm:$0xf]
        %v2806 = vld [vmem:[%s2783 + $0x58] sm:$0xf]
        %v2807 = vld [vmem:[%s2783 + $0x5c] sm:$0xf]
        %v2808 = vld [vmem:[%s2783 + $0x60] sm:$0xf]
        %v2809 = vld [vmem:[%s2783 + $0x64] sm:$0xf]
        %v2810 = vld [vmem:[%s2783 + $0x68] sm:$0xf]
        %v2811 = vld [vmem:[%s2783 + $0x6c] sm:$0xf]
        %v2812 = vld [vmem:[%s2783 + $0x70] sm:$0xf]
        %v2813 = vld [vmem:[%s2783 + $0x74] sm:$0xf]
        %v2814 = vld [vmem:[%s2783 + $0x78] sm:$0xf]
        %v2815 = vld [vmem:[%s2783 + $0x7c] sm:$0xf]
        %v2816 = vld [vmem:[%s2783 + $0x80] sm:$0xf]
        %v2817 = vld [vmem:[%s2783 + $0x84] sm:$0xf]
        %v2818 = vld [vmem:[%s2783 + $0x88] sm:$0xf]
        %v2819 = vld [vmem:[%s2783 + $0x8c] sm:$0xf]
        %v2820 = vld [vmem:[%s2783 + $0x90] sm:$0xf]
        %v2821 = vld [vmem:[%s2783 + $0x94] sm:$0xf]
        %v2822 = vld [vmem:[%s2783 + $0x98] sm:$0xf]
        %v2823 = vld [vmem:[%s2783 + $0x9c] sm:$0xf]
        %v2824 = vld [vmem:[%s2783 + $0xa0] sm:$0xf]
        %v2825 = vld [vmem:[%s2783 + $0xa4] sm:$0xf]
        %v2826 = vld [vmem:[%s2783 + $0xa8] sm:$0xf]
        %v2827 = vld [vmem:[%s2783 + $0xac] sm:$0xf]
        %v2828 = vld [vmem:[%s2783 + $0xb0] sm:$0xf]
        %v2829 = vld [vmem:[%s2783 + $0xb4] sm:$0xf]
        %v2830 = vld [vmem:[%s2783 + $0xb8] sm:$0xf]
        %v2831 = vld [vmem:[%s2783 + $0xbc] sm:$0xf]
        %v2832 = vld [vmem:[%s2783 + $0xc0] sm:$0xf]
        %v2833 = vld [vmem:[%s2783 + $0xc4] sm:$0xf]
        %v2834 = vld [vmem:[%s2783 + $0xc8] sm:$0xf]
        %v2835 = vld [vmem:[%s2783 + $0xcc] sm:$0xf]
        %v2836 = vld [vmem:[%s2783 + $0xd0] sm:$0xf]
        %v2837 = vld [vmem:[%s2783 + $0xd4] sm:$0xf]
        %v2838 = vld [vmem:[%s2783 + $0xd8] sm:$0xf]
        %v2839 = vld [vmem:[%s2783 + $0xdc] sm:$0xf]
        %v2840 = vld [vmem:[%s2783 + $0xe0] sm:$0xf]
        %v2841 = vld [vmem:[%s2783 + $0xe4] sm:$0xf]
        %v2842 = vld [vmem:[%s2783 + $0xe8] sm:$0xf]
        %v2843 = vld [vmem:[%s2783 + $0xec] sm:$0xf]
        %v2844 = vld [vmem:[%s2783 + $0xf0] sm:$0xf]
        %v2845 = vld [vmem:[%s2783 + $0xf4] sm:$0xf]
        %v2846 = vld [vmem:[%s2783 + $0xf8] sm:$0xf]
        %v2847 = vld [vmem:[%s2783 + $0xfc] sm:$0xf]
        %v2848 = vld [vmem:[%s2783 + $0x100] sm:$0xf]
        %v2849 = vld [vmem:[%s2783 + $0x104] sm:$0xf]
        %v2850 = vld [vmem:[%s2783 + $0x108] sm:$0xf]
        %v2851 = vld [vmem:[%s2783 + $0x10c] sm:$0xf]
        %v2852 = vld [vmem:[%s2783 + $0x110] sm:$0xf]
        %v2853 = vld [vmem:[%s2783 + $0x114] sm:$0xf]
        %v2854 = vld [vmem:[%s2783 + $0x118] sm:$0xf]
        %v2855 = vld [vmem:[%s2783 + $0x11c] sm:$0xf]
        %s2856 = scalar_lea.vmem %s5, 1
        %v2857 = vld [vmem:[%s2856] sm:$0x1]
        %v2859 = vlaneseq
        %v2860 = vshrl.u32 %v2859, 7
        %v2861 = vsub.s32 0, %v2860
        %v2862 = vrot.slane %v2857, %v2861
        %v2936 = vunpack.c.l.b16 %v2784
        %v2937 = vunpack.c.l.b16 %v2785
        %v2938 = vunpack.c.l.b16 %v2786
        %v2939 = vunpack.c.l.b16 %v2787
        %v2940 = vunpack.c.l.b16 %v2788
        %v2941 = vunpack.c.l.b16 %v2789
        %v2942 = vunpack.c.l.b16 %v2790
        %v2943 = vunpack.c.l.b16 %v2791
        %v2944 = vunpack.c.l.b16 %v2792
        %v2945 = vunpack.c.l.b16 %v2793
        %v2946 = vunpack.c.l.b16 %v2794
        %v2947 = vunpack.c.l.b16 %v2795
        %v2948 = vunpack.c.l.b16 %v2796
        %v2949 = vunpack.c.l.b16 %v2797
        %v2950 = vunpack.c.l.b16 %v2798
        %v2951 = vunpack.c.l.b16 %v2799
        %v2952 = vunpack.c.l.b16 %v2800
        %v2953 = vunpack.c.l.b16 %v2801
        %v2954 = vunpack.c.l.b16 %v2802
        %v2955 = vunpack.c.l.b16 %v2803
        %v2956 = vunpack.c.l.b16 %v2804
        %v2957 = vunpack.c.l.b16 %v2805
        %v2958 = vunpack.c.l.b16 %v2806
        %v2959 = vunpack.c.l.b16 %v2807
        %v2960 = vunpack.c.l.b16 %v2808
        %v2961 = vunpack.c.l.b16 %v2809
        %v2962 = vunpack.c.l.b16 %v2810
        %v2963 = vunpack.c.l.b16 %v2811
        %v2964 = vunpack.c.l.b16 %v2812
        %v2965 = vunpack.c.l.b16 %v2813
        %v2966 = vunpack.c.l.b16 %v2814
        %v2967 = vunpack.c.l.b16 %v2815
        %v2968 = vunpack.c.l.b16 %v2816
        %v2969 = vunpack.c.l.b16 %v2817
        %v2970 = vunpack.c.l.b16 %v2818
        %v2971 = vunpack.c.l.b16 %v2819
        %v2972 = vunpack.c.l.b16 %v2820
        %v2973 = vunpack.c.l.b16 %v2821
        %v2974 = vunpack.c.l.b16 %v2822
        %v2975 = vunpack.c.l.b16 %v2823
        %v2976 = vunpack.c.l.b16 %v2824
        %v2977 = vunpack.c.l.b16 %v2825
        %v2978 = vunpack.c.l.b16 %v2826
        %v2979 = vunpack.c.l.b16 %v2827
        %v2980 = vunpack.c.l.b16 %v2828
        %v2981 = vunpack.c.l.b16 %v2829
        %v2982 = vunpack.c.l.b16 %v2830
        %v2983 = vunpack.c.l.b16 %v2831
        %v2984 = vunpack.c.l.b16 %v2832
        %v2985 = vunpack.c.l.b16 %v2833
        %v2986 = vunpack.c.l.b16 %v2834
        %v2987 = vunpack.c.l.b16 %v2835
        %v2988 = vunpack.c.l.b16 %v2836
        %v2989 = vunpack.c.l.b16 %v2837
        %v2990 = vunpack.c.l.b16 %v2838
        %v2991 = vunpack.c.l.b16 %v2839
        %v2992 = vunpack.c.l.b16 %v2840
        %v2993 = vunpack.c.l.b16 %v2841
        %v2994 = vunpack.c.l.b16 %v2842
        %v2995 = vunpack.c.l.b16 %v2843
        %v2996 = vunpack.c.l.b16 %v2844
        %v2997 = vunpack.c.l.b16 %v2845
        %v2998 = vunpack.c.l.b16 %v2846
        %v2999 = vunpack.c.l.b16 %v2847
        %v3000 = vunpack.c.l.b16 %v2848
        %v3001 = vunpack.c.l.b16 %v2849
        %v3002 = vunpack.c.l.b16 %v2850
        %v3003 = vunpack.c.l.b16 %v2851
        %v3004 = vunpack.c.l.b16 %v2852
        %v3005 = vunpack.c.l.b16 %v2853
        %v3006 = vunpack.c.l.b16 %v2854
        %v3007 = vunpack.c.l.b16 %v2855
        %v3008 = vpack.c.b16 %v2937, %v2936
        %v3009 = vpack.c.b16 %v2939, %v2938
        %v3010 = vpack.c.b16 %v2941, %v2940
        %v3011 = vpack.c.b16 %v2943, %v2942
        %v3012 = vpack.c.b16 %v2945, %v2944
        %v3013 = vpack.c.b16 %v2947, %v2946
        %v3014 = vpack.c.b16 %v2949, %v2948
        %v3015 = vpack.c.b16 %v2951, %v2950
        %v3016 = vpack.c.b16 %v2953, %v2952
        %v3017 = vpack.c.b16 %v2955, %v2954
        %v3018 = vpack.c.b16 %v2957, %v2956
        %v3019 = vpack.c.b16 %v2959, %v2958
        %v3020 = vpack.c.b16 %v2961, %v2960
        %v3021 = vpack.c.b16 %v2963, %v2962
        %v3022 = vpack.c.b16 %v2965, %v2964
        %v3023 = vpack.c.b16 %v2967, %v2966
        %v3024 = vpack.c.b16 %v2969, %v2968
        %v3025 = vpack.c.b16 %v2971, %v2970
        %v3026 = vpack.c.b16 %v2973, %v2972
        %v3027 = vpack.c.b16 %v2975, %v2974
        %v3028 = vpack.c.b16 %v2977, %v2976
        %v3029 = vpack.c.b16 %v2979, %v2978
        %v3030 = vpack.c.b16 %v2981, %v2980
        %v3031 = vpack.c.b16 %v2983, %v2982
        %v3032 = vpack.c.b16 %v2985, %v2984
        %v3033 = vpack.c.b16 %v2987, %v2986
        %v3034 = vpack.c.b16 %v2989, %v2988
        %v3035 = vpack.c.b16 %v2991, %v2990
        %v3036 = vpack.c.b16 %v2993, %v2992
        %v3037 = vpack.c.b16 %v2995, %v2994
        %v3038 = vpack.c.b16 %v2997, %v2996
        %v3039 = vpack.c.b16 %v2999, %v2998
        %v3040 = vpack.c.b16 %v3001, %v3000
        %v3041 = vpack.c.b16 %v3003, %v3002
        %v3042 = vpack.c.b16 %v3005, %v3004
        %v3043 = vpack.c.b16 %v3007, %v3006
        %v3081 = vsel %vm2095, %v2712, 0
        %v3084 = vsel %vm2095, %v2714, 0
        %v3087 = vsel %vm2095, %v2716, 0
        %v3090 = vsel %vm2095, %v2718, 0
        %3092 = vmatprep.subr.bf16.mxu0 0
        %3093 = vmatpush1.bf16.msra.mxu0 %v3008
        %3094 = vmatprep.subr.bf16.mxu0 0
        %3095 = vmatpush1.bf16.msra.mxu0 %v3009
        %3096 = vmatprep.subr.bf16.mxu0 0
        %3097 = vmatpush1.bf16.msra.mxu0 %v3010
        %3098 = vmatprep.subr.bf16.mxu0 0
        %3099 = vmatpush1.bf16.msra.mxu0 %v3011
        %3100 = vmatprep.subr.bf16.mxu0 0
        %3101 = vmatpush1.bf16.msra.mxu0 %v3012
        %3102 = vmatprep.subr.bf16.mxu0 0
        %3103 = vmatpush1.bf16.msra.mxu0 %v3013
        %3104 = vmatprep.subr.bf16.mxu0 0
        %3105 = vmatpush1.bf16.msra.mxu0 %v3014
        %3106 = vmatprep.subr.bf16.mxu0 0
        %3107 = vmatpush1.bf16.msra.mxu0 %v3015
        %3108 = vmatprep.subr.bf16.mxu0 0
        %3109 = vmatpush1.bf16.msra.mxu0 %v3016
        %3110 = vmatprep.subr.bf16.mxu0 0
        %3111 = vmatpush1.bf16.msra.mxu0 %v3017
        %3112 = vmatprep.subr.bf16.mxu0 0
        %3113 = vmatpush1.bf16.msra.mxu0 %v3018
        %3114 = vmatprep.subr.bf16.mxu0 0
        %3115 = vmatpush1.bf16.msra.mxu0 %v3019
        %3116 = vmatprep.subr.bf16.mxu0 0
        %3117 = vmatpush1.bf16.msra.mxu0 %v3020
        %3118 = vmatprep.subr.bf16.mxu0 0
        %3119 = vmatpush1.bf16.msra.mxu0 %v3021
        %3120 = vmatprep.subr.bf16.mxu0 0
        %3121 = vmatpush1.bf16.msra.mxu0 %v3022
        %3122 = vmatprep.subr.bf16.mxu0 0
        %3123 = vmatpush1.bf16.msra.mxu0 %v3023
        %3124 = vmatprep.mubr.bf16.mxu0 %v2737
        %3125 = vmatmul.mubr.bf16.gmra.mrb[0].mxu0 %v2721
        %v3126 = vpop.f32.mrb[0].mxu0
        %v3127 = vadd.f32 %v2862, %v3126
        %v3128 = vpop.f32.mrb[0].mxu0
        %v3129 = vpop.f32.mrb[0].mxu0
        %v3130 = vadd.f32 %v2862, %v3129
        %v3131 = vpop.f32.mrb[0].mxu0
        %3132 = vmatprep.mubr.bf16.mxu0 %v2741
        %3133 = vmatmul.mubr.bf16.gmra.mrb[0].mxu0 %v2725
        %v3134 = vpop.f32.mrb[0].mxu0
        %v3135 = vadd.f32 %v2862, %v3134
        %v3136 = vpop.f32.mrb[0].mxu0
        %v3137 = vpop.f32.mrb[0].mxu0
        %v3138 = vadd.f32 %v2862, %v3137
        %v3139 = vpop.f32.mrb[0].mxu0
        %3140 = vmatprep.mubr.bf16.mxu0 %v2745
        %3141 = vmatmul.mubr.bf16.gmra.mrb[0].mxu0 %v2729
        %v3142 = vpop.f32.mrb[0].mxu0
        %v3143 = vadd.f32 %v2862, %v3142
        %v3144 = vpop.f32.mrb[0].mxu0
        %v3145 = vpop.f32.mrb[0].mxu0
        %v3146 = vadd.f32 %v2862, %v3145
        %v3147 = vpop.f32.mrb[0].mxu0
        %3148 = vmatprep.mubr.bf16.mxu0 %v2749
        %3149 = vmatmul.mubr.bf16.gmra.mrb[0].mxu0 %v2733
        %v3150 = vpop.f32.mrb[0].mxu0
        %v3151 = vadd.f32 %v2862, %v3150
        %v3152 = vpop.f32.mrb[0].mxu0
        %v3153 = vpop.f32.mrb[0].mxu0
        %v3154 = vadd.f32 %v2862, %v3153
        %v3155 = vpop.f32.mrb[0].mxu0
        %3156 = vdwg.mxu0
        %3157 = vmatprep.subr.bf16.mxu0 0
        %3158 = vmatpush1.bf16.msra.mxu0 %v3024
        %3159 = vmatprep.subr.bf16.mxu0 0
        %3160 = vmatpush1.bf16.msra.mxu0 %v3025
        %3161 = vmatprep.subr.bf16.mxu0 0
        %3162 = vmatpush1.bf16.msra.mxu0 %v3026
        %3163 = vmatprep.subr.bf16.mxu0 0
        %3164 = vmatpush1.bf16.msra.mxu0 %v3027
        %3165 = vmatprep.subr.bf16.mxu0 0
        %3166 = vmatpush1.bf16.msra.mxu0 %v3028
        %3167 = vmatprep.subr.bf16.mxu0 0
        %3168 = vmatpush1.bf16.msra.mxu0 %v3029
        %3169 = vmatprep.subr.bf16.mxu0 0
        %3170 = vmatpush1.bf16.msra.mxu0 %v3030
        %3171 = vmatprep.subr.bf16.mxu0 0
        %3172 = vmatpush1.bf16.msra.mxu0 %v3031
        %3173 = vmatprep.subr.bf16.mxu0 0
        %3174 = vmatpush1.bf16.msra.mxu0 %v3032
        %3175 = vmatprep.subr.bf16.mxu0 0
        %3176 = vmatpush1.bf16.msra.mxu0 %v3033
        %3177 = vmatprep.subr.bf16.mxu0 0
        %3178 = vmatpush1.bf16.msra.mxu0 %v3034
        %3179 = vmatprep.subr.bf16.mxu0 0
        %3180 = vmatpush1.bf16.msra.mxu0 %v3035
        %3181 = vmatprep.subr.bf16.mxu0 0
        %3182 = vmatpush1.bf16.msra.mxu0 %v3036
        %3183 = vmatprep.subr.bf16.mxu0 0
        %3184 = vmatpush1.bf16.msra.mxu0 %v3037
        %3185 = vmatprep.subr.bf16.mxu0 0
        %3186 = vmatpush1.bf16.msra.mxu0 %v3038
        %3187 = vmatprep.subr.bf16.mxu0 0
        %3188 = vmatpush1.bf16.msra.mxu0 %v3039
        %3189 = vmatprep.mubr.bf16.mxu0 %v2769
        %3190 = vmatmul.mubr.bf16.gmra.mrb[0].mxu0 %v2753
        %v3191 = vpop.f32.mrb[0].mxu0
        %v3192 = vadd.f32 %v3127, %v3191
        %v3193 = vpop.f32.mrb[0].mxu0
        %v3194 = vpop.f32.mrb[0].mxu0
        %v3195 = vadd.f32 %v3130, %v3194
        %v3196 = vpop.f32.mrb[0].mxu0
        %3197 = vmatprep.mubr.bf16.mxu0 %v2773
        %3198 = vmatmul.mubr.bf16.gmra.mrb[0].mxu0 %v2757
        %v3199 = vpop.f32.mrb[0].mxu0
        %v3200 = vadd.f32 %v3135, %v3199
        %v3201 = vpop.f32.mrb[0].mxu0
        %v3202 = vpop.f32.mrb[0].mxu0
        %v3203 = vadd.f32 %v3138, %v3202
        %v3204 = vpop.f32.mrb[0].mxu0
        %3205 = vmatprep.mubr.bf16.mxu0 %v2777
        %3206 = vmatmul.mubr.bf16.gmra.mrb[0].mxu0 %v2761
        %v3207 = vpop.f32.mrb[0].mxu0
        %v3208 = vadd.f32 %v3143, %v3207
        %v3209 = vpop.f32.mrb[0].mxu0
        %v3210 = vpop.f32.mrb[0].mxu0
        %v3211 = vadd.f32 %v3146, %v3210
        %v3212 = vpop.f32.mrb[0].mxu0
        %3213 = vmatprep.mubr.bf16.mxu0 %v2781
        %3214 = vmatmul.mubr.bf16.gmra.mrb[0].mxu0 %v2765
        %v3215 = vpop.f32.mrb[0].mxu0
        %v3216 = vadd.f32 %v3151, %v3215
        %v3217 = vpop.f32.mrb[0].mxu0
        %v3218 = vpop.f32.mrb[0].mxu0
        %v3219 = vadd.f32 %v3154, %v3218
        %v3220 = vpop.f32.mrb[0].mxu0
        %3221 = vdwg.mxu0
        %3222 = vmatprep.subr.bf16.mxu0 0
        %3223 = vmatpush1.bf16.msra.mxu0 %v3040
        %3224 = vmatprep.subr.bf16.mxu0 0
        %3225 = vmatpush1.bf16.msra.mxu0 %v3041
        %3226 = vmatprep.subr.bf16.mxu0 0
        %3227 = vmatpush1.bf16.msra.mxu0 %v3042
        %3228 = vmatprep.subr.bf16.mxu0 0
        %3229 = vmatpush1.bf16.msra.mxu0 %v3043
        %3230 = vmatprep.subr.bf16.mxu0 0
        %3231 = vmatpush1.bf16.msra.mxu0 0
        %3232 = vmatprep.subr.bf16.mxu0 0
        %3233 = vmatpush1.bf16.msra.mxu0 0
        %3234 = vmatprep.subr.bf16.mxu0 0
        %3235 = vmatpush1.bf16.msra.mxu0 0
        %3236 = vmatprep.subr.bf16.mxu0 0
        %3237 = vmatpush1.bf16.msra.mxu0 0
        %3238 = vmatprep.subr.bf16.mxu0 0
        %3239 = vmatpush1.bf16.msra.mxu0 0
        %3240 = vmatprep.subr.bf16.mxu0 0
        %3241 = vmatpush1.bf16.msra.mxu0 0
        %3242 = vmatprep.subr.bf16.mxu0 0
        %3243 = vmatpush1.bf16.msra.mxu0 0
        %3244 = vmatprep.subr.bf16.mxu0 0
        %3245 = vmatpush1.bf16.msra.mxu0 0
        %3246 = vmatprep.subr.bf16.mxu0 0
        %3247 = vmatpush1.bf16.msra.mxu0 0
        %3248 = vmatprep.subr.bf16.mxu0 0
        %3249 = vmatpush1.bf16.msra.mxu0 0
        %3250 = vmatprep.subr.bf16.mxu0 0
        %3251 = vmatpush1.bf16.msra.mxu0 0
        %3252 = vmatprep.subr.bf16.mxu0 0
        %3253 = vmatpush1.bf16.msra.mxu0 0
        %3254 = vmatprep.mubr.bf16.mxu0 0
        %3255 = vmatmul.mubr.bf16.gmra.mrb[0].mxu0 %v3081
        %v3256 = vpop.f32.mrb[0].mxu0
        %v3257 = vadd.f32 %v3192, %v3256
        %v3258 = vpop.f32.mrb[0].mxu0
        %v3259 = vpop.f32.mrb[0].mxu0
        %v3260 = vadd.f32 %v3195, %v3259
        %v3261 = vpop.f32.mrb[0].mxu0
        %3262 = vmatprep.mubr.bf16.mxu0 0
        %3263 = vmatmul.mubr.bf16.gmra.mrb[0].mxu0 %v3084
        %v3264 = vpop.f32.mrb[0].mxu0
        %v3265 = vadd.f32 %v3200, %v3264
        %v3266 = vpop.f32.mrb[0].mxu0
        %v3267 = vpop.f32.mrb[0].mxu0
        %v3268 = vadd.f32 %v3203, %v3267
        %v3269 = vpop.f32.mrb[0].mxu0
        %3270 = vmatprep.mubr.bf16.mxu0 0
        %3271 = vmatmul.mubr.bf16.gmra.mrb[0].mxu0 %v3087
        %v3272 = vpop.f32.mrb[0].mxu0
        %v3273 = vadd.f32 %v3208, %v3272
        %v3274 = vpop.f32.mrb[0].mxu0
        %v3275 = vpop.f32.mrb[0].mxu0
        %v3276 = vadd.f32 %v3211, %v3275
        %v3277 = vpop.f32.mrb[0].mxu0
        %3278 = vmatprep.mubr.bf16.mxu0 0
        %3279 = vmatmul.mubr.bf16.gmra.mrb[0].mxu0 %v3090
        %v3280 = vpop.f32.mrb[0].mxu0
        %v3281 = vadd.f32 %v3216, %v3280
        %v3282 = vpop.f32.mrb[0].mxu0
        %v3283 = vpop.f32.mrb[0].mxu0
        %v3284 = vadd.f32 %v3219, %v3283
        %v3285 = vpop.f32.mrb[0].mxu0
        %3286 = vdwg.mxu0
        %v3287 = vmax.f32 %v3257, 0.0
        %v3288 = vmax.f32 %v3260, 0.0
        %v3289 = vmax.f32 %v3265, 0.0
        %v3290 = vmax.f32 %v3268, 0.0
        %v3291 = vmax.f32 %v3273, 0.0
        %v3292 = vmax.f32 %v3276, 0.0
        %v3293 = vmax.f32 %v3281, 0.0
        %v3294 = vmax.f32 %v3284, 0.0
        %v3295 = vadd.f32 %v3287, %v3288
        %v3296 = vadd.f32 %v3295, %v3289
        %v3297 = vadd.f32 %v3296, %v3290
        %v3298 = vadd.f32 %v3297, %v3291
        %v3299 = vadd.f32 %v3298, %v3292
        %v3300 = vadd.f32 %v3299, %v3293
        %v3301 = vadd.f32 %v3300, %v3294
        %v3302 = vrot.slane %v3301, 4
        %v3303 = vadd.f32 %v3301, %v3302
        %v3304 = vrot.slane %v3303, 2
        %v3305 = vadd.f32 %v3303, %v3304
        %v3306 = vrot.slane %v3305, 1
        %v3307 = vadd.f32 %v3305, %v3306
        %v3308 = vld [vmem:[#allocation3 + $0x4] sm:$0xf]
        %v3309 = vld [vmem:[#allocation3 + $0xc] sm:$0xf]
        %v3310 = vld [vmem:[#allocation3 + $0x14] sm:$0xf]
        %v3311 = vld [vmem:[#allocation3 + $0x1c] sm:$0xf]
        %v3312 = vld [vmem:[#allocation3 + $0x24] sm:$0xf]
        %v3313 = vld [vmem:[#allocation3 + $0x2c] sm:$0xf]
        %v3314 = vld [vmem:[#allocation3 + $0x34] sm:$0xf]
        %v3315 = vld [vmem:[#allocation3 + $0x3c] sm:$0xf]
        %v3316 = vld [vmem:[#allocation3 + $0x4] sm:$0xf]
        %v3317 = vld [vmem:[#allocation3 + $0xc] sm:$0xf]
        %v3318 = vld [vmem:[#allocation3 + $0x14] sm:$0xf]
        %v3319 = vld [vmem:[#allocation3 + $0x1c] sm:$0xf]
        %v3320 = vld [vmem:[#allocation3 + $0x24] sm:$0xf]
        %v3321 = vld [vmem:[#allocation3 + $0x2c] sm:$0xf]
        %v3322 = vld [vmem:[#allocation3 + $0x34] sm:$0xf]
        %v3323 = vld [vmem:[#allocation3 + $0x3c] sm:$0xf]
        %v3324 = vld [vmem:[#allocation3 + $0x44] sm:$0x1]
        %v3325 = vld [vmem:[#allocation3 + $0x4] sm:$0xe]
        %v3326 = vld [vmem:[#allocation3 + $0x44] sm:$0x3]
        %v3327 = vld [vmem:[#allocation3 + $0x4] sm:$0xc]
        %v3328 = vld [vmem:[#allocation3 + $0x44] sm:$0x7]
        %v3329 = vld [vmem:[#allocation3 + $0x4] sm:$0x8]
        %v3330 = vld [vmem:[#allocation3 + $0x44] sm:$0xf]
        %v3339 = vunpack.c.l.b16 %v3308
        %v3340 = vunpack.c.l.b16 %v3309
        %v3341 = vunpack.c.l.b16 %v3310
        %v3342 = vunpack.c.l.b16 %v3311
        %v3343 = vunpack.c.l.b16 %v3312
        %v3344 = vunpack.c.l.b16 %v3313
        %v3345 = vunpack.c.l.b16 %v3314
        %v3346 = vunpack.c.l.b16 %v3315
        %v3347 = vpack.c.b16 %v3340, %v3339
        %v3348 = vpack.c.b16 %v3342, %v3341
        %v3349 = vpack.c.b16 %v3344, %v3343
        %v3350 = vpack.c.b16 %v3346, %v3345
        %v3360 = vunpack.c.l.b16 %v3316
        %v3361 = vunpack.c.l.b16 %v3317
        %v3362 = vunpack.c.l.b16 %v3318
        %v3363 = vunpack.c.l.b16 %v3319
        %v3364 = vunpack.c.l.b16 %v3320
        %v3365 = vunpack.c.l.b16 %v3321
        %v3366 = vunpack.c.l.b16 %v3322
        %v3367 = vunpack.c.l.b16 %v3323
        %v3368 = vunpack.c.l.b16 %v3324
        %v3369 = vpack.c.b16 %v3361, %v3360
        %v3370 = vpack.c.b16 %v3363, %v3362
        %v3371 = vpack.c.b16 %v3365, %v3364
        %v3372 = vpack.c.b16 %v3367, %v3366
        %v3373 = vpack.c.b16 %v3368, %v3368
        %v3375 = vshrl.u32 %v3369, 16
        %v3377 = vshll.u32 %v3369, 16
        %v3379 = vrot.slane %v3377, 1
        %v3380 = vor.u32 %v3375, %v3379
        %v3382 = vshll.u32 %v3370, 16
        %v3384 = vrot.slane %v3382, 1
        %v3385 = vsel %vm447, %v3380, %v3384
        %v3386 = vshrl.u32 %v3370, 16
        %v3388 = vor.u32 %v3386, %v3384
        %v3390 = vshll.u32 %v3371, 16
        %v3392 = vrot.slane %v3390, 1
        %v3393 = vsel %vm447, %v3388, %v3392
        %v3394 = vshrl.u32 %v3371, 16
        %v3396 = vor.u32 %v3394, %v3392
        %v3398 = vshll.u32 %v3372, 16
        %v3400 = vrot.slane %v3398, 1
        %v3401 = vsel %vm447, %v3396, %v3400
        %v3402 = vshrl.u32 %v3372, 16
        %v3404 = vor.u32 %v3402, %v3400
        %v3406 = vshll.u32 %v3373, 16
        %v3408 = vrot.slane %v3406, 1
        %v3409 = vsel %vm447, %v3404, %v3408
        %3410 = vrot.lane.b32.xlu0 %v3385, 64
        %v3411 = vpop.permute.xlu0 %3410
        %3412 = vrot.lane.b32.xlu0 %v3393, 64
        %v3413 = vpop.permute.xlu0 %3412
        %3414 = vrot.lane.b32.xlu0 %v3401, 64
        %v3415 = vpop.permute.xlu0 %3414
        %3416 = vrot.lane.b32.xlu0 %v3409, 64
        %v3417 = vpop.permute.xlu0 %3416
        %v3419 = vunpack.c.l.b16 %v3325
        %v3420 = vpack.c.b16 %v3361, %v3419
        %v3421 = vrot.slane %v3420, 1
        %v3422 = vrot.slane %v3370, 1
        %v3423 = vsel %vm704, %v3421, %v3422
        %v3424 = vrot.slane %v3371, 1
        %v3425 = vsel %vm704, %v3422, %v3424
        %v3426 = vrot.slane %v3372, 1
        %v3427 = vsel %vm704, %v3424, %v3426
        %v3428 = vrot.slane %v3373, 1
        %v3429 = vsel %vm704, %v3426, %v3428
        %v3431 = vunpack.c.l.b16 %v3326
        %v3432 = vpack.c.b16 %v3431, %v3431
        %v3434 = vshrl.u32 %v3420, 16
        %v3436 = vrot.slane %v3434, 1
        %v3437 = vshll.u32 %v3420, 16
        %v3439 = vrot.slane %v3437, 2
        %v3440 = vor.u32 %v3436, %v3439
        %v3441 = vrot.slane %v3386, 1
        %v3442 = vrot.slane %v3382, 2
        %v3443 = vor.u32 %v3441, %v3442
        %v3444 = vsel %vm844, %v3440, %v3443
        %v3445 = vrot.slane %v3394, 1
        %v3446 = vrot.slane %v3390, 2
        %v3447 = vor.u32 %v3445, %v3446
        %v3448 = vsel %vm844, %v3443, %v3447
        %v3449 = vrot.slane %v3402, 1
        %v3450 = vrot.slane %v3398, 2
        %v3451 = vor.u32 %v3449, %v3450
        %v3452 = vsel %vm844, %v3447, %v3451
        %v3454 = vshrl.u32 %v3432, 16
        %v3456 = vrot.slane %v3454, 1
        %v3457 = vshll.u32 %v3432, 16
        %v3459 = vrot.slane %v3457, 2
        %v3460 = vor.u32 %v3456, %v3459
        %v3461 = vsel %vm844, %v3451, %v3460
        %3462 = vrot.lane.b32.xlu0 %v3444, 64
        %v3463 = vpop.permute.xlu0 %3462
        %3464 = vrot.lane.b32.xlu0 %v3448, 64
        %v3465 = vpop.permute.xlu0 %3464
        %3466 = vrot.lane.b32.xlu0 %v3452, 64
        %v3467 = vpop.permute.xlu0 %3466
        %3468 = vrot.lane.b32.xlu0 %v3461, 64
        %v3469 = vpop.permute.xlu0 %3468
        %v3471 = vunpack.c.l.b16 %v3327
        %v3472 = vpack.c.b16 %v3361, %v3471
        %v3473 = vrot.slane %v3472, 2
        %v3474 = vrot.slane %v3370, 2
        %v3475 = vsel %vm1004, %v3473, %v3474
        %v3476 = vrot.slane %v3371, 2
        %v3477 = vsel %vm1004, %v3474, %v3476
        %v3478 = vrot.slane %v3372, 2
        %v3479 = vsel %vm1004, %v3476, %v3478
        %v3480 = vrot.slane %v3432, 2
        %v3481 = vsel %vm1004, %v3478, %v3480
        %v3483 = vunpack.c.l.b16 %v3328
        %v3484 = vpack.c.b16 %v3483, %v3483
        %v3486 = vshrl.u32 %v3472, 16
        %v3488 = vrot.slane %v3486, 2
        %v3489 = vshll.u32 %v3472, 16
        %v3491 = vrot.slane %v3489, 3
        %v3492 = vor.u32 %v3488, %v3491
        %v3493 = vrot.slane %v3386, 2
        %v3494 = vrot.slane %v3382, 3
        %v3495 = vor.u32 %v3493, %v3494
        %v3496 = vsel %vm1144, %v3492, %v3495
        %v3497 = vrot.slane %v3394, 2
        %v3498 = vrot.slane %v3390, 3
        %v3499 = vor.u32 %v3497, %v3498
        %v3500 = vsel %vm1144, %v3495, %v3499
        %v3501 = vrot.slane %v3402, 2
        %v3502 = vrot.slane %v3398, 3
        %v3503 = vor.u32 %v3501, %v3502
        %v3504 = vsel %vm1144, %v3499, %v3503
        %v3506 = vshrl.u32 %v3484, 16
        %v3508 = vrot.slane %v3506, 2
        %v3509 = vshll.u32 %v3484, 16
        %v3511 = vrot.slane %v3509, 3
        %v3512 = vor.u32 %v3508, %v3511
        %v3513 = vsel %vm1144, %v3503, %v3512
        %3514 = vrot.lane.b32.xlu0 %v3496, 64
        %v3515 = vpop.permute.xlu0 %3514
        %3516 = vrot.lane.b32.xlu0 %v3500, 64
        %v3517 = vpop.permute.xlu0 %3516
        %3518 = vrot.lane.b32.xlu0 %v3504, 64
        %v3519 = vpop.permute.xlu0 %3518
        %3520 = vrot.lane.b32.xlu0 %v3513, 64
        %v3521 = vpop.permute.xlu0 %3520
        %v3523 = vunpack.c.l.b16 %v3329
        %v3524 = vpack.c.b16 %v3361, %v3523
        %v3525 = vrot.slane %v3524, 3
        %v3526 = vrot.slane %v3370, 3
        %v3527 = vsel %vm1304, %v3525, %v3526
        %v3528 = vrot.slane %v3371, 3
        %v3529 = vsel %vm1304, %v3526, %v3528
        %v3530 = vrot.slane %v3372, 3
        %v3531 = vsel %vm1304, %v3528, %v3530
        %v3532 = vrot.slane %v3484, 3
        %v3533 = vsel %vm1304, %v3530, %v3532
        %v3535 = vunpack.c.l.b16 %v3330
        %v3536 = vpack.c.b16 %v3535, %v3535
        %v3538 = vshrl.u32 %v3524, 16
        %v3540 = vrot.slane %v3538, 3
        %v3541 = vshll.u32 %v3524, 16
        %v3543 = vrot.slane %v3541, 4
        %v3544 = vor.u32 %v3540, %v3543
        %v3545 = vrot.slane %v3386, 3
        %v3546 = vrot.slane %v3382, 4
        %v3547 = vor.u32 %v3545, %v3546
        %v3548 = vsel %vm1444, %v3544, %v3547
        %v3549 = vrot.slane %v3394, 3
        %v3550 = vrot.slane %v3390, 4
        %v3551 = vor.u32 %v3549, %v3550
        %v3552 = vsel %vm1444, %v3547, %v3551
        %v3553 = vrot.slane %v3402, 3
        %v3554 = vrot.slane %v3398, 4
        %v3555 = vor.u32 %v3553, %v3554
        %v3556 = vsel %vm1444, %v3551, %v3555
        %v3558 = vshrl.u32 %v3536, 16
        %v3560 = vrot.slane %v3558, 3
        %v3561 = vshll.u32 %v3536, 16
        %v3563 = vrot.slane %v3561, 4
        %v3564 = vor.u32 %v3560, %v3563
        %v3565 = vsel %vm1444, %v3555, %v3564
        %3566 = vrot.lane.b32.xlu0 %v3548, 64
        %v3567 = vpop.permute.xlu0 %3566
        %3568 = vrot.lane.b32.xlu0 %v3552, 64
        %v3569 = vpop.permute.xlu0 %3568
        %3570 = vrot.lane.b32.xlu0 %v3556, 64
        %v3571 = vpop.permute.xlu0 %3570
        %3572 = vrot.lane.b32.xlu0 %v3565, 64
        %v3573 = vpop.permute.xlu0 %3572
        %v3574 = vpack.c.b16 %v3362, %v3361
        %v3575 = vpack.c.b16 %v3364, %v3363
        %v3576 = vpack.c.b16 %v3366, %v3365
        %v3577 = vpack.c.b16 %v3535, %v3367
        %v3580 = vsel %vm2095, %v3347, %v3411
        %v3584 = vsel %vm2095, %v3348, %v3413
        %v3588 = vsel %vm2095, %v3349, %v3415
        %v3592 = vsel %vm2095, %v3350, %v3417
        %v3596 = vsel %vm2095, %v3423, %v3463
        %v3600 = vsel %vm2095, %v3425, %v3465
        %v3604 = vsel %vm2095, %v3427, %v3467
        %v3608 = vsel %vm2095, %v3429, %v3469
        %v3612 = vsel %vm2095, %v3475, %v3515
        %v3616 = vsel %vm2095, %v3477, %v3517
        %v3620 = vsel %vm2095, %v3479, %v3519
        %v3624 = vsel %vm2095, %v3481, %v3521
        %v3628 = vsel %vm2095, %v3527, %v3567
        %v3632 = vsel %vm2095, %v3529, %v3569
        %v3636 = vsel %vm2095, %v3531, %v3571
        %v3640 = vsel %vm2095, %v3533, %v3573
        %s3642 = scalar_lea.vmem %s4, 576
        %v3643 = vld [vmem:[%s3642] sm:$0xf]
        %v3644 = vld [vmem:[%s3642 + $0x4] sm:$0xf]
        %v3645 = vld [vmem:[%s3642 + $0x8] sm:$0xf]
        %v3646 = vld [vmem:[%s3642 + $0xc] sm:$0xf]
        %v3647 = vld [vmem:[%s3642 + $0x10] sm:$0xf]
        %v3648 = vld [vmem:[%s3642 + $0x14] sm:$0xf]
        %v3649 = vld [vmem:[%s3642 + $0x18] sm:$0xf]
        %v3650 = vld [vmem:[%s3642 + $0x1c] sm:$0xf]
        %v3651 = vld [vmem:[%s3642 + $0x20] sm:$0xf]
        %v3652 = vld [vmem:[%s3642 + $0x24] sm:$0xf]
        %v3653 = vld [vmem:[%s3642 + $0x28] sm:$0xf]
        %v3654 = vld [vmem:[%s3642 + $0x2c] sm:$0xf]
        %v3655 = vld [vmem:[%s3642 + $0x30] sm:$0xf]
        %v3656 = vld [vmem:[%s3642 + $0x34] sm:$0xf]
        %v3657 = vld [vmem:[%s3642 + $0x38] sm:$0xf]
        %v3658 = vld [vmem:[%s3642 + $0x3c] sm:$0xf]
        %v3659 = vld [vmem:[%s3642 + $0x40] sm:$0xf]
        %v3660 = vld [vmem:[%s3642 + $0x44] sm:$0xf]
        %v3661 = vld [vmem:[%s3642 + $0x48] sm:$0xf]
        %v3662 = vld [vmem:[%s3642 + $0x4c] sm:$0xf]
        %v3663 = vld [vmem:[%s3642 + $0x50] sm:$0xf]
        %v3664 = vld [vmem:[%s3642 + $0x54] sm:$0xf]
        %v3665 = vld [vmem:[%s3642 + $0x58] sm:$0xf]
        %v3666 = vld [vmem:[%s3642 + $0x5c] sm:$0xf]
        %v3667 = vld [vmem:[%s3642 + $0x60] sm:$0xf]
        %v3668 = vld [vmem:[%s3642 + $0x64] sm:$0xf]
        %v3669 = vld [vmem:[%s3642 + $0x68] sm:$0xf]
        %v3670 = vld [vmem:[%s3642 + $0x6c] sm:$0xf]
        %v3671 = vld [vmem:[%s3642 + $0x70] sm:$0xf]
        %v3672 = vld [vmem:[%s3642 + $0x74] sm:$0xf]
        %v3673 = vld [vmem:[%s3642 + $0x78] sm:$0xf]
        %v3674 = vld [vmem:[%s3642 + $0x7c] sm:$0xf]
        %v3675 = vld [vmem:[%s3642 + $0x80] sm:$0xf]
        %v3676 = vld [vmem:[%s3642 + $0x84] sm:$0xf]
        %v3677 = vld [vmem:[%s3642 + $0x88] sm:$0xf]
        %v3678 = vld [vmem:[%s3642 + $0x8c] sm:$0xf]
        %v3679 = vld [vmem:[%s3642 + $0x90] sm:$0xf]
        %v3680 = vld [vmem:[%s3642 + $0x94] sm:$0xf]
        %v3681 = vld [vmem:[%s3642 + $0x98] sm:$0xf]
        %v3682 = vld [vmem:[%s3642 + $0x9c] sm:$0xf]
        %v3683 = vld [vmem:[%s3642 + $0xa0] sm:$0xf]
        %v3684 = vld [vmem:[%s3642 + $0xa4] sm:$0xf]
        %v3685 = vld [vmem:[%s3642 + $0xa8] sm:$0xf]
        %v3686 = vld [vmem:[%s3642 + $0xac] sm:$0xf]
        %v3687 = vld [vmem:[%s3642 + $0xb0] sm:$0xf]
        %v3688 = vld [vmem:[%s3642 + $0xb4] sm:$0xf]
        %v3689 = vld [vmem:[%s3642 + $0xb8] sm:$0xf]
        %v3690 = vld [vmem:[%s3642 + $0xbc] sm:$0xf]
        %v3691 = vld [vmem:[%s3642 + $0xc0] sm:$0xf]
        %v3692 = vld [vmem:[%s3642 + $0xc4] sm:$0xf]
        %v3693 = vld [vmem:[%s3642 + $0xc8] sm:$0xf]
        %v3694 = vld [vmem:[%s3642 + $0xcc] sm:$0xf]
        %v3695 = vld [vmem:[%s3642 + $0xd0] sm:$0xf]
        %v3696 = vld [vmem:[%s3642 + $0xd4] sm:$0xf]
        %v3697 = vld [vmem:[%s3642 + $0xd8] sm:$0xf]
        %v3698 = vld [vmem:[%s3642 + $0xdc] sm:$0xf]
        %v3699 = vld [vmem:[%s3642 + $0xe0] sm:$0xf]
        %v3700 = vld [vmem:[%s3642 + $0xe4] sm:$0xf]
        %v3701 = vld [vmem:[%s3642 + $0xe8] sm:$0xf]
        %v3702 = vld [vmem:[%s3642 + $0xec] sm:$0xf]
        %v3703 = vld [vmem:[%s3642 + $0xf0] sm:$0xf]
        %v3704 = vld [vmem:[%s3642 + $0xf4] sm:$0xf]
        %v3705 = vld [vmem:[%s3642 + $0xf8] sm:$0xf]
        %v3706 = vld [vmem:[%s3642 + $0xfc] sm:$0xf]
        %v3707 = vld [vmem:[%s3642 + $0x100] sm:$0xf]
        %v3708 = vld [vmem:[%s3642 + $0x104] sm:$0xf]
        %v3709 = vld [vmem:[%s3642 + $0x108] sm:$0xf]
        %v3710 = vld [vmem:[%s3642 + $0x10c] sm:$0xf]
        %v3711 = vld [vmem:[%s3642 + $0x110] sm:$0xf]
        %v3712 = vld [vmem:[%s3642 + $0x114] sm:$0xf]
        %v3713 = vld [vmem:[%s3642 + $0x118] sm:$0xf]
        %v3714 = vld [vmem:[%s3642 + $0x11c] sm:$0xf]
        %s3715 = scalar_lea.vmem %s5, 2
        %v3716 = vld [vmem:[%s3715] sm:$0x1]
        %v3718 = vlaneseq
        %v3719 = vshrl.u32 %v3718, 7
        %v3720 = vsub.s32 0, %v3719
        %v3721 = vrot.slane %v3716, %v3720
        %v3795 = vunpack.c.l.b16 %v3643
        %v3796 = vunpack.c.l.b16 %v3644
        %v3797 = vunpack.c.l.b16 %v3645
        %v3798 = vunpack.c.l.b16 %v3646
        %v3799 = vunpack.c.l.b16 %v3647
        %v3800 = vunpack.c.l.b16 %v3648
        %v3801 = vunpack.c.l.b16 %v3649
        %v3802 = vunpack.c.l.b16 %v3650
        %v3803 = vunpack.c.l.b16 %v3651
        %v3804 = vunpack.c.l.b16 %v3652
        %v3805 = vunpack.c.l.b16 %v3653
        %v3806 = vunpack.c.l.b16 %v3654
        %v3807 = vunpack.c.l.b16 %v3655
        %v3808 = vunpack.c.l.b16 %v3656
        %v3809 = vunpack.c.l.b16 %v3657
        %v3810 = vunpack.c.l.b16 %v3658
        %v3811 = vunpack.c.l.b16 %v3659
        %v3812 = vunpack.c.l.b16 %v3660
        %v3813 = vunpack.c.l.b16 %v3661
        %v3814 = vunpack.c.l.b16 %v3662
        %v3815 = vunpack.c.l.b16 %v3663
        %v3816 = vunpack.c.l.b16 %v3664
        %v3817 = vunpack.c.l.b16 %v3665
        %v3818 = vunpack.c.l.b16 %v3666
        %v3819 = vunpack.c.l.b16 %v3667
        %v3820 = vunpack.c.l.b16 %v3668
        %v3821 = vunpack.c.l.b16 %v3669
        %v3822 = vunpack.c.l.b16 %v3670
        %v3823 = vunpack.c.l.b16 %v3671
        %v3824 = vunpack.c.l.b16 %v3672
        %v3825 = vunpack.c.l.b16 %v3673
        %v3826 = vunpack.c.l.b16 %v3674
        %v3827 = vunpack.c.l.b16 %v3675
        %v3828 = vunpack.c.l.b16 %v3676
        %v3829 = vunpack.c.l.b16 %v3677
        %v3830 = vunpack.c.l.b16 %v3678
        %v3831 = vunpack.c.l.b16 %v3679
        %v3832 = vunpack.c.l.b16 %v3680
        %v3833 = vunpack.c.l.b16 %v3681
        %v3834 = vunpack.c.l.b16 %v3682
        %v3835 = vunpack.c.l.b16 %v3683
        %v3836 = vunpack.c.l.b16 %v3684
        %v3837 = vunpack.c.l.b16 %v3685
        %v3838 = vunpack.c.l.b16 %v3686
        %v3839 = vunpack.c.l.b16 %v3687
        %v3840 = vunpack.c.l.b16 %v3688
        %v3841 = vunpack.c.l.b16 %v3689
        %v3842 = vunpack.c.l.b16 %v3690
        %v3843 = vunpack.c.l.b16 %v3691
        %v3844 = vunpack.c.l.b16 %v3692
        %v3845 = vunpack.c.l.b16 %v3693
        %v3846 = vunpack.c.l.b16 %v3694
        %v3847 = vunpack.c.l.b16 %v3695
        %v3848 = vunpack.c.l.b16 %v3696
        %v3849 = vunpack.c.l.b16 %v3697
        %v3850 = vunpack.c.l.b16 %v3698
        %v3851 = vunpack.c.l.b16 %v3699
        %v3852 = vunpack.c.l.b16 %v3700
        %v3853 = vunpack.c.l.b16 %v3701
        %v3854 = vunpack.c.l.b16 %v3702
        %v3855 = vunpack.c.l.b16 %v3703
        %v3856 = vunpack.c.l.b16 %v3704
        %v3857 = vunpack.c.l.b16 %v3705
        %v3858 = vunpack.c.l.b16 %v3706
        %v3859 = vunpack.c.l.b16 %v3707
        %v3860 = vunpack.c.l.b16 %v3708
        %v3861 = vunpack.c.l.b16 %v3709
        %v3862 = vunpack.c.l.b16 %v3710
        %v3863 = vunpack.c.l.b16 %v3711
        %v3864 = vunpack.c.l.b16 %v3712
        %v3865 = vunpack.c.l.b16 %v3713
        %v3866 = vunpack.c.l.b16 %v3714
        %v3867 = vpack.c.b16 %v3796, %v3795
        %v3868 = vpack.c.b16 %v3798, %v3797
        %v3869 = vpack.c.b16 %v3800, %v3799
        %v3870 = vpack.c.b16 %v3802, %v3801
        %v3871 = vpack.c.b16 %v3804, %v3803
        %v3872 = vpack.c.b16 %v3806, %v3805
        %v3873 = vpack.c.b16 %v3808, %v3807
        %v3874 = vpack.c.b16 %v3810, %v3809
        %v3875 = vpack.c.b16 %v3812, %v3811
        %v3876 = vpack.c.b16 %v3814, %v3813
        %v3877 = vpack.c.b16 %v3816, %v3815
        %v3878 = vpack.c.b16 %v3818, %v3817
        %v3879 = vpack.c.b16 %v3820, %v3819
        %v3880 = vpack.c.b16 %v3822, %v3821
        %v3881 = vpack.c.b16 %v3824, %v3823
        %v3882 = vpack.c.b16 %v3826, %v3825
        %v3883 = vpack.c.b16 %v3828, %v3827
        %v3884 = vpack.c.b16 %v3830, %v3829
        %v3885 = vpack.c.b16 %v3832, %v3831
        %v3886 = vpack.c.b16 %v3834, %v3833
        %v3887 = vpack.c.b16 %v3836, %v3835
        %v3888 = vpack.c.b16 %v3838, %v3837
        %v3889 = vpack.c.b16 %v3840, %v3839
        %v3890 = vpack.c.b16 %v3842, %v3841
        %v3891 = vpack.c.b16 %v3844, %v3843
        %v3892 = vpack.c.b16 %v3846, %v3845
        %v3893 = vpack.c.b16 %v3848, %v3847
        %v3894 = vpack.c.b16 %v3850, %v3849
        %v3895 = vpack.c.b16 %v3852, %v3851
        %v3896 = vpack.c.b16 %v3854, %v3853
        %v3897 = vpack.c.b16 %v3856, %v3855
        %v3898 = vpack.c.b16 %v3858, %v3857
        %v3899 = vpack.c.b16 %v3860, %v3859
        %v3900 = vpack.c.b16 %v3862, %v3861
        %v3901 = vpack.c.b16 %v3864, %v3863
        %v3902 = vpack.c.b16 %v3866, %v3865
        %v3940 = vsel %vm2095, %v3574, 0
        %v3943 = vsel %vm2095, %v3575, 0
        %v3946 = vsel %vm2095, %v3576, 0
        %v3949 = vsel %vm2095, %v3577, 0
        %3951 = vmatprep.subr.bf16.mxu0 0
        %3952 = vmatpush1.bf16.msra.mxu0 %v3867
        %3953 = vmatprep.subr.bf16.mxu0 0
        %3954 = vmatpush1.bf16.msra.mxu0 %v3868
        %3955 = vmatprep.subr.bf16.mxu0 0
        %3956 = vmatpush1.bf16.msra.mxu0 %v3869
        %3957 = vmatprep.subr.bf16.mxu0 0
        %3958 = vmatpush1.bf16.msra.mxu0 %v3870
        %3959 = vmatprep.subr.bf16.mxu0 0
        %3960 = vmatpush1.bf16.msra.mxu0 %v3871
        %3961 = vmatprep.subr.bf16.mxu0 0
        %3962 = vmatpush1.bf16.msra.mxu0 %v3872
        %3963 = vmatprep.subr.bf16.mxu0 0
        %3964 = vmatpush1.bf16.msra.mxu0 %v3873
        %3965 = vmatprep.subr.bf16.mxu0 0
        %3966 = vmatpush1.bf16.msra.mxu0 %v3874
        %3967 = vmatprep.subr.bf16.mxu0 0
        %3968 = vmatpush1.bf16.msra.mxu0 %v3875
        %3969 = vmatprep.subr.bf16.mxu0 0
        %3970 = vmatpush1.bf16.msra.mxu0 %v3876
        %3971 = vmatprep.subr.bf16.mxu0 0
        %3972 = vmatpush1.bf16.msra.mxu0 %v3877
        %3973 = vmatprep.subr.bf16.mxu0 0
        %3974 = vmatpush1.bf16.msra.mxu0 %v3878
        %3975 = vmatprep.subr.bf16.mxu0 0
        %3976 = vmatpush1.bf16.msra.mxu0 %v3879
        %3977 = vmatprep.subr.bf16.mxu0 0
        %3978 = vmatpush1.bf16.msra.mxu0 %v3880
        %3979 = vmatprep.subr.bf16.mxu0 0
        %3980 = vmatpush1.bf16.msra.mxu0 %v3881
        %3981 = vmatprep.subr.bf16.mxu0 0
        %3982 = vmatpush1.bf16.msra.mxu0 %v3882
        %3983 = vmatprep.mubr.bf16.mxu0 %v3596
        %3984 = vmatmul.mubr.bf16.gmra.mrb[0].mxu0 %v3580
        %v3985 = vpop.f32.mrb[0].mxu0
        %v3986 = vadd.f32 %v3721, %v3985
        %v3987 = vpop.f32.mrb[0].mxu0
        %v3988 = vpop.f32.mrb[0].mxu0
        %v3989 = vadd.f32 %v3721, %v3988
        %v3990 = vpop.f32.mrb[0].mxu0
        %3991 = vmatprep.mubr.bf16.mxu0 %v3600
        %3992 = vmatmul.mubr.bf16.gmra.mrb[0].mxu0 %v3584
        %v3993 = vpop.f32.mrb[0].mxu0
        %v3994 = vadd.f32 %v3721, %v3993
        %v3995 = vpop.f32.mrb[0].mxu0
        %v3996 = vpop.f32.mrb[0].mxu0
        %v3997 = vadd.f32 %v3721, %v3996
        %v3998 = vpop.f32.mrb[0].mxu0
        %3999 = vmatprep.mubr.bf16.mxu0 %v3604
        %4000 = vmatmul.mubr.bf16.gmra.mrb[0].mxu0 %v3588
        %v4001 = vpop.f32.mrb[0].mxu0
        %v4002 = vadd.f32 %v3721, %v4001
        %v4003 = vpop.f32.mrb[0].mxu0
        %v4004 = vpop.f32.mrb[0].mxu0
        %v4005 = vadd.f32 %v3721, %v4004
        %v4006 = vpop.f32.mrb[0].mxu0
        %4007 = vmatprep.mubr.bf16.mxu0 %v3608
        %4008 = vmatmul.mubr.bf16.gmra.mrb[0].mxu0 %v3592
        %v4009 = vpop.f32.mrb[0].mxu0
        %v4010 = vadd.f32 %v3721, %v4009
        %v4011 = vpop.f32.mrb[0].mxu0
        %v4012 = vpop.f32.mrb[0].mxu0
        %v4013 = vadd.f32 %v3721, %v4012
        %v4014 = vpop.f32.mrb[0].mxu0
        %4015 = vdwg.mxu0
        %4016 = vmatprep.subr.bf16.mxu0 0
        %4017 = vmatpush1.bf16.msra.mxu0 %v3883
        %4018 = vmatprep.subr.bf16.mxu0 0
        %4019 = vmatpush1.bf16.msra.mxu0 %v3884
        %4020 = vmatprep.subr.bf16.mxu0 0
        %4021 = vmatpush1.bf16.msra.mxu0 %v3885
        %4022 = vmatprep.subr.bf16.mxu0 0
        %4023 = vmatpush1.bf16.msra.mxu0 %v3886
        %4024 = vmatprep.subr.bf16.mxu0 0
        %4025 = vmatpush1.bf16.msra.mxu0 %v3887
        %4026 = vmatprep.subr.bf16.mxu0 0
        %4027 = vmatpush1.bf16.msra.mxu0 %v3888
        %4028 = vmatprep.subr.bf16.mxu0 0
        %4029 = vmatpush1.bf16.msra.mxu0 %v3889
        %4030 = vmatprep.subr.bf16.mxu0 0
        %4031 = vmatpush1.bf16.msra.mxu0 %v3890
        %4032 = vmatprep.subr.bf16.mxu0 0
        %4033 = vmatpush1.bf16.msra.mxu0 %v3891
        %4034 = vmatprep.subr.bf16.mxu0 0
        %4035 = vmatpush1.bf16.msra.mxu0 %v3892
        %4036 = vmatprep.subr.bf16.mxu0 0
        %4037 = vmatpush1.bf16.msra.mxu0 %v3893
        %4038 = vmatprep.subr.bf16.mxu0 0
        %4039 = vmatpush1.bf16.msra.mxu0 %v3894
        %4040 = vmatprep.subr.bf16.mxu0 0
        %4041 = vmatpush1.bf16.msra.mxu0 %v3895
        %4042 = vmatprep.subr.bf16.mxu0 0
        %4043 = vmatpush1.bf16.msra.mxu0 %v3896
        %4044 = vmatprep.subr.bf16.mxu0 0
        %4045 = vmatpush1.bf16.msra.mxu0 %v3897
        %4046 = vmatprep.subr.bf16.mxu0 0
        %4047 = vmatpush1.bf16.msra.mxu0 %v3898
        %4048 = vmatprep.mubr.bf16.mxu0 %v3628
        %4049 = vmatmul.mubr.bf16.gmra.mrb[0].mxu0 %v3612
        %v4050 = vpop.f32.mrb[0].mxu0
        %v4051 = vadd.f32 %v3986, %v4050
        %v4052 = vpop.f32.mrb[0].mxu0
        %v4053 = vpop.f32.mrb[0].mxu0
        %v4054 = vadd.f32 %v3989, %v4053
        %v4055 = vpop.f32.mrb[0].mxu0
        %4056 = vmatprep.mubr.bf16.mxu0 %v3632
        %4057 = vmatmul.mubr.bf16.gmra.mrb[0].mxu0 %v3616
        %v4058 = vpop.f32.mrb[0].mxu0
        %v4059 = vadd.f32 %v3994, %v4058
        %v4060 = vpop.f32.mrb[0].mxu0
        %v4061 = vpop.f32.mrb[0].mxu0
        %v4062 = vadd.f32 %v3997, %v4061
        %v4063 = vpop.f32.mrb[0].mxu0
        %4064 = vmatprep.mubr.bf16.mxu0 %v3636
        %4065 = vmatmul.mubr.bf16.gmra.mrb[0].mxu0 %v3620
        %v4066 = vpop.f32.mrb[0].mxu0
        %v4067 = vadd.f32 %v4002, %v4066
        %v4068 = vpop.f32.mrb[0].mxu0
        %v4069 = vpop.f32.mrb[0].mxu0
        %v4070 = vadd.f32 %v4005, %v4069
        %v4071 = vpop.f32.mrb[0].mxu0
        %4072 = vmatprep.mubr.bf16.mxu0 %v3640
        %4073 = vmatmul.mubr.bf16.gmra.mrb[0].mxu0 %v3624
        %v4074 = vpop.f32.mrb[0].mxu0
        %v4075 = vadd.f32 %v4010, %v4074
        %v4076 = vpop.f32.mrb[0].mxu0
        %v4077 = vpop.f32.mrb[0].mxu0
        %v4078 = vadd.f32 %v4013, %v4077
        %v4079 = vpop.f32.mrb[0].mxu0
        %4080 = vdwg.mxu0
        %4081 = vmatprep.subr.bf16.mxu0 0
        %4082 = vmatpush1.bf16.msra.mxu0 %v3899
        %4083 = vmatprep.subr.bf16.mxu0 0
        %4084 = vmatpush1.bf16.msra.mxu0 %v3900
        %4085 = vmatprep.subr.bf16.mxu0 0
        %4086 = vmatpush1.bf16.msra.mxu0 %v3901
        %4087 = vmatprep.subr.bf16.mxu0 0
        %4088 = vmatpush1.bf16.msra.mxu0 %v3902
        %4089 = vmatprep.subr.bf16.mxu0 0
        %4090 = vmatpush1.bf16.msra.mxu0 0
        %4091 = vmatprep.subr.bf16.mxu0 0
        %4092 = vmatpush1.bf16.msra.mxu0 0
        %4093 = vmatprep.subr.bf16.mxu0 0
        %4094 = vmatpush1.bf16.msra.mxu0 0
        %4095 = vmatprep.subr.bf16.mxu0 0
        %4096 = vmatpush1.bf16.msra.mxu0 0
        %4097 = vmatprep.subr.bf16.mxu0 0
        %4098 = vmatpush1.bf16.msra.mxu0 0
        %4099 = vmatprep.subr.bf16.mxu0 0
        %4100 = vmatpush1.bf16.msra.mxu0 0
        %4101 = vmatprep.subr.bf16.mxu0 0
        %4102 = vmatpush1.bf16.msra.mxu0 0
        %4103 = vmatprep.subr.bf16.mxu0 0
        %4104 = vmatpush1.bf16.msra.mxu0 0
        %4105 = vmatprep.subr.bf16.mxu0 0
        %4106 = vmatpush1.bf16.msra.mxu0 0
        %4107 = vmatprep.subr.bf16.mxu0 0
        %4108 = vmatpush1.bf16.msra.mxu0 0
        %4109 = vmatprep.subr.bf16.mxu0 0
        %4110 = vmatpush1.bf16.msra.mxu0 0
        %4111 = vmatprep.subr.bf16.mxu0 0
        %4112 = vmatpush1.bf16.msra.mxu0 0
        %4113 = vmatprep.mubr.bf16.mxu0 0
        %4114 = vmatmul.mubr.bf16.gmra.mrb[0].mxu0 %v3940
        %v4115 = vpop.f32.mrb[0].mxu0
        %v4116 = vadd.f32 %v4051, %v4115
        %v4117 = vpop.f32.mrb[0].mxu0
        %v4118 = vpop.f32.mrb[0].mxu0
        %v4119 = vadd.f32 %v4054, %v4118
        %v4120 = vpop.f32.mrb[0].mxu0
        %4121 = vmatprep.mubr.bf16.mxu0 0
        %4122 = vmatmul.mubr.bf16.gmra.mrb[0].mxu0 %v3943
        %v4123 = vpop.f32.mrb[0].mxu0
        %v4124 = vadd.f32 %v4059, %v4123
        %v4125 = vpop.f32.mrb[0].mxu0
        %v4126 = vpop.f32.mrb[0].mxu0
        %v4127 = vadd.f32 %v4062, %v4126
        %v4128 = vpop.f32.mrb[0].mxu0
        %4129 = vmatprep.mubr.bf16.mxu0 0
        %4130 = vmatmul.mubr.bf16.gmra.mrb[0].mxu0 %v3946
        %v4131 = vpop.f32.mrb[0].mxu0
        %v4132 = vadd.f32 %v4067, %v4131
        %v4133 = vpop.f32.mrb[0].mxu0
        %v4134 = vpop.f32.mrb[0].mxu0
        %v4135 = vadd.f32 %v4070, %v4134
        %v4136 = vpop.f32.mrb[0].mxu0
        %4137 = vmatprep.mubr.bf16.mxu0 0
        %4138 = vmatmul.mubr.bf16.gmra.mrb[0].mxu0 %v3949
        %v4139 = vpop.f32.mrb[0].mxu0
        %v4140 = vadd.f32 %v4075, %v4139
        %v4141 = vpop.f32.mrb[0].mxu0
        %v4142 = vpop.f32.mrb[0].mxu0
        %v4143 = vadd.f32 %v4078, %v4142
        %v4144 = vpop.f32.mrb[0].mxu0
        %4145 = vdwg.mxu0
        %v4146 = vmax.f32 %v4116, 0.0
        %v4147 = vmax.f32 %v4119, 0.0
        %v4148 = vmax.f32 %v4124, 0.0
        %v4149 = vmax.f32 %v4127, 0.0
        %v4150 = vmax.f32 %v4132, 0.0
        %v4151 = vmax.f32 %v4135, 0.0
        %v4152 = vmax.f32 %v4140, 0.0
        %v4153 = vmax.f32 %v4143, 0.0
        %v4154 = vadd.f32 %v4146, %v4147
        %v4155 = vadd.f32 %v4154, %v4148
        %v4156 = vadd.f32 %v4155, %v4149
        %v4157 = vadd.f32 %v4156, %v4150
        %v4158 = vadd.f32 %v4157, %v4151
        %v4159 = vadd.f32 %v4158, %v4152
        %v4160 = vadd.f32 %v4159, %v4153
        %v4161 = vrot.slane %v4160, 4
        %v4162 = vadd.f32 %v4160, %v4161
        %v4163 = vrot.slane %v4162, 2
        %v4164 = vadd.f32 %v4162, %v4163
        %v4165 = vrot.slane %v4164, 1
        %v4166 = vadd.f32 %v4164, %v4165
        %4167 = vrot.lane.b32.xlu0 %v3347, 64
        %v4168 = vpop.permute.xlu0 %4167
        %4169 = vrot.lane.b32.xlu0 %v3348, 64
        %v4170 = vpop.permute.xlu0 %4169
        %4171 = vrot.lane.b32.xlu0 %v3349, 64
        %v4172 = vpop.permute.xlu0 %4171
        %4173 = vrot.lane.b32.xlu0 %v3350, 64
        %v4174 = vpop.permute.xlu0 %4173
        %4175 = vrot.lane.b32.xlu0 %v3423, 64
        %v4176 = vpop.permute.xlu0 %4175
        %4177 = vrot.lane.b32.xlu0 %v3425, 64
        %v4178 = vpop.permute.xlu0 %4177
        %4179 = vrot.lane.b32.xlu0 %v3427, 64
        %v4180 = vpop.permute.xlu0 %4179
        %4181 = vrot.lane.b32.xlu0 %v3429, 64
        %v4182 = vpop.permute.xlu0 %4181
        %4183 = vrot.lane.b32.xlu0 %v3475, 64
        %v4184 = vpop.permute.xlu0 %4183
        %4185 = vrot.lane.b32.xlu0 %v3477, 64
        %v4186 = vpop.permute.xlu0 %4185
        %4187 = vrot.lane.b32.xlu0 %v3479, 64
        %v4188 = vpop.permute.xlu0 %4187
        %4189 = vrot.lane.b32.xlu0 %v3481, 64
        %v4190 = vpop.permute.xlu0 %4189
        %4191 = vrot.lane.b32.xlu0 %v3527, 64
        %v4192 = vpop.permute.xlu0 %4191
        %4193 = vrot.lane.b32.xlu0 %v3529, 64
        %v4194 = vpop.permute.xlu0 %4193
        %4195 = vrot.lane.b32.xlu0 %v3531, 64
        %v4196 = vpop.permute.xlu0 %4195
        %4197 = vrot.lane.b32.xlu0 %v3533, 64
        %v4198 = vpop.permute.xlu0 %4197
        %4199 = vrot.lane.b32.xlu0 %v3574, 64
        %v4200 = vpop.permute.xlu0 %4199
        %4201 = vrot.lane.b32.xlu0 %v3575, 64
        %v4202 = vpop.permute.xlu0 %4201
        %4203 = vrot.lane.b32.xlu0 %v3576, 64
        %v4204 = vpop.permute.xlu0 %4203
        %4205 = vrot.lane.b32.xlu0 %v3577, 64
        %v4206 = vpop.permute.xlu0 %4205
        %v4209 = vsel %vm2095, %v4168, %v3385
        %v4213 = vsel %vm2095, %v4170, %v3393
        %v4217 = vsel %vm2095, %v4172, %v3401
        %v4221 = vsel %vm2095, %v4174, %v3409
        %v4225 = vsel %vm2095, %v4176, %v3444
        %v4229 = vsel %vm2095, %v4178, %v3448
        %v4233 = vsel %vm2095, %v4180, %v3452
        %v4237 = vsel %vm2095, %v4182, %v3461
        %v4241 = vsel %vm2095, %v4184, %v3496
        %v4245 = vsel %vm2095, %v4186, %v3500
        %v4249 = vsel %vm2095, %v4188, %v3504
        %v4253 = vsel %vm2095, %v4190, %v3513
        %v4257 = vsel %vm2095, %v4192, %v3548
        %v4261 = vsel %vm2095, %v4194, %v3552
        %v4265 = vsel %vm2095, %v4196, %v3556
        %v4269 = vsel %vm2095, %v4198, %v3565
        %s4271 = scalar_lea.vmem %s4, 864
        %v4272 = vld [vmem:[%s4271] sm:$0xf]
        %v4273 = vld [vmem:[%s4271 + $0x4] sm:$0xf]
        %v4274 = vld [vmem:[%s4271 + $0x8] sm:$0xf]
        %v4275 = vld [vmem:[%s4271 + $0xc] sm:$0xf]
        %v4276 = vld [vmem:[%s4271 + $0x10] sm:$0xf]
        %v4277 = vld [vmem:[%s4271 + $0x14] sm:$0xf]
        %v4278 = vld [vmem:[%s4271 + $0x18] sm:$0xf]
        %v4279 = vld [vmem:[%s4271 + $0x1c] sm:$0xf]
        %v4280 = vld [vmem:[%s4271 + $0x20] sm:$0xf]
        %v4281 = vld [vmem:[%s4271 + $0x24] sm:$0xf]
        %v4282 = vld [vmem:[%s4271 + $0x28] sm:$0xf]
        %v4283 = vld [vmem:[%s4271 + $0x2c] sm:$0xf]
        %v4284 = vld [vmem:[%s4271 + $0x30] sm:$0xf]
        %v4285 = vld [vmem:[%s4271 + $0x34] sm:$0xf]
        %v4286 = vld [vmem:[%s4271 + $0x38] sm:$0xf]
        %v4287 = vld [vmem:[%s4271 + $0x3c] sm:$0xf]
        %v4288 = vld [vmem:[%s4271 + $0x40] sm:$0xf]
        %v4289 = vld [vmem:[%s4271 + $0x44] sm:$0xf]
        %v4290 = vld [vmem:[%s4271 + $0x48] sm:$0xf]
        %v4291 = vld [vmem:[%s4271 + $0x4c] sm:$0xf]
        %v4292 = vld [vmem:[%s4271 + $0x50] sm:$0xf]
        %v4293 = vld [vmem:[%s4271 + $0x54] sm:$0xf]
        %v4294 = vld [vmem:[%s4271 + $0x58] sm:$0xf]
        %v4295 = vld [vmem:[%s4271 + $0x5c] sm:$0xf]
        %v4296 = vld [vmem:[%s4271 + $0x60] sm:$0xf]
        %v4297 = vld [vmem:[%s4271 + $0x64] sm:$0xf]
        %v4298 = vld [vmem:[%s4271 + $0x68] sm:$0xf]
        %v4299 = vld [vmem:[%s4271 + $0x6c] sm:$0xf]
        %v4300 = vld [vmem:[%s4271 + $0x70] sm:$0xf]
        %v4301 = vld [vmem:[%s4271 + $0x74] sm:$0xf]
        %v4302 = vld [vmem:[%s4271 + $0x78] sm:$0xf]
        %v4303 = vld [vmem:[%s4271 + $0x7c] sm:$0xf]
        %v4304 = vld [vmem:[%s4271 + $0x80] sm:$0xf]
        %v4305 = vld [vmem:[%s4271 + $0x84] sm:$0xf]
        %v4306 = vld [vmem:[%s4271 + $0x88] sm:$0xf]
        %v4307 = vld [vmem:[%s4271 + $0x8c] sm:$0xf]
        %v4308 = vld [vmem:[%s4271 + $0x90] sm:$0xf]
        %v4309 = vld [vmem:[%s4271 + $0x94] sm:$0xf]
        %v4310 = vld [vmem:[%s4271 + $0x98] sm:$0xf]
        %v4311 = vld [vmem:[%s4271 + $0x9c] sm:$0xf]
        %v4312 = vld [vmem:[%s4271 + $0xa0] sm:$0xf]
        %v4313 = vld [vmem:[%s4271 + $0xa4] sm:$0xf]
        %v4314 = vld [vmem:[%s4271 + $0xa8] sm:$0xf]
        %v4315 = vld [vmem:[%s4271 + $0xac] sm:$0xf]
        %v4316 = vld [vmem:[%s4271 + $0xb0] sm:$0xf]
        %v4317 = vld [vmem:[%s4271 + $0xb4] sm:$0xf]
        %v4318 = vld [vmem:[%s4271 + $0xb8] sm:$0xf]
        %v4319 = vld [vmem:[%s4271 + $0xbc] sm:$0xf]
        %v4320 = vld [vmem:[%s4271 + $0xc0] sm:$0xf]
        %v4321 = vld [vmem:[%s4271 + $0xc4] sm:$0xf]
        %v4322 = vld [vmem:[%s4271 + $0xc8] sm:$0xf]
        %v4323 = vld [vmem:[%s4271 + $0xcc] sm:$0xf]
        %v4324 = vld [vmem:[%s4271 + $0xd0] sm:$0xf]
        %v4325 = vld [vmem:[%s4271 + $0xd4] sm:$0xf]
        %v4326 = vld [vmem:[%s4271 + $0xd8] sm:$0xf]
        %v4327 = vld [vmem:[%s4271 + $0xdc] sm:$0xf]
        %v4328 = vld [vmem:[%s4271 + $0xe0] sm:$0xf]
        %v4329 = vld [vmem:[%s4271 + $0xe4] sm:$0xf]
        %v4330 = vld [vmem:[%s4271 + $0xe8] sm:$0xf]
        %v4331 = vld [vmem:[%s4271 + $0xec] sm:$0xf]
        %v4332 = vld [vmem:[%s4271 + $0xf0] sm:$0xf]
        %v4333 = vld [vmem:[%s4271 + $0xf4] sm:$0xf]
        %v4334 = vld [vmem:[%s4271 + $0xf8] sm:$0xf]
        %v4335 = vld [vmem:[%s4271 + $0xfc] sm:$0xf]
        %v4336 = vld [vmem:[%s4271 + $0x100] sm:$0xf]
        %v4337 = vld [vmem:[%s4271 + $0x104] sm:$0xf]
        %v4338 = vld [vmem:[%s4271 + $0x108] sm:$0xf]
        %v4339 = vld [vmem:[%s4271 + $0x10c] sm:$0xf]
        %v4340 = vld [vmem:[%s4271 + $0x110] sm:$0xf]
        %v4341 = vld [vmem:[%s4271 + $0x114] sm:$0xf]
        %v4342 = vld [vmem:[%s4271 + $0x118] sm:$0xf]
        %v4343 = vld [vmem:[%s4271 + $0x11c] sm:$0xf]
        %s4344 = scalar_lea.vmem %s5, 3
        %v4345 = vld [vmem:[%s4344] sm:$0x1]
        %v4347 = vlaneseq
        %v4348 = vshrl.u32 %v4347, 7
        %v4349 = vsub.s32 0, %v4348
        %v4350 = vrot.slane %v4345, %v4349
        %v4424 = vunpack.c.l.b16 %v4272
        %v4425 = vunpack.c.l.b16 %v4273
        %v4426 = vunpack.c.l.b16 %v4274
        %v4427 = vunpack.c.l.b16 %v4275
        %v4428 = vunpack.c.l.b16 %v4276
        %v4429 = vunpack.c.l.b16 %v4277
        %v4430 = vunpack.c.l.b16 %v4278
        %v4431 = vunpack.c.l.b16 %v4279
        %v4432 = vunpack.c.l.b16 %v4280
        %v4433 = vunpack.c.l.b16 %v4281
        %v4434 = vunpack.c.l.b16 %v4282
        %v4435 = vunpack.c.l.b16 %v4283
        %v4436 = vunpack.c.l.b16 %v4284
        %v4437 = vunpack.c.l.b16 %v4285
        %v4438 = vunpack.c.l.b16 %v4286
        %v4439 = vunpack.c.l.b16 %v4287
        %v4440 = vunpack.c.l.b16 %v4288
        %v4441 = vunpack.c.l.b16 %v4289
        %v4442 = vunpack.c.l.b16 %v4290
        %v4443 = vunpack.c.l.b16 %v4291
        %v4444 = vunpack.c.l.b16 %v4292
        %v4445 = vunpack.c.l.b16 %v4293
        %v4446 = vunpack.c.l.b16 %v4294
        %v4447 = vunpack.c.l.b16 %v4295
        %v4448 = vunpack.c.l.b16 %v4296
        %v4449 = vunpack.c.l.b16 %v4297
        %v4450 = vunpack.c.l.b16 %v4298
        %v4451 = vunpack.c.l.b16 %v4299
        %v4452 = vunpack.c.l.b16 %v4300
        %v4453 = vunpack.c.l.b16 %v4301
        %v4454 = vunpack.c.l.b16 %v4302
        %v4455 = vunpack.c.l.b16 %v4303
        %v4456 = vunpack.c.l.b16 %v4304
        %v4457 = vunpack.c.l.b16 %v4305
        %v4458 = vunpack.c.l.b16 %v4306
        %v4459 = vunpack.c.l.b16 %v4307
        %v4460 = vunpack.c.l.b16 %v4308
        %v4461 = vunpack.c.l.b16 %v4309
        %v4462 = vunpack.c.l.b16 %v4310
        %v4463 = vunpack.c.l.b16 %v4311
        %v4464 = vunpack.c.l.b16 %v4312
        %v4465 = vunpack.c.l.b16 %v4313
        %v4466 = vunpack.c.l.b16 %v4314
        %v4467 = vunpack.c.l.b16 %v4315
        %v4468 = vunpack.c.l.b16 %v4316
        %v4469 = vunpack.c.l.b16 %v4317
        %v4470 = vunpack.c.l.b16 %v4318
        %v4471 = vunpack.c.l.b16 %v4319
        %v4472 = vunpack.c.l.b16 %v4320
        %v4473 = vunpack.c.l.b16 %v4321
        %v4474 = vunpack.c.l.b16 %v4322
        %v4475 = vunpack.c.l.b16 %v4323
        %v4476 = vunpack.c.l.b16 %v4324
        %v4477 = vunpack.c.l.b16 %v4325
        %v4478 = vunpack.c.l.b16 %v4326
        %v4479 = vunpack.c.l.b16 %v4327
        %v4480 = vunpack.c.l.b16 %v4328
        %v4481 = vunpack.c.l.b16 %v4329
        %v4482 = vunpack.c.l.b16 %v4330
        %v4483 = vunpack.c.l.b16 %v4331
        %v4484 = vunpack.c.l.b16 %v4332
        %v4485 = vunpack.c.l.b16 %v4333
        %v4486 = vunpack.c.l.b16 %v4334
        %v4487 = vunpack.c.l.b16 %v4335
        %v4488 = vunpack.c.l.b16 %v4336
        %v4489 = vunpack.c.l.b16 %v4337
        %v4490 = vunpack.c.l.b16 %v4338
        %v4491 = vunpack.c.l.b16 %v4339
        %v4492 = vunpack.c.l.b16 %v4340
        %v4493 = vunpack.c.l.b16 %v4341
        %v4494 = vunpack.c.l.b16 %v4342
        %v4495 = vunpack.c.l.b16 %v4343
        %v4496 = vpack.c.b16 %v4425, %v4424
        %v4497 = vpack.c.b16 %v4427, %v4426
        %v4498 = vpack.c.b16 %v4429, %v4428
        %v4499 = vpack.c.b16 %v4431, %v4430
        %v4500 = vpack.c.b16 %v4433, %v4432
        %v4501 = vpack.c.b16 %v4435, %v4434
        %v4502 = vpack.c.b16 %v4437, %v4436
        %v4503 = vpack.c.b16 %v4439, %v4438
        %v4504 = vpack.c.b16 %v4441, %v4440
        %v4505 = vpack.c.b16 %v4443, %v4442
        %v4506 = vpack.c.b16 %v4445, %v4444
        %v4507 = vpack.c.b16 %v4447, %v4446
        %v4508 = vpack.c.b16 %v4449, %v4448
        %v4509 = vpack.c.b16 %v4451, %v4450
        %v4510 = vpack.c.b16 %v4453, %v4452
        %v4511 = vpack.c.b16 %v4455, %v4454
        %v4512 = vpack.c.b16 %v4457, %v4456
        %v4513 = vpack.c.b16 %v4459, %v4458
        %v4514 = vpack.c.b16 %v4461, %v4460
        %v4515 = vpack.c.b16 %v4463, %v4462
        %v4516 = vpack.c.b16 %v4465, %v4464
        %v4517 = vpack.c.b16 %v4467, %v4466
        %v4518 = vpack.c.b16 %v4469, %v4468
        %v4519 = vpack.c.b16 %v4471, %v4470
        %v4520 = vpack.c.b16 %v4473, %v4472
        %v4521 = vpack.c.b16 %v4475, %v4474
        %v4522 = vpack.c.b16 %v4477, %v4476
        %v4523 = vpack.c.b16 %v4479, %v4478
        %v4524 = vpack.c.b16 %v4481, %v4480
        %v4525 = vpack.c.b16 %v4483, %v4482
        %v4526 = vpack.c.b16 %v4485, %v4484
        %v4527 = vpack.c.b16 %v4487, %v4486
        %v4528 = vpack.c.b16 %v4489, %v4488
        %v4529 = vpack.c.b16 %v4491, %v4490
        %v4530 = vpack.c.b16 %v4493, %v4492
        %v4531 = vpack.c.b16 %v4495, %v4494
        %v4569 = vsel %vm2095, %v4200, 0
        %v4572 = vsel %vm2095, %v4202, 0
        %v4575 = vsel %vm2095, %v4204, 0
        %v4578 = vsel %vm2095, %v4206, 0
        %4580 = vmatprep.subr.bf16.mxu0 0
        %4581 = vmatpush1.bf16.msra.mxu0 %v4496
        %4582 = vmatprep.subr.bf16.mxu0 0
        %4583 = vmatpush1.bf16.msra.mxu0 %v4497
        %4584 = vmatprep.subr.bf16.mxu0 0
        %4585 = vmatpush1.bf16.msra.mxu0 %v4498
        %4586 = vmatprep.subr.bf16.mxu0 0
        %4587 = vmatpush1.bf16.msra.mxu0 %v4499
        %4588 = vmatprep.subr.bf16.mxu0 0
        %4589 = vmatpush1.bf16.msra.mxu0 %v4500
        %4590 = vmatprep.subr.bf16.mxu0 0
        %4591 = vmatpush1.bf16.msra.mxu0 %v4501
        %4592 = vmatprep.subr.bf16.mxu0 0
        %4593 = vmatpush1.bf16.msra.mxu0 %v4502
        %4594 = vmatprep.subr.bf16.mxu0 0
        %4595 = vmatpush1.bf16.msra.mxu0 %v4503
        %4596 = vmatprep.subr.bf16.mxu0 0
        %4597 = vmatpush1.bf16.msra.mxu0 %v4504
        %4598 = vmatprep.subr.bf16.mxu0 0
        %4599 = vmatpush1.bf16.msra.mxu0 %v4505
        %4600 = vmatprep.subr.bf16.mxu0 0
        %4601 = vmatpush1.bf16.msra.mxu0 %v4506
        %4602 = vmatprep.subr.bf16.mxu0 0
        %4603 = vmatpush1.bf16.msra.mxu0 %v4507
        %4604 = vmatprep.subr.bf16.mxu0 0
        %4605 = vmatpush1.bf16.msra.mxu0 %v4508
        %4606 = vmatprep.subr.bf16.mxu0 0
        %4607 = vmatpush1.bf16.msra.mxu0 %v4509
        %4608 = vmatprep.subr.bf16.mxu0 0
        %4609 = vmatpush1.bf16.msra.mxu0 %v4510
        %4610 = vmatprep.subr.bf16.mxu0 0
        %4611 = vmatpush1.bf16.msra.mxu0 %v4511
        %4612 = vmatprep.mubr.bf16.mxu0 %v4225
        %4613 = vmatmul.mubr.bf16.gmra.mrb[0].mxu0 %v4209
        %v4614 = vpop.f32.mrb[0].mxu0
        %v4615 = vadd.f32 %v4350, %v4614
        %v4616 = vpop.f32.mrb[0].mxu0
        %v4617 = vpop.f32.mrb[0].mxu0
        %v4618 = vadd.f32 %v4350, %v4617
        %v4619 = vpop.f32.mrb[0].mxu0
        %4620 = vmatprep.mubr.bf16.mxu0 %v4229
        %4621 = vmatmul.mubr.bf16.gmra.mrb[0].mxu0 %v4213
        %v4622 = vpop.f32.mrb[0].mxu0
        %v4623 = vadd.f32 %v4350, %v4622
        %v4624 = vpop.f32.mrb[0].mxu0
        %v4625 = vpop.f32.mrb[0].mxu0
        %v4626 = vadd.f32 %v4350, %v4625
        %v4627 = vpop.f32.mrb[0].mxu0
        %4628 = vmatprep.mubr.bf16.mxu0 %v4233
        %4629 = vmatmul.mubr.bf16.gmra.mrb[0].mxu0 %v4217
        %v4630 = vpop.f32.mrb[0].mxu0
        %v4631 = vadd.f32 %v4350, %v4630
        %v4632 = vpop.f32.mrb[0].mxu0
        %v4633 = vpop.f32.mrb[0].mxu0
        %v4634 = vadd.f32 %v4350, %v4633
        %v4635 = vpop.f32.mrb[0].mxu0
        %4636 = vmatprep.mubr.bf16.mxu0 %v4237
        %4637 = vmatmul.mubr.bf16.gmra.mrb[0].mxu0 %v4221
        %v4638 = vpop.f32.mrb[0].mxu0
        %v4639 = vadd.f32 %v4350, %v4638
        %v4640 = vpop.f32.mrb[0].mxu0
        %v4641 = vpop.f32.mrb[0].mxu0
        %v4642 = vadd.f32 %v4350, %v4641
        %v4643 = vpop.f32.mrb[0].mxu0
        %4644 = vdwg.mxu0
        %4645 = vmatprep.subr.bf16.mxu0 0
        %4646 = vmatpush1.bf16.msra.mxu0 %v4512
        %4647 = vmatprep.subr.bf16.mxu0 0
        %4648 = vmatpush1.bf16.msra.mxu0 %v4513
        %4649 = vmatprep.subr.bf16.mxu0 0
        %4650 = vmatpush1.bf16.msra.mxu0 %v4514
        %4651 = vmatprep.subr.bf16.mxu0 0
        %4652 = vmatpush1.bf16.msra.mxu0 %v4515
        %4653 = vmatprep.subr.bf16.mxu0 0
        %4654 = vmatpush1.bf16.msra.mxu0 %v4516
        %4655 = vmatprep.subr.bf16.mxu0 0
        %4656 = vmatpush1.bf16.msra.mxu0 %v4517
        %4657 = vmatprep.subr.bf16.mxu0 0
        %4658 = vmatpush1.bf16.msra.mxu0 %v4518
        %4659 = vmatprep.subr.bf16.mxu0 0
        %4660 = vmatpush1.bf16.msra.mxu0 %v4519
        %4661 = vmatprep.subr.bf16.mxu0 0
        %4662 = vmatpush1.bf16.msra.mxu0 %v4520
        %4663 = vmatprep.subr.bf16.mxu0 0
        %4664 = vmatpush1.bf16.msra.mxu0 %v4521
        %4665 = vmatprep.subr.bf16.mxu0 0
        %4666 = vmatpush1.bf16.msra.mxu0 %v4522
        %4667 = vmatprep.subr.bf16.mxu0 0
        %4668 = vmatpush1.bf16.msra.mxu0 %v4523
        %4669 = vmatprep.subr.bf16.mxu0 0
        %4670 = vmatpush1.bf16.msra.mxu0 %v4524
        %4671 = vmatprep.subr.bf16.mxu0 0
        %4672 = vmatpush1.bf16.msra.mxu0 %v4525
        %4673 = vmatprep.subr.bf16.mxu0 0
        %4674 = vmatpush1.bf16.msra.mxu0 %v4526
        %4675 = vmatprep.subr.bf16.mxu0 0
        %4676 = vmatpush1.bf16.msra.mxu0 %v4527
        %4677 = vmatprep.mubr.bf16.mxu0 %v4257
        %4678 = vmatmul.mubr.bf16.gmra.mrb[0].mxu0 %v4241
        %v4679 = vpop.f32.mrb[0].mxu0
        %v4680 = vadd.f32 %v4615, %v4679
        %v4681 = vpop.f32.mrb[0].mxu0
        %v4682 = vpop.f32.mrb[0].mxu0
        %v4683 = vadd.f32 %v4618, %v4682
        %v4684 = vpop.f32.mrb[0].mxu0
        %4685 = vmatprep.mubr.bf16.mxu0 %v4261
        %4686 = vmatmul.mubr.bf16.gmra.mrb[0].mxu0 %v4245
        %v4687 = vpop.f32.mrb[0].mxu0
        %v4688 = vadd.f32 %v4623, %v4687
        %v4689 = vpop.f32.mrb[0].mxu0
        %v4690 = vpop.f32.mrb[0].mxu0
        %v4691 = vadd.f32 %v4626, %v4690
        %v4692 = vpop.f32.mrb[0].mxu0
        %4693 = vmatprep.mubr.bf16.mxu0 %v4265
        %4694 = vmatmul.mubr.bf16.gmra.mrb[0].mxu0 %v4249
        %v4695 = vpop.f32.mrb[0].mxu0
        %v4696 = vadd.f32 %v4631, %v4695
        %v4697 = vpop.f32.mrb[0].mxu0
        %v4698 = vpop.f32.mrb[0].mxu0
        %v4699 = vadd.f32 %v4634, %v4698
        %v4700 = vpop.f32.mrb[0].mxu0
        %4701 = vmatprep.mubr.bf16.mxu0 %v4269
        %4702 = vmatmul.mubr.bf16.gmra.mrb[0].mxu0 %v4253
        %v4703 = vpop.f32.mrb[0].mxu0
        %v4704 = vadd.f32 %v4639, %v4703
        %v4705 = vpop.f32.mrb[0].mxu0
        %v4706 = vpop.f32.mrb[0].mxu0
        %v4707 = vadd.f32 %v4642, %v4706
        %v4708 = vpop.f32.mrb[0].mxu0
        %4709 = vdwg.mxu0
        %4710 = vmatprep.subr.bf16.mxu0 0
        %4711 = vmatpush1.bf16.msra.mxu0 %v4528
        %4712 = vmatprep.subr.bf16.mxu0 0
        %4713 = vmatpush1.bf16.msra.mxu0 %v4529
        %4714 = vmatprep.subr.bf16.mxu0 0
        %4715 = vmatpush1.bf16.msra.mxu0 %v4530
        %4716 = vmatprep.subr.bf16.mxu0 0
        %4717 = vmatpush1.bf16.msra.mxu0 %v4531
        %4718 = vmatprep.subr.bf16.mxu0 0
        %4719 = vmatpush1.bf16.msra.mxu0 0
        %4720 = vmatprep.subr.bf16.mxu0 0
        %4721 = vmatpush1.bf16.msra.mxu0 0
        %4722 = vmatprep.subr.bf16.mxu0 0
        %4723 = vmatpush1.bf16.msra.mxu0 0
        %4724 = vmatprep.subr.bf16.mxu0 0
        %4725 = vmatpush1.bf16.msra.mxu0 0
        %4726 = vmatprep.subr.bf16.mxu0 0
        %4727 = vmatpush1.bf16.msra.mxu0 0
        %4728 = vmatprep.subr.bf16.mxu0 0
        %4729 = vmatpush1.bf16.msra.mxu0 0
        %4730 = vmatprep.subr.bf16.mxu0 0
        %4731 = vmatpush1.bf16.msra.mxu0 0
        %4732 = vmatprep.subr.bf16.mxu0 0
        %4733 = vmatpush1.bf16.msra.mxu0 0
        %4734 = vmatprep.subr.bf16.mxu0 0
        %4735 = vmatpush1.bf16.msra.mxu0 0
        %4736 = vmatprep.subr.bf16.mxu0 0
        %4737 = vmatpush1.bf16.msra.mxu0 0
        %4738 = vmatprep.subr.bf16.mxu0 0
        %4739 = vmatpush1.bf16.msra.mxu0 0
        %4740 = vmatprep.subr.bf16.mxu0 0
        %4741 = vmatpush1.bf16.msra.mxu0 0
        %4742 = vmatprep.mubr.bf16.mxu0 0
        %4743 = vmatmul.mubr.bf16.gmra.mrb[0].mxu0 %v4569
        %v4744 = vpop.f32.mrb[0].mxu0
        %v4745 = vadd.f32 %v4680, %v4744
        %v4746 = vpop.f32.mrb[0].mxu0
        %v4747 = vpop.f32.mrb[0].mxu0
        %v4748 = vadd.f32 %v4683, %v4747
        %v4749 = vpop.f32.mrb[0].mxu0
        %4750 = vmatprep.mubr.bf16.mxu0 0
        %4751 = vmatmul.mubr.bf16.gmra.mrb[0].mxu0 %v4572
        %v4752 = vpop.f32.mrb[0].mxu0
        %v4753 = vadd.f32 %v4688, %v4752
        %v4754 = vpop.f32.mrb[0].mxu0
        %v4755 = vpop.f32.mrb[0].mxu0
        %v4756 = vadd.f32 %v4691, %v4755
        %v4757 = vpop.f32.mrb[0].mxu0
        %4758 = vmatprep.mubr.bf16.mxu0 0
        %4759 = vmatmul.mubr.bf16.gmra.mrb[0].mxu0 %v4575
        %v4760 = vpop.f32.mrb[0].mxu0
        %v4761 = vadd.f32 %v4696, %v4760
        %v4762 = vpop.f32.mrb[0].mxu0
        %v4763 = vpop.f32.mrb[0].mxu0
        %v4764 = vadd.f32 %v4699, %v4763
        %v4765 = vpop.f32.mrb[0].mxu0
        %4766 = vmatprep.mubr.bf16.mxu0 0
        %4767 = vmatmul.mubr.bf16.gmra.mrb[0].mxu0 %v4578
        %v4768 = vpop.f32.mrb[0].mxu0
        %v4769 = vadd.f32 %v4704, %v4768
        %v4770 = vpop.f32.mrb[0].mxu0
        %v4771 = vpop.f32.mrb[0].mxu0
        %v4772 = vadd.f32 %v4707, %v4771
        %v4773 = vpop.f32.mrb[0].mxu0
        %4774 = vdwg.mxu0
        %v4775 = vmax.f32 %v4745, 0.0
        %v4776 = vmax.f32 %v4748, 0.0
        %v4777 = vmax.f32 %v4753, 0.0
        %v4778 = vmax.f32 %v4756, 0.0
        %v4779 = vmax.f32 %v4761, 0.0
        %v4780 = vmax.f32 %v4764, 0.0
        %v4781 = vmax.f32 %v4769, 0.0
        %v4782 = vmax.f32 %v4772, 0.0
        %v4783 = vadd.f32 %v4775, %v4776
        %v4784 = vadd.f32 %v4783, %v4777
        %v4785 = vadd.f32 %v4784, %v4778
        %v4786 = vadd.f32 %v4785, %v4779
        %v4787 = vadd.f32 %v4786, %v4780
        %v4788 = vadd.f32 %v4787, %v4781
        %v4789 = vadd.f32 %v4788, %v4782
        %v4790 = vrot.slane %v4789, 4
        %v4791 = vadd.f32 %v4789, %v4790
        %v4792 = vrot.slane %v4791, 2
        %v4793 = vadd.f32 %v4791, %v4792
        %v4794 = vrot.slane %v4793, 1
        %v4795 = vadd.f32 %v4793, %v4794
        %v4796 = vld [vmem:[%s6] sm:$0xff]
        %v4797 = vld [vmem:[%s6 + $0x8] sm:$0xff]
        %v4798 = vld [vmem:[%s6 + $0x10] sm:$0xff]
        %v4799 = vld [vmem:[%s6 + $0x18] sm:$0xff]
        %v4800 = vld [vmem:[%s6 + $0x20] sm:$0xff]
        %v4801 = vld [vmem:[%s6 + $0x28] sm:$0xff]
        %v4802 = vld [vmem:[%s6 + $0x30] sm:$0xff]
        %v4803 = vld [vmem:[%s6 + $0x38] sm:$0xff]
        %v4804 = vld [vmem:[%s6 + $0x40] sm:$0xff]
        %v4805 = vld [vmem:[%s6 + $0x48] sm:$0xff]
        %v4806 = vld [vmem:[%s6 + $0x50] sm:$0xff]
        %v4807 = vld [vmem:[%s6 + $0x58] sm:$0xff]
        %v4808 = vld [vmem:[%s6 + $0x60] sm:$0xff]
        %v4809 = vld [vmem:[%s6 + $0x68] sm:$0xff]
        %v4810 = vld [vmem:[%s6 + $0x70] sm:$0xff]
        %v4811 = vld [vmem:[%s6 + $0x78] sm:$0xff]
        %v4812 = vld [vmem:[%s6 + $0x80] sm:$0xff]
        %v4813 = vld [vmem:[%s6 + $0x88] sm:$0xff]
        %v4814 = vld [vmem:[%s6 + $0x90] sm:$0xff]
        %v4815 = vld [vmem:[%s6 + $0x98] sm:$0xff]
        %v4816 = vld [vmem:[%s6 + $0xa0] sm:$0xff]
        %v4817 = vld [vmem:[%s6 + $0xa8] sm:$0xff]
        %v4818 = vld [vmem:[%s6 + $0xb0] sm:$0xff]
        %v4819 = vld [vmem:[%s6 + $0xb8] sm:$0xff]
        %v4820 = vld [vmem:[%s6 + $0xc0] sm:$0xff]
        %v4821 = vld [vmem:[%s6 + $0xc8] sm:$0xff]
        %v4822 = vld [vmem:[%s6 + $0xd0] sm:$0xff]
        %v4823 = vld [vmem:[%s6 + $0xd8] sm:$0xff]
        %v4824 = vld [vmem:[%s6 + $0xe0] sm:$0xff]
        %v4825 = vld [vmem:[%s6 + $0xe8] sm:$0xff]
        %v4826 = vld [vmem:[%s6 + $0xf0] sm:$0xff]
        %v4827 = vld [vmem:[%s6 + $0xf8] sm:$0xff]
        %v4828 = vld [vmem:[%s6 + $0x100] sm:$0xff]
        %v4829 = vld [vmem:[%s6 + $0x108] sm:$0xff]
        %v4830 = vld [vmem:[%s6 + $0x110] sm:$0xff]
        %v4831 = vld [vmem:[%s6 + $0x118] sm:$0xff]
        %v4832 = vld [vmem:[%s6 + $0x120] sm:$0xff]
        %v4833 = vld [vmem:[%s6 + $0x128] sm:$0xff]
        %v4834 = vld [vmem:[%s6 + $0x130] sm:$0xff]
        %v4835 = vld [vmem:[%s6 + $0x138] sm:$0xff]
        %v4836 = vld [vmem:[%s6 + $0x140] sm:$0xff]
        %v4837 = vld [vmem:[%s6 + $0x148] sm:$0xff]
        %v4838 = vld [vmem:[%s6 + $0x150] sm:$0xff]
        %v4839 = vld [vmem:[%s6 + $0x158] sm:$0xff]
        %v4840 = vld [vmem:[%s6 + $0x160] sm:$0xff]
        %v4841 = vld [vmem:[%s6 + $0x168] sm:$0xff]
        %v4842 = vld [vmem:[%s6 + $0x170] sm:$0xff]
        %v4843 = vld [vmem:[%s6 + $0x178] sm:$0xff]
        %v4844 = vld [vmem:[%s6 + $0x180] sm:$0xff]
        %v4845 = vld [vmem:[%s6 + $0x188] sm:$0xff]
        %v4846 = vld [vmem:[%s6 + $0x190] sm:$0xff]
        %v4847 = vld [vmem:[%s6 + $0x198] sm:$0xff]
        %v4848 = vld [vmem:[%s6 + $0x1a0] sm:$0xff]
        %v4849 = vld [vmem:[%s6 + $0x1a8] sm:$0xff]
        %v4850 = vld [vmem:[%s6 + $0x1b0] sm:$0xff]
        %v4851 = vld [vmem:[%s6 + $0x1b8] sm:$0xff]
        %v4852 = vld [vmem:[%s6 + $0x1c0] sm:$0xff]
        %v4853 = vld [vmem:[%s6 + $0x1c8] sm:$0xff]
        %v4854 = vld [vmem:[%s6 + $0x1d0] sm:$0xff]
        %v4855 = vld [vmem:[%s6 + $0x1d8] sm:$0xff]
        %v4856 = vld [vmem:[%s6 + $0x1e0] sm:$0xff]
        %v4857 = vld [vmem:[%s6 + $0x1e8] sm:$0xff]
        %v4858 = vld [vmem:[%s6 + $0x1f0] sm:$0xff]
        %v4859 = vld [vmem:[%s6 + $0x1f8] sm:$0xff]
        %v4860 = vld [vmem:[%s7] sm:$0x1]
        %4861 = vmatprep.subr.mxu0 0.0
        %4862 = vmatpush1.msra.mxu0 %v4796
        %4863 = vmatprep.subr.mxu0 0.0
        %4864 = vmatpush1.msra.mxu0 %v4797
        %4865 = vmatprep.subr.mxu0 0.0
        %4866 = vmatpush1.msra.mxu0 %v4798
        %4867 = vmatprep.subr.mxu0 0.0
        %4868 = vmatpush1.msra.mxu0 %v4799
        %4869 = vmatprep.subr.mxu0 0.0
        %4870 = vmatpush1.msra.mxu0 %v4800
        %4871 = vmatprep.subr.mxu0 0.0
        %4872 = vmatpush1.msra.mxu0 %v4801
        %4873 = vmatprep.subr.mxu0 0.0
        %4874 = vmatpush1.msra.mxu0 %v4802
        %4875 = vmatprep.subr.mxu0 0.0
        %4876 = vmatpush1.msra.mxu0 %v4803
        %4877 = vmatprep.subr.mxu0 0.0
        %4878 = vmatpush1.msra.mxu0 %v4804
        %4879 = vmatprep.subr.mxu0 0.0
        %4880 = vmatpush1.msra.mxu0 %v4805
        %4881 = vmatprep.subr.mxu0 0.0
        %4882 = vmatpush1.msra.mxu0 %v4806
        %4883 = vmatprep.subr.mxu0 0.0
        %4884 = vmatpush1.msra.mxu0 %v4807
        %4885 = vmatprep.subr.mxu0 0.0
        %4886 = vmatpush1.msra.mxu0 %v4808
        %4887 = vmatprep.subr.mxu0 0.0
        %4888 = vmatpush1.msra.mxu0 %v4809
        %4889 = vmatprep.subr.mxu0 0.0
        %4890 = vmatpush1.msra.mxu0 %v4810
        %4891 = vmatprep.subr.mxu0 0.0
        %4892 = vmatpush1.msra.mxu0 %v4811
        %4893 = vmatprep.subr.mxu0 0.0
        %4894 = vmatpush1.msra.mxu0 %v4812
        %4895 = vmatprep.subr.mxu0 0.0
        %4896 = vmatpush1.msra.mxu0 %v4813
        %4897 = vmatprep.subr.mxu0 0.0
        %4898 = vmatpush1.msra.mxu0 %v4814
        %4899 = vmatprep.subr.mxu0 0.0
        %4900 = vmatpush1.msra.mxu0 %v4815
        %4901 = vmatprep.subr.mxu0 0.0
        %4902 = vmatpush1.msra.mxu0 %v4816
        %4903 = vmatprep.subr.mxu0 0.0
        %4904 = vmatpush1.msra.mxu0 %v4817
        %4905 = vmatprep.subr.mxu0 0.0
        %4906 = vmatpush1.msra.mxu0 %v4818
        %4907 = vmatprep.subr.mxu0 0.0
        %4908 = vmatpush1.msra.mxu0 %v4819
        %4909 = vmatprep.subr.mxu0 0.0
        %4910 = vmatpush1.msra.mxu0 %v4820
        %4911 = vmatprep.subr.mxu0 0.0
        %4912 = vmatpush1.msra.mxu0 %v4821
        %4913 = vmatprep.subr.mxu0 0.0
        %4914 = vmatpush1.msra.mxu0 %v4822
        %4915 = vmatprep.subr.mxu0 0.0
        %4916 = vmatpush1.msra.mxu0 %v4823
        %4917 = vmatprep.subr.mxu0 0.0
        %4918 = vmatpush1.msra.mxu0 %v4824
        %4919 = vmatprep.subr.mxu0 0.0
        %4920 = vmatpush1.msra.mxu0 %v4825
        %4921 = vmatprep.subr.mxu0 0.0
        %4922 = vmatpush1.msra.mxu0 %v4826
        %4923 = vmatprep.subr.mxu0 0.0
        %4924 = vmatpush1.msra.mxu0 %v4827
        %4925 = vmatprep.mubr.f32.mxu0 %v3307
        %4926 = vmatmul.mubr.f32.gmra.mrb[0].mxu0 %v2678
        %v4927 = vpop.f32.mrb[0].mxu0
        %v4928 = vadd.f32 %v4860, %v4927
        %v4929 = vpop.f32.mrb[0].mxu0
        %4930 = vdwg.mxu0
        %4931 = vmatprep.subr.mxu0 0.0
        %4932 = vmatpush1.msra.mxu0 %v4828
        %4933 = vmatprep.subr.mxu0 0.0
        %4934 = vmatpush1.msra.mxu0 %v4829
        %4935 = vmatprep.subr.mxu0 0.0
        %4936 = vmatpush1.msra.mxu0 %v4830
        %4937 = vmatprep.subr.mxu0 0.0
        %4938 = vmatpush1.msra.mxu0 %v4831
        %4939 = vmatprep.subr.mxu0 0.0
        %4940 = vmatpush1.msra.mxu0 %v4832
        %4941 = vmatprep.subr.mxu0 0.0
        %4942 = vmatpush1.msra.mxu0 %v4833
        %4943 = vmatprep.subr.mxu0 0.0
        %4944 = vmatpush1.msra.mxu0 %v4834
        %4945 = vmatprep.subr.mxu0 0.0
        %4946 = vmatpush1.msra.mxu0 %v4835
        %4947 = vmatprep.subr.mxu0 0.0
        %4948 = vmatpush1.msra.mxu0 %v4836
        %4949 = vmatprep.subr.mxu0 0.0
        %4950 = vmatpush1.msra.mxu0 %v4837
        %4951 = vmatprep.subr.mxu0 0.0
        %4952 = vmatpush1.msra.mxu0 %v4838
        %4953 = vmatprep.subr.mxu0 0.0
        %4954 = vmatpush1.msra.mxu0 %v4839
        %4955 = vmatprep.subr.mxu0 0.0
        %4956 = vmatpush1.msra.mxu0 %v4840
        %4957 = vmatprep.subr.mxu0 0.0
        %4958 = vmatpush1.msra.mxu0 %v4841
        %4959 = vmatprep.subr.mxu0 0.0
        %4960 = vmatpush1.msra.mxu0 %v4842
        %4961 = vmatprep.subr.mxu0 0.0
        %4962 = vmatpush1.msra.mxu0 %v4843
        %4963 = vmatprep.subr.mxu0 0.0
        %4964 = vmatpush1.msra.mxu0 %v4844
        %4965 = vmatprep.subr.mxu0 0.0
        %4966 = vmatpush1.msra.mxu0 %v4845
        %4967 = vmatprep.subr.mxu0 0.0
        %4968 = vmatpush1.msra.mxu0 %v4846
        %4969 = vmatprep.subr.mxu0 0.0
        %4970 = vmatpush1.msra.mxu0 %v4847
        %4971 = vmatprep.subr.mxu0 0.0
        %4972 = vmatpush1.msra.mxu0 %v4848
        %4973 = vmatprep.subr.mxu0 0.0
        %4974 = vmatpush1.msra.mxu0 %v4849
        %4975 = vmatprep.subr.mxu0 0.0
        %4976 = vmatpush1.msra.mxu0 %v4850
        %4977 = vmatprep.subr.mxu0 0.0
        %4978 = vmatpush1.msra.mxu0 %v4851
        %4979 = vmatprep.subr.mxu0 0.0
        %4980 = vmatpush1.msra.mxu0 %v4852
        %4981 = vmatprep.subr.mxu0 0.0
        %4982 = vmatpush1.msra.mxu0 %v4853
        %4983 = vmatprep.subr.mxu0 0.0
        %4984 = vmatpush1.msra.mxu0 %v4854
        %4985 = vmatprep.subr.mxu0 0.0
        %4986 = vmatpush1.msra.mxu0 %v4855
        %4987 = vmatprep.subr.mxu0 0.0
        %4988 = vmatpush1.msra.mxu0 %v4856
        %4989 = vmatprep.subr.mxu0 0.0
        %4990 = vmatpush1.msra.mxu0 %v4857
        %4991 = vmatprep.subr.mxu0 0.0
        %4992 = vmatpush1.msra.mxu0 %v4858
        %4993 = vmatprep.subr.mxu0 0.0
        %4994 = vmatpush1.msra.mxu0 %v4859
        %4995 = vmatprep.mubr.f32.mxu0 %v4795
        %4996 = vmatmul.mubr.f32.gmra.mrb[0].mxu0 %v4166
        %v4997 = vpop.f32.mrb[0].mxu0
        %v4998 = vadd.f32 %v4928, %v4997
        %v4999 = vpop.f32.mrb[0].mxu0
        %5000 = vdwg.mxu0
        %5001 = vst [vmem:[%s277] sm:$0x1] %v4998
        %s5002 = sand.u32 %s188, 1
        %s5003 = scalar_lea.sflag [#allocation7], %s5002
        %s5004 = sand.u32 %s188, 1
        %s5005 = scalar_lea.vmem [#allocation6], %s5004
        // Predicated region
        $region49: #{personality_forward.1} parent=47 // pred_check
          %p5006 = pneg %p198
        $region50: #{personality_forward.1} parent=47 // pred_check_branch
          %5008 = sbr.rel (%p5006) target = $region52
        $region51: #{personality_forward.1} parent=47 // pred_region
          %s5010 = ssub.s32 16, 16
          %5011 = vsyncadd %s5003, %s5010
          %s5012 = smul.addr %s28, 16
          %s5013 = scalar_lea.hbm %s8, %s5012
          %s5015 = sshll.u32 %s5005, 4
          %s5016 = int_to_ptr.vmem [resolvable:$true] %s5015
          %5018 = dma.vmem_to_hbm [thread:$0]  %s5016, 16, %s5013, %s5003
        $region52: #{personality_forward.1} parent=47 // pred_fallthru
          _
      $region48: #{personality_forward.1} parent=5 // pred_fallthru
        _
      %p5019 = scmp.le.s32.totalorder 2, %s23
      // Predicated region
      $region53: #{personality_forward.1} parent=5 // pred_check
        %p5020 = pneg %p5019
      $region54: #{personality_forward.1} parent=5 // pred_check_branch
        %5022 = sbr.rel (%p5020) target = $region56
      $region55: #{personality_forward.1} parent=5 // pred_region
        %s5023 = ssub.s32 %s23, 2
        // Predicated region
        $region57: #{personality_forward.1} parent=55 // pred_check
          %p5024 = pneg %p204
        $region58: #{personality_forward.1} parent=55 // pred_check_branch
          %5026 = sbr.rel (%p5024) target = $region60
        $region59: #{personality_forward.1} parent=55 // pred_region
          %s5027 = sand.u32 %s189, 1
          %s5028 = scalar_lea.sflag [#allocation7], %s5027
          %s5029 = sand.u32 %s189, 1
          %s5030 = scalar_lea.vmem [#allocation6], %s5029
          %5031 = dma.done %s5028, 16
        $region60: #{personality_forward.1} parent=55 // pred_fallthru
          _
      $region56: #{personality_forward.1} parent=5 // pred_fallthru
        _
    $region6: #{personality_forward.1} parent=1 // loop_footer
      %s27 = sadd.s32 1, %s23
    $region7: #{personality_forward.1} parent=1 // loop_footer_branch
      %22 = sbr.rel target = $region3
    $region8: #{personality_forward.1} parent=1 // loop_exit
      _
    %5032 = vsyncpa [#allocation7], 1
    %s5033 = scalar_lea.sflag [#allocation7], 1
    %5034 = vsyncpa %s5033, 1

</llo_original>
